<compile_context>
chip_gen: v7x
topology: tpu7x:2x2x1
jax: 0.10.0
libtpu: 0.0.40
codegen_flags: <defaults>
</compile_context>

<pallas_src>
import functools

import numpy as np

import jax
import jax.numpy as jnp
from jax.experimental import pallas as pl
from jax.experimental.pallas import tpu as pltpu


# ----------------------------------------------------------------------------
# Fused kernel: conv3x3+ReLU -> conv3x3+ReLU -> flatten -> FC+ReLU
# ----------------------------------------------------------------------------
def _encoder_kernel(x_ref, w1_ref, b1_ref, w2_ref, b2_ref, wfc_ref, bfc_ref,
                    o_ref):
    """All activations stay in VMEM / vregs.

    x_ref:   (bb*H, W*Cin)        rows = (b, y), lanes = (x, c)
    w1_ref:  (3, W*Cin, W*C1)     block-Toeplitz conv1 weight, one slab per dy
    b1_ref:  (1, W*C1)            bias tiled over x
    w2_ref:  (3, W*C1, W*C2)
    b2_ref:  (1, W*C2)
    wfc_ref: (Ho2, W*C2, L)       FC weight per valid output row y; zero rows
                                  for invalid columns x >= Wo2
    bfc_ref: (1, L)
    o_ref:   (1, bb, L)
    """
    rows = x_ref.shape[0]
    bb = o_ref.shape[1]
    H = rows // bb
    Ho2, WC2, L = wfc_ref.shape

    def shift_rows(v, dy):
        # shifted[i] = v[i + dy] (wrap-around).  Wrapped rows only ever feed
        # invalid conv outputs, and wrapping real data keeps them finite so the
        # zero FC rows reliably annihilate them (no 0 * NaN).
        if dy == 0:
            return v
        return jnp.concatenate([v[dy:, :], v[:dy, :]], axis=0)

    x = x_ref[...]

    # ---- conv1 + ReLU at full spatial extent: dx folded into the weight,
    #      dy handled by three row shifts -> 3 wide MXU matmuls. ----
    y1 = jnp.dot(x, w1_ref[0], preferred_element_type=jnp.float32)
    y1 = y1 + jnp.dot(shift_rows(x, 1), w1_ref[1],
                      preferred_element_type=jnp.float32)
    y1 = y1 + jnp.dot(shift_rows(x, 2), w1_ref[2],
                      preferred_element_type=jnp.float32)
    y1 = jnp.maximum(y1 + b1_ref[...], 0.0)            # (bb*H, W*C1)

    # ---- conv2 + ReLU, same structure. ----
    y2 = jnp.dot(y1, w2_ref[0], preferred_element_type=jnp.float32)
    y2 = y2 + jnp.dot(shift_rows(y1, 1), w2_ref[1],
                      preferred_element_type=jnp.float32)
    y2 = y2 + jnp.dot(shift_rows(y1, 2), w2_ref[2],
                      preferred_element_type=jnp.float32)
    y2 = jnp.maximum(y2 + b2_ref[...], 0.0)             # (bb*H, W*C2)

    # ---- flatten + FC + ReLU, fused (no HBM round trip, no 16-lane stores).
    #      Contract the valid rows one y at a time (static unrolled loop of
    #      Ho2 small matmuls); invalid columns are zero rows in wfc. ----
    y2r = y2.reshape(bb, H, WC2)                        # sublane split only
    acc = jnp.zeros((bb, L), jnp.float32)
    for y in range(Ho2):
        acc = acc + jnp.dot(y2r[:, y, :], wfc_ref[y],
                            preferred_element_type=jnp.float32)
    o_ref[0, :, :] = jnp.maximum(acc + bfc_ref[...], 0.0).astype(o_ref.dtype)


# ----------------------------------------------------------------------------
# Wrapper
# ----------------------------------------------------------------------------
def _pick_batch_block(batch, requested):
    """Largest divisor of `batch` <= requested that gives >= 2 grid steps."""
    if batch <= 1:
        return 1
    bb = max(1, min(requested, batch // 2))   # >= 2 steps (v7x: 2 TensorCores)
    while batch % bb:
        bb -= 1
    return bb


@functools.partial(jax.jit, static_argnames=("batch_block",))
def conv_encoder_forward(state_nchw, params, *, batch_block=8):
    """state_nchw: (B, C, H, W) float32 -> (B, latent_dim) float32."""
    B, Cin, H, W = state_nchw.shape
    WC1 = params["w1"].shape[2]
    WC2 = params["w2"].shape[2]
    Ho2 = params["w_fc"].shape[0]
    L = params["b_fc"].shape[-1]

    bb = _pick_batch_block(B, batch_block)
    grid = (B // bb,)

    # NCHW -> NHWC -> lane-dense 2-D slab (rows=(b,y), lanes=(x,c)).
    x2d = (jnp.transpose(state_nchw, (0, 2, 3, 1))
           .reshape(B * H, W * Cin).astype(jnp.float32))

    flops = 2 * B * H * 3 * (W * Cin * WC1 + WC1 * WC2) + 2 * B * Ho2 * WC2 * L
    bytes_accessed = 4 * (B * H * W * Cin + params["w1"].size + params["w2"].size
                          + params["w_fc"].size + B * L)

    out3 = pl.pallas_call(
        _encoder_kernel,
        out_shape=jax.ShapeDtypeStruct((B // bb, bb, L), jnp.float32),
        grid=grid,
        in_specs=[
            pl.BlockSpec((bb * H, W * Cin), lambda i: (i, 0)),
            # Weights/biases are resident (constant index map -> fetched once).
            pl.BlockSpec(params["w1"].shape, lambda i: (0, 0, 0)),
            pl.BlockSpec(params["b1"].shape, lambda i: (0, 0)),
            pl.BlockSpec(params["w2"].shape, lambda i: (0, 0, 0)),
            pl.BlockSpec(params["b2"].shape, lambda i: (0, 0)),
            pl.BlockSpec(params["w_fc"].shape, lambda i: (0, 0, 0)),
            pl.BlockSpec(params["b_fc"].shape, lambda i: (0, 0)),
        ],
        out_specs=pl.BlockSpec((1, bb, L), lambda i: (i, 0, 0)),
        compiler_params=pltpu.CompilerParams(
            dimension_semantics=("parallel",)),
        cost_estimate=pl.CostEstimate(flops=int(flops), transcendentals=0,
                                      bytes_accessed=int(bytes_accessed)),
    )(x2d, params["w1"], params["b1"], params["w2"], params["b2"],
      params["w_fc"], params["b_fc"])
    return out3.reshape(B, L)


# ----------------------------------------------------------------------------
# Parameters: PyTorch-layout init + host-side packing into kernel layout
# ----------------------------------------------------------------------------
def init_torch_params(key, state_shape, latent_dim):
    """Deterministic PyTorch-default-style uniform init, in PyTorch layouts."""
    c_in, hh, ww = state_shape
    ho2, wo2 = hh - 4, ww - 4
    feat = 16 * ho2 * wo2
    ks = jax.random.split(key, 6)

    def u(k, shape, fan_in):
        bound = 1.0 / np.sqrt(fan_in)
        return jax.random.uniform(k, shape, jnp.float32, -bound, bound)

    return {
        "conv1_w": u(ks[0], (32, c_in, 3, 3), 9 * c_in),
        "conv1_b": u(ks[1], (32,), 9 * c_in),
        "conv2_w": u(ks[2], (16, 32, 3, 3), 9 * 32),
        "conv2_b": u(ks[3], (16,), 9 * 32),
        "fc_w":   u(ks[4], (latent_dim, feat), feat),
        "fc_b":   u(ks[5], (latent_dim,), feat),
    }


def pack_params(tp, state_shape):
    """Build kernel-layout weights (host side, zero runtime cost).

    Conv weights become block-Toeplitz matrices mapping lanes (x', c_in) ->
    (x, c_out) with the dx tap folded in; one slab per dy.  The FC weight gets
    one (W*C2, L) slab per valid output row y, with zero rows for x >= Wo2.
    """
    c_in, hh, ww = state_shape
    c1, c2 = 32, 16
    ho2, wo2 = hh - 4, ww - 4

    w1 = np.asarray(tp["conv1_w"], np.float32)      # (c1, c_in, 3, 3)
    w2 = np.asarray(tp["conv2_w"], np.float32)      # (c2, c1, 3, 3)
    fc_w = np.asarray(tp["fc_w"], np.float32)       # (L, c2*ho2*wo2)
    latent = fc_w.shape[0]

    wc1 = np.zeros((3, ww * c_in, ww * c1), np.float32)
    wc2 = np.zeros((3, ww * c1, ww * c2), np.float32)
    for dy in range(3):
        for dx in range(3):
            blk1 = w1[:, :, dy, dx].T               # (c_in, c1) = [c, o]
            blk2 = w2[:, :, dy, dx].T               # (c1, c2)
            for x in range(ww - dx):
                xp = x + dx
                wc1[dy, xp * c_in:(xp + 1) * c_in, x * c1:(x + 1) * c1] = blk1
                wc2[dy, xp * c1:(xp + 1) * c1, x * c2:(x + 1) * c2] = blk2

    b1row = np.tile(np.asarray(tp["conv1_b"], np.float32), ww).reshape(1, ww * c1)
    b2row = np.tile(np.asarray(tp["conv2_b"], np.float32), ww).reshape(1, ww * c2)

    # fc_w.T rows are PyTorch NCHW flatten order: c*ho2*wo2 + y*wo2 + x.
    fc_w_t = fc_w.T.reshape(c2, ho2, wo2, latent)   # [c, y, x, l]
    wfc = np.zeros((ho2, ww * c2, latent), np.float32)
    for y in range(ho2):
        for x in range(wo2):
            wfc[y, x * c2:(x + 1) * c2, :] = fc_w_t[:, y, x, :]
    bfc = np.asarray(tp["fc_b"], np.float32).reshape(1, latent)

    return {
        "w1": jnp.asarray(wc1), "b1": jnp.asarray(b1row),
        "w2": jnp.asarray(wc2), "b2": jnp.asarray(b2row),
        "w_fc": jnp.asarray(wfc), "b_fc": jnp.asarray(bfc),
    }


# ----------------------------------------------------------------------------
# Pure-JAX reference (PyTorch semantics: NCHW convs + NCHW flatten)
# ----------------------------------------------------------------------------
def reference_forward(state_nchw, tp):
    hi = jax.lax.Precision.HIGHEST
    y = jax.lax.conv_general_dilated(
        state_nchw, tp["conv1_w"], (1, 1), "VALID",
        dimension_numbers=("NCHW", "OIHW", "NCHW"), precision=hi)
    y = jax.nn.relu(y + tp["conv1_b"].reshape(1, -1, 1, 1))
    y = jax.lax.conv_general_dilated(
        y, tp["conv2_w"], (1, 1), "VALID",
        dimension_numbers=("NCHW", "OIHW", "NCHW"), precision=hi)
    y = jax.nn.relu(y + tp["conv2_b"].reshape(1, -1, 1, 1))
    flat = y.reshape(y.shape[0], -1)                       # NCHW flatten
    out = jnp.dot(flat, tp["fc_w"].T, precision=hi) + tp["fc_b"]
    return jax.nn.relu(out)


# ----------------------------------------------------------------------------
if __name__ == "__main__":
    state_shape = (4, 16, 16)      # (C, H, W) — MinAtar-like
    latent_dim = 32
    batch = 2

    key = jax.random.PRNGKey(0)
    k_params, k_state = jax.random.split(key)

    torch_params = init_torch_params(k_params, state_shape, latent_dim)
    params = pack_params(torch_params, state_shape)
    state = jax.random.normal(k_state, (batch, *state_shape), jnp.float32)

    out = conv_encoder_forward(state, params)
    out = jax.block_until_ready(out)

    assert out.shape == (batch, latent_dim), out.shape
    assert out.dtype == jnp.float32
    assert bool(jnp.all(jnp.isfinite(out)))
    assert bool(jnp.all(out >= 0.0))          # final ReLU

    ref = reference_forward(state, torch_params)
    # Tolerance covers MXU f32-matmul rounding vs. the HIGHEST-precision
    # reference; a structural bug would show O(0.1-1) errors.
    assert bool(jnp.allclose(out, ref, rtol=1e-2, atol=1e-2)), (
        float(jnp.max(jnp.abs(out - ref))))

    print("KERNEL_OK")
</pallas_src>

<mosaic_0001>
module attributes {stable_mosaic.version = 11 : i64} {
  func.func @_encoder_kernel(%arg0: i32, %arg1: memref<16x64xf32, #tpu.memory_space<vmem>>, %arg2: memref<3x64x512xf32, #tpu.memory_space<vmem>>, %arg3: memref<1x512xf32, #tpu.memory_space<vmem>>, %arg4: memref<3x512x256xf32, #tpu.memory_space<vmem>>, %arg5: memref<1x256xf32, #tpu.memory_space<vmem>>, %arg6: memref<12x256x32xf32, #tpu.memory_space<vmem>>, %arg7: memref<1x32xf32, #tpu.memory_space<vmem>>, %arg8: memref<1x1x32xf32, #tpu.memory_space<vmem>>) attributes {dimension_semantics = [#tpu.dimension_semantics<parallel>], iteration_bounds = array<i64: 2>, scalar_prefetch = 0 : i64, scratch_operands = 0 : i64, tpu.core_type = #tpu.core_type<tc>, window_params = [{transform_indices = @transform_0, window_bounds = array<i64: 16, 64>}, {pipeline_mode = #tpu.pipeline_mode<synchronous>, transform_indices = @transform_1, window_bounds = array<i64: 3, 64, 512>}, {pipeline_mode = #tpu.pipeline_mode<synchronous>, transform_indices = @transform_2, window_bounds = array<i64: 1, 512>}, {pipeline_mode = #tpu.pipeline_mode<synchronous>, transform_indices = @transform_3, window_bounds = array<i64: 3, 512, 256>}, {pipeline_mode = #tpu.pipeline_mode<synchronous>, transform_indices = @transform_4, window_bounds = array<i64: 1, 256>}, {pipeline_mode = #tpu.pipeline_mode<synchronous>, transform_indices = @transform_5, window_bounds = array<i64: 12, 256, 32>}, {pipeline_mode = #tpu.pipeline_mode<synchronous>, transform_indices = @transform_6, window_bounds = array<i64: 1, 32>}, {transform_indices = @transform_7, window_bounds = array<i64: 1, 1, 32>}]} {
    %c0 = arith.constant 0 : index
    %c0_0 = arith.constant 0 : index
    %0 = vector.load %arg1[%c0, %c0_0] : memref<16x64xf32, #tpu.memory_space<vmem>>, vector<16x64xf32>
    %c0_1 = arith.constant 0 : index
    %c0_2 = arith.constant 0 : index
    %c0_3 = arith.constant 0 : index
    %1 = vector.load %arg2[%c0_1, %c0_2, %c0_3] : memref<3x64x512xf32, #tpu.memory_space<vmem>>, vector<1x64x512xf32>
    %2 = vector.shape_cast %1 : vector<1x64x512xf32> to vector<64x512xf32>
    %cst = arith.constant dense<0.000000e+00> : vector<16x512xf32>
    %3 = tpu.matmul %0, %2, %cst {dimension_numbers = #tpu.dot_dimension_numbers<[1], [0], [0], [1], [0, 0, 1, 1], [], []>} : vector<16x64xf32>, vector<64x512xf32>, vector<16x512xf32> -> vector<16x512xf32>
    %4 = vector.extract_strided_slice %0 {offsets = [1, 0], sizes = [15, 64], strides = [1, 1]} : vector<16x64xf32> to vector<15x64xf32>
    %5 = vector.extract_strided_slice %0 {offsets = [0, 0], sizes = [1, 64], strides = [1, 1]} : vector<16x64xf32> to vector<1x64xf32>
    %6 = tpu.concatenate %4, %5 in 0 : vector<15x64xf32>, vector<1x64xf32> -> vector<16x64xf32>
    %c1 = arith.constant 1 : index
    %c0_4 = arith.constant 0 : index
    %c0_5 = arith.constant 0 : index
    %7 = vector.load %arg2[%c1, %c0_4, %c0_5] : memref<3x64x512xf32, #tpu.memory_space<vmem>>, vector<1x64x512xf32>
    %8 = vector.shape_cast %7 : vector<1x64x512xf32> to vector<64x512xf32>
    %cst_6 = arith.constant dense<0.000000e+00> : vector<16x512xf32>
    %9 = tpu.matmul %6, %8, %cst_6 {dimension_numbers = #tpu.dot_dimension_numbers<[1], [0], [0], [1], [0, 0, 1, 1], [], []>} : vector<16x64xf32>, vector<64x512xf32>, vector<16x512xf32> -> vector<16x512xf32>
    %10 = arith.addf %3, %9 : vector<16x512xf32>
    %11 = vector.extract_strided_slice %0 {offsets = [2, 0], sizes = [14, 64], strides = [1, 1]} : vector<16x64xf32> to vector<14x64xf32>
    %12 = vector.extract_strided_slice %0 {offsets = [0, 0], sizes = [2, 64], strides = [1, 1]} : vector<16x64xf32> to vector<2x64xf32>
    %13 = tpu.concatenate %11, %12 in 0 : vector<14x64xf32>, vector<2x64xf32> -> vector<16x64xf32>
    %c2 = arith.constant 2 : index
    %c0_7 = arith.constant 0 : index
    %c0_8 = arith.constant 0 : index
    %14 = vector.load %arg2[%c2, %c0_7, %c0_8] : memref<3x64x512xf32, #tpu.memory_space<vmem>>, vector<1x64x512xf32>
    %15 = vector.shape_cast %14 : vector<1x64x512xf32> to vector<64x512xf32>
    %cst_9 = arith.constant dense<0.000000e+00> : vector<16x512xf32>
    %16 = tpu.matmul %13, %15, %cst_9 {dimension_numbers = #tpu.dot_dimension_numbers<[1], [0], [0], [1], [0, 0, 1, 1], [], []>} : vector<16x64xf32>, vector<64x512xf32>, vector<16x512xf32> -> vector<16x512xf32>
    %17 = arith.addf %10, %16 : vector<16x512xf32>
    %c0_10 = arith.constant 0 : index
    %c0_11 = arith.constant 0 : index
    %18 = vector.load %arg3[%c0_10, %c0_11] : memref<1x512xf32, #tpu.memory_space<vmem>>, vector<1x512xf32>
    %19 = vector.broadcast %18 : vector<1x512xf32> to vector<16x512xf32>
    %20 = arith.addf %17, %19 : vector<16x512xf32>
    %cst_12 = arith.constant 0.000000e+00 : f32
    %21 = vector.broadcast %cst_12 : f32 to vector<16x512xf32>
    %22 = arith.maximumf %20, %21 : vector<16x512xf32>
    %c0_13 = arith.constant 0 : index
    %c0_14 = arith.constant 0 : index
    %c0_15 = arith.constant 0 : index
    %23 = vector.load %arg4[%c0_13, %c0_14, %c0_15] : memref<3x512x256xf32, #tpu.memory_space<vmem>>, vector<1x512x256xf32>
    %24 = vector.shape_cast %23 : vector<1x512x256xf32> to vector<512x256xf32>
    %cst_16 = arith.constant dense<0.000000e+00> : vector<16x256xf32>
    %25 = tpu.matmul %22, %24, %cst_16 {dimension_numbers = #tpu.dot_dimension_numbers<[1], [0], [0], [1], [0, 0, 1, 1], [], []>} : vector<16x512xf32>, vector<512x256xf32>, vector<16x256xf32> -> vector<16x256xf32>
    %26 = vector.extract_strided_slice %22 {offsets = [1, 0], sizes = [15, 512], strides = [1, 1]} : vector<16x512xf32> to vector<15x512xf32>
    %27 = vector.extract_strided_slice %22 {offsets = [0, 0], sizes = [1, 512], strides = [1, 1]} : vector<16x512xf32> to vector<1x512xf32>
    %28 = tpu.concatenate %26, %27 in 0 : vector<15x512xf32>, vector<1x512xf32> -> vector<16x512xf32>
    %c1_17 = arith.constant 1 : index
    %c0_18 = arith.constant 0 : index
    %c0_19 = arith.constant 0 : index
    %29 = vector.load %arg4[%c1_17, %c0_18, %c0_19] : memref<3x512x256xf32, #tpu.memory_space<vmem>>, vector<1x512x256xf32>
    %30 = vector.shape_cast %29 : vector<1x512x256xf32> to vector<512x256xf32>
    %cst_20 = arith.constant dense<0.000000e+00> : vector<16x256xf32>
    %31 = tpu.matmul %28, %30, %cst_20 {dimension_numbers = #tpu.dot_dimension_numbers<[1], [0], [0], [1], [0, 0, 1, 1], [], []>} : vector<16x512xf32>, vector<512x256xf32>, vector<16x256xf32> -> vector<16x256xf32>
    %32 = arith.addf %25, %31 : vector<16x256xf32>
    %33 = vector.extract_strided_slice %22 {offsets = [2, 0], sizes = [14, 512], strides = [1, 1]} : vector<16x512xf32> to vector<14x512xf32>
    %34 = vector.extract_strided_slice %22 {offsets = [0, 0], sizes = [2, 512], strides = [1, 1]} : vector<16x512xf32> to vector<2x512xf32>
    %35 = tpu.concatenate %33, %34 in 0 : vector<14x512xf32>, vector<2x512xf32> -> vector<16x512xf32>
    %c2_21 = arith.constant 2 : index
    %c0_22 = arith.constant 0 : index
    %c0_23 = arith.constant 0 : index
    %36 = vector.load %arg4[%c2_21, %c0_22, %c0_23] : memref<3x512x256xf32, #tpu.memory_space<vmem>>, vector<1x512x256xf32>
    %37 = vector.shape_cast %36 : vector<1x512x256xf32> to vector<512x256xf32>
    %cst_24 = arith.constant dense<0.000000e+00> : vector<16x256xf32>
    %38 = tpu.matmul %35, %37, %cst_24 {dimension_numbers = #tpu.dot_dimension_numbers<[1], [0], [0], [1], [0, 0, 1, 1], [], []>} : vector<16x512xf32>, vector<512x256xf32>, vector<16x256xf32> -> vector<16x256xf32>
    %39 = arith.addf %32, %38 : vector<16x256xf32>
    %c0_25 = arith.constant 0 : index
    %c0_26 = arith.constant 0 : index
    %40 = vector.load %arg5[%c0_25, %c0_26] : memref<1x256xf32, #tpu.memory_space<vmem>>, vector<1x256xf32>
    %41 = vector.broadcast %40 : vector<1x256xf32> to vector<16x256xf32>
    %42 = arith.addf %39, %41 : vector<16x256xf32>
    %cst_27 = arith.constant 0.000000e+00 : f32
    %43 = vector.broadcast %cst_27 : f32 to vector<16x256xf32>
    %44 = arith.maximumf %42, %43 : vector<16x256xf32>
    %45 = vector.shape_cast %44 : vector<16x256xf32> to vector<1x16x256xf32>
    %cst_28 = arith.constant 0.000000e+00 : f32
    %46 = vector.broadcast %cst_28 : f32 to vector<1x32xf32>
    %47 = vector.extract_strided_slice %45 {offsets = [0, 0, 0], sizes = [1, 1, 256], strides = [1, 1, 1]} : vector<1x16x256xf32> to vector<1x1x256xf32>
    %48 = vector.shape_cast %47 : vector<1x1x256xf32> to vector<1x256xf32>
    %c0_29 = arith.constant 0 : index
    %c0_30 = arith.constant 0 : index
    %c0_31 = arith.constant 0 : index
    %49 = vector.load %arg6[%c0_29, %c0_30, %c0_31] : memref<12x256x32xf32, #tpu.memory_space<vmem>>, vector<1x256x32xf32>
    %50 = vector.shape_cast %49 : vector<1x256x32xf32> to vector<256x32xf32>
    %cst_32 = arith.constant dense<0.000000e+00> : vector<1x32xf32>
    %51 = tpu.matmul %48, %50, %cst_32 {dimension_numbers = #tpu.dot_dimension_numbers<[1], [0], [0], [1], [0, 0, 1, 1], [], []>} : vector<1x256xf32>, vector<256x32xf32>, vector<1x32xf32> -> vector<1x32xf32>
    %52 = arith.addf %46, %51 : vector<1x32xf32>
    %53 = vector.extract_strided_slice %45 {offsets = [0, 1, 0], sizes = [1, 1, 256], strides = [1, 1, 1]} : vector<1x16x256xf32> to vector<1x1x256xf32>
    %54 = vector.shape_cast %53 : vector<1x1x256xf32> to vector<1x256xf32>
    %c1_33 = arith.constant 1 : index
    %c0_34 = arith.constant 0 : index
    %c0_35 = arith.constant 0 : index
    %55 = vector.load %arg6[%c1_33, %c0_34, %c0_35] : memref<12x256x32xf32, #tpu.memory_space<vmem>>, vector<1x256x32xf32>
    %56 = vector.shape_cast %55 : vector<1x256x32xf32> to vector<256x32xf32>
    %cst_36 = arith.constant dense<0.000000e+00> : vector<1x32xf32>
    %57 = tpu.matmul %54, %56, %cst_36 {dimension_numbers = #tpu.dot_dimension_numbers<[1], [0], [0], [1], [0, 0, 1, 1], [], []>} : vector<1x256xf32>, vector<256x32xf32>, vector<1x32xf32> -> vector<1x32xf32>
    %58 = arith.addf %52, %57 : vector<1x32xf32>
    %59 = vector.extract_strided_slice %45 {offsets = [0, 2, 0], sizes = [1, 1, 256], strides = [1, 1, 1]} : vector<1x16x256xf32> to vector<1x1x256xf32>
    %60 = vector.shape_cast %59 : vector<1x1x256xf32> to vector<1x256xf32>
    %c2_37 = arith.constant 2 : index
    %c0_38 = arith.constant 0 : index
    %c0_39 = arith.constant 0 : index
    %61 = vector.load %arg6[%c2_37, %c0_38, %c0_39] : memref<12x256x32xf32, #tpu.memory_space<vmem>>, vector<1x256x32xf32>
    %62 = vector.shape_cast %61 : vector<1x256x32xf32> to vector<256x32xf32>
    %cst_40 = arith.constant dense<0.000000e+00> : vector<1x32xf32>
    %63 = tpu.matmul %60, %62, %cst_40 {dimension_numbers = #tpu.dot_dimension_numbers<[1], [0], [0], [1], [0, 0, 1, 1], [], []>} : vector<1x256xf32>, vector<256x32xf32>, vector<1x32xf32> -> vector<1x32xf32>
    %64 = arith.addf %58, %63 : vector<1x32xf32>
    %65 = vector.extract_strided_slice %45 {offsets = [0, 3, 0], sizes = [1, 1, 256], strides = [1, 1, 1]} : vector<1x16x256xf32> to vector<1x1x256xf32>
    %66 = vector.shape_cast %65 : vector<1x1x256xf32> to vector<1x256xf32>
    %c3 = arith.constant 3 : index
    %c0_41 = arith.constant 0 : index
    %c0_42 = arith.constant 0 : index
    %67 = vector.load %arg6[%c3, %c0_41, %c0_42] : memref<12x256x32xf32, #tpu.memory_space<vmem>>, vector<1x256x32xf32>
    %68 = vector.shape_cast %67 : vector<1x256x32xf32> to vector<256x32xf32>
    %cst_43 = arith.constant dense<0.000000e+00> : vector<1x32xf32>
    %69 = tpu.matmul %66, %68, %cst_43 {dimension_numbers = #tpu.dot_dimension_numbers<[1], [0], [0], [1], [0, 0, 1, 1], [], []>} : vector<1x256xf32>, vector<256x32xf32>, vector<1x32xf32> -> vector<1x32xf32>
    %70 = arith.addf %64, %69 : vector<1x32xf32>
    %71 = vector.extract_strided_slice %45 {offsets = [0, 4, 0], sizes = [1, 1, 256], strides = [1, 1, 1]} : vector<1x16x256xf32> to vector<1x1x256xf32>
    %72 = vector.shape_cast %71 : vector<1x1x256xf32> to vector<1x256xf32>
    %c4 = arith.constant 4 : index
    %c0_44 = arith.constant 0 : index
    %c0_45 = arith.constant 0 : index
    %73 = vector.load %arg6[%c4, %c0_44, %c0_45] : memref<12x256x32xf32, #tpu.memory_space<vmem>>, vector<1x256x32xf32>
    %74 = vector.shape_cast %73 : vector<1x256x32xf32> to vector<256x32xf32>
    %cst_46 = arith.constant dense<0.000000e+00> : vector<1x32xf32>
    %75 = tpu.matmul %72, %74, %cst_46 {dimension_numbers = #tpu.dot_dimension_numbers<[1], [0], [0], [1], [0, 0, 1, 1], [], []>} : vector<1x256xf32>, vector<256x32xf32>, vector<1x32xf32> -> vector<1x32xf32>
    %76 = arith.addf %70, %75 : vector<1x32xf32>
    %77 = vector.extract_strided_slice %45 {offsets = [0, 5, 0], sizes = [1, 1, 256], strides = [1, 1, 1]} : vector<1x16x256xf32> to vector<1x1x256xf32>
    %78 = vector.shape_cast %77 : vector<1x1x256xf32> to vector<1x256xf32>
    %c5 = arith.constant 5 : index
    %c0_47 = arith.constant 0 : index
    %c0_48 = arith.constant 0 : index
    %79 = vector.load %arg6[%c5, %c0_47, %c0_48] : memref<12x256x32xf32, #tpu.memory_space<vmem>>, vector<1x256x32xf32>
    %80 = vector.shape_cast %79 : vector<1x256x32xf32> to vector<256x32xf32>
    %cst_49 = arith.constant dense<0.000000e+00> : vector<1x32xf32>
    %81 = tpu.matmul %78, %80, %cst_49 {dimension_numbers = #tpu.dot_dimension_numbers<[1], [0], [0], [1], [0, 0, 1, 1], [], []>} : vector<1x256xf32>, vector<256x32xf32>, vector<1x32xf32> -> vector<1x32xf32>
    %82 = arith.addf %76, %81 : vector<1x32xf32>
    %83 = vector.extract_strided_slice %45 {offsets = [0, 6, 0], sizes = [1, 1, 256], strides = [1, 1, 1]} : vector<1x16x256xf32> to vector<1x1x256xf32>
    %84 = vector.shape_cast %83 : vector<1x1x256xf32> to vector<1x256xf32>
    %c6 = arith.constant 6 : index
    %c0_50 = arith.constant 0 : index
    %c0_51 = arith.constant 0 : index
    %85 = vector.load %arg6[%c6, %c0_50, %c0_51] : memref<12x256x32xf32, #tpu.memory_space<vmem>>, vector<1x256x32xf32>
    %86 = vector.shape_cast %85 : vector<1x256x32xf32> to vector<256x32xf32>
    %cst_52 = arith.constant dense<0.000000e+00> : vector<1x32xf32>
    %87 = tpu.matmul %84, %86, %cst_52 {dimension_numbers = #tpu.dot_dimension_numbers<[1], [0], [0], [1], [0, 0, 1, 1], [], []>} : vector<1x256xf32>, vector<256x32xf32>, vector<1x32xf32> -> vector<1x32xf32>
    %88 = arith.addf %82, %87 : vector<1x32xf32>
    %89 = vector.extract_strided_slice %45 {offsets = [0, 7, 0], sizes = [1, 1, 256], strides = [1, 1, 1]} : vector<1x16x256xf32> to vector<1x1x256xf32>
    %90 = vector.shape_cast %89 : vector<1x1x256xf32> to vector<1x256xf32>
    %c7 = arith.constant 7 : index
    %c0_53 = arith.constant 0 : index
    %c0_54 = arith.constant 0 : index
    %91 = vector.load %arg6[%c7, %c0_53, %c0_54] : memref<12x256x32xf32, #tpu.memory_space<vmem>>, vector<1x256x32xf32>
    %92 = vector.shape_cast %91 : vector<1x256x32xf32> to vector<256x32xf32>
    %cst_55 = arith.constant dense<0.000000e+00> : vector<1x32xf32>
    %93 = tpu.matmul %90, %92, %cst_55 {dimension_numbers = #tpu.dot_dimension_numbers<[1], [0], [0], [1], [0, 0, 1, 1], [], []>} : vector<1x256xf32>, vector<256x32xf32>, vector<1x32xf32> -> vector<1x32xf32>
    %94 = arith.addf %88, %93 : vector<1x32xf32>
    %95 = vector.extract_strided_slice %45 {offsets = [0, 8, 0], sizes = [1, 1, 256], strides = [1, 1, 1]} : vector<1x16x256xf32> to vector<1x1x256xf32>
    %96 = vector.shape_cast %95 : vector<1x1x256xf32> to vector<1x256xf32>
    %c8 = arith.constant 8 : index
    %c0_56 = arith.constant 0 : index
    %c0_57 = arith.constant 0 : index
    %97 = vector.load %arg6[%c8, %c0_56, %c0_57] : memref<12x256x32xf32, #tpu.memory_space<vmem>>, vector<1x256x32xf32>
    %98 = vector.shape_cast %97 : vector<1x256x32xf32> to vector<256x32xf32>
    %cst_58 = arith.constant dense<0.000000e+00> : vector<1x32xf32>
    %99 = tpu.matmul %96, %98, %cst_58 {dimension_numbers = #tpu.dot_dimension_numbers<[1], [0], [0], [1], [0, 0, 1, 1], [], []>} : vector<1x256xf32>, vector<256x32xf32>, vector<1x32xf32> -> vector<1x32xf32>
    %100 = arith.addf %94, %99 : vector<1x32xf32>
    %101 = vector.extract_strided_slice %45 {offsets = [0, 9, 0], sizes = [1, 1, 256], strides = [1, 1, 1]} : vector<1x16x256xf32> to vector<1x1x256xf32>
    %102 = vector.shape_cast %101 : vector<1x1x256xf32> to vector<1x256xf32>
    %c9 = arith.constant 9 : index
    %c0_59 = arith.constant 0 : index
    %c0_60 = arith.constant 0 : index
    %103 = vector.load %arg6[%c9, %c0_59, %c0_60] : memref<12x256x32xf32, #tpu.memory_space<vmem>>, vector<1x256x32xf32>
    %104 = vector.shape_cast %103 : vector<1x256x32xf32> to vector<256x32xf32>
    %cst_61 = arith.constant dense<0.000000e+00> : vector<1x32xf32>
    %105 = tpu.matmul %102, %104, %cst_61 {dimension_numbers = #tpu.dot_dimension_numbers<[1], [0], [0], [1], [0, 0, 1, 1], [], []>} : vector<1x256xf32>, vector<256x32xf32>, vector<1x32xf32> -> vector<1x32xf32>
    %106 = arith.addf %100, %105 : vector<1x32xf32>
    %107 = vector.extract_strided_slice %45 {offsets = [0, 10, 0], sizes = [1, 1, 256], strides = [1, 1, 1]} : vector<1x16x256xf32> to vector<1x1x256xf32>
    %108 = vector.shape_cast %107 : vector<1x1x256xf32> to vector<1x256xf32>
    %c10 = arith.constant 10 : index
    %c0_62 = arith.constant 0 : index
    %c0_63 = arith.constant 0 : index
    %109 = vector.load %arg6[%c10, %c0_62, %c0_63] : memref<12x256x32xf32, #tpu.memory_space<vmem>>, vector<1x256x32xf32>
    %110 = vector.shape_cast %109 : vector<1x256x32xf32> to vector<256x32xf32>
    %cst_64 = arith.constant dense<0.000000e+00> : vector<1x32xf32>
    %111 = tpu.matmul %108, %110, %cst_64 {dimension_numbers = #tpu.dot_dimension_numbers<[1], [0], [0], [1], [0, 0, 1, 1], [], []>} : vector<1x256xf32>, vector<256x32xf32>, vector<1x32xf32> -> vector<1x32xf32>
    %112 = arith.addf %106, %111 : vector<1x32xf32>
    %113 = vector.extract_strided_slice %45 {offsets = [0, 11, 0], sizes = [1, 1, 256], strides = [1, 1, 1]} : vector<1x16x256xf32> to vector<1x1x256xf32>
    %114 = vector.shape_cast %113 : vector<1x1x256xf32> to vector<1x256xf32>
    %c11 = arith.constant 11 : index
    %c0_65 = arith.constant 0 : index
    %c0_66 = arith.constant 0 : index
    %115 = vector.load %arg6[%c11, %c0_65, %c0_66] : memref<12x256x32xf32, #tpu.memory_space<vmem>>, vector<1x256x32xf32>
    %116 = vector.shape_cast %115 : vector<1x256x32xf32> to vector<256x32xf32>
    %cst_67 = arith.constant dense<0.000000e+00> : vector<1x32xf32>
    %117 = tpu.matmul %114, %116, %cst_67 {dimension_numbers = #tpu.dot_dimension_numbers<[1], [0], [0], [1], [0, 0, 1, 1], [], []>} : vector<1x256xf32>, vector<256x32xf32>, vector<1x32xf32> -> vector<1x32xf32>
    %118 = arith.addf %112, %117 : vector<1x32xf32>
    %c0_68 = arith.constant 0 : index
    %c0_69 = arith.constant 0 : index
    %119 = vector.load %arg7[%c0_68, %c0_69] : memref<1x32xf32, #tpu.memory_space<vmem>>, vector<1x32xf32>
    %120 = arith.addf %118, %119 : vector<1x32xf32>
    %cst_70 = arith.constant 0.000000e+00 : f32
    %121 = vector.broadcast %cst_70 : f32 to vector<1x32xf32>
    %122 = arith.maximumf %120, %121 : vector<1x32xf32>
    %c0_71 = arith.constant 0 : index
    %c0_72 = arith.constant 0 : index
    %c0_73 = arith.constant 0 : index
    %123 = vector.load %arg8[%c0_71, %c0_72, %c0_73] : memref<1x1x32xf32, #tpu.memory_space<vmem>>, vector<1x1x32xf32>
    %124 = vector.shape_cast %123 : vector<1x1x32xf32> to vector<1x32xf32>
    %125 = vector.shape_cast %122 : vector<1x32xf32> to vector<1x1x32xf32>
    tpu.vector_store %arg8[%c0_71, %c0_72, %c0_73], %125 {strides = array<i32>} : memref<1x1x32xf32, #tpu.memory_space<vmem>>, vector<1x1x32xf32>,
    return
  }
  func.func @transform_0(%arg0: i32) -> (i32, i32) {
    %c0_i32 = arith.constant 0 : i32
    %c0_i32_0 = arith.constant 0 : i32
    return %arg0, %c0_i32 : i32, i32
  }
  func.func @transform_1(%arg0: i32) -> (i32, i32, i32) {
    %c0_i32 = arith.constant 0 : i32
    %c0_i32_0 = arith.constant 0 : i32
    %c0_i32_1 = arith.constant 0 : i32
    %c0_i32_2 = arith.constant 0 : i32
    return %c0_i32, %c0_i32_0, %c0_i32_1 : i32, i32, i32
  }
  func.func @transform_2(%arg0: i32) -> (i32, i32) {
    %c0_i32 = arith.constant 0 : i32
    %c0_i32_0 = arith.constant 0 : i32
    %c0_i32_1 = arith.constant 0 : i32
    return %c0_i32, %c0_i32_0 : i32, i32
  }
  func.func @transform_3(%arg0: i32) -> (i32, i32, i32) {
    %c0_i32 = arith.constant 0 : i32
    %c0_i32_0 = arith.constant 0 : i32
    %c0_i32_1 = arith.constant 0 : i32
    %c0_i32_2 = arith.constant 0 : i32
    return %c0_i32, %c0_i32_0, %c0_i32_1 : i32, i32, i32
  }
  func.func @transform_4(%arg0: i32) -> (i32, i32) {
    %c0_i32 = arith.constant 0 : i32
    %c0_i32_0 = arith.constant 0 : i32
    %c0_i32_1 = arith.constant 0 : i32
    return %c0_i32, %c0_i32_0 : i32, i32
  }
  func.func @transform_5(%arg0: i32) -> (i32, i32, i32) {
    %c0_i32 = arith.constant 0 : i32
    %c0_i32_0 = arith.constant 0 : i32
    %c0_i32_1 = arith.constant 0 : i32
    %c0_i32_2 = arith.constant 0 : i32
    return %c0_i32, %c0_i32_0, %c0_i32_1 : i32, i32, i32
  }
  func.func @transform_6(%arg0: i32) -> (i32, i32) {
    %c0_i32 = arith.constant 0 : i32
    %c0_i32_0 = arith.constant 0 : i32
    %c0_i32_1 = arith.constant 0 : i32
    return %c0_i32, %c0_i32_0 : i32, i32
  }
  func.func @transform_7(%arg0: i32) -> (i32, i32, i32) {
    %c0_i32 = arith.constant 0 : i32
    %c0_i32_0 = arith.constant 0 : i32
    %c0_i32_1 = arith.constant 0 : i32
    return %arg0, %c0_i32, %c0_i32_0 : i32, i32, i32
  }
}

</mosaic_0001>

<llo_original>
// kernel: conv_encoder_forward.1
$region0: #{conv_encoder_forward.1}
  #allocation0 [shape = 'u32[]', space=smem, size = 0x4, offset = 0x4, fixed_abs, tag = 'smem constant byte address 0x4 - core index']
  #allocation1 [shape = 'u32[144,128]{1,0:T(1,128)}', space=vmem, size = 0x12000, scoped, tag = 'internal scratch']
  %s0 = inlined_call_operand.vmem [shape: f32[32,64], index: 0, kind: input, shape index: {}]
  %s1 = inlined_call_operand.vmem [shape: f32[3,64,512], index: 1, kind: input, shape index: {}]
  %s2 = inlined_call_operand.vmem [shape: f32[1,512], index: 2, kind: input, shape index: {}]
  %s3 = inlined_call_operand.vmem [shape: f32[3,512,256], index: 3, kind: input, shape index: {}]
  %s4 = inlined_call_operand.vmem [shape: f32[1,256], index: 4, kind: input, shape index: {}]
  %s5 = inlined_call_operand.vmem [shape: f32[12,256,32], index: 5, kind: input, shape index: {}]
  %s6 = inlined_call_operand.vmem [shape: f32[1,32], index: 6, kind: input, shape index: {}]
  %s7 = inlined_call_operand.hbm [shape: f32[2,1,32], index: 7, kind: output, shape index: {}]
  %s8 = sld [smem:[#allocation0]]
  $region61: #{conv_encoder_forward.1} parent=0
    _
  %s10 = ssub.s32 1, %s8
  %s11 = scalar_select 0, %s10, %s8
  $region1: #{conv_encoder_forward.1} parent=0
    #allocation2 [shape = 'u8[1024]{0}', space=vmem, size = 0x400, scoped, tag = 'output window, operand 0']
    #allocation3 [shape = 's32[2]{0}', space=sflag, size = 0x8, scoped, tag = 'scoped memory for conv_encoder_forward.1']
    %12 = vsyncpa [#allocation3], 0
    %s13 = scalar_lea.sflag [#allocation3], 1
    %14 = vsyncpa %s13, 0
    loop: start=0, step=1, limit=4
    $region2: #{conv_encoder_forward.1} parent=1 // loop_pre_header
      _
    $region3: #{conv_encoder_forward.1} parent=1 // loop_header
      %s16 = sphi 0, %s20
      %p17 = scmp.ge.s32.totalorder %s16, 4
      %s26 = sphi 0, %s28
      %s29 = sphi 0, %s26
      %s30 = sphi 0, %s29
      %s46 = sphi 0, %s30
      %s50 = sphi 0, %s50
      %s52 = sphi 0, %s50
      %s53 = sphi 0, %s52
      %s67 = sphi 0, %s53
      %s71 = sphi 0, %s71
      %s73 = sphi 0, %s71
      %s74 = sphi 0, %s73
      %s88 = sphi 0, %s74
      %s92 = sphi 0, %s92
      %s94 = sphi 0, %s92
      %s95 = sphi 0, %s94
      %s109 = sphi 0, %s95
      %s113 = sphi 0, %s113
      %s115 = sphi 0, %s113
      %s116 = sphi 0, %s115
      %s130 = sphi 0, %s116
      %s134 = sphi 0, %s134
      %s136 = sphi 0, %s134
      %s137 = sphi 0, %s136
      %s151 = sphi 0, %s137
      %s155 = sphi 0, %s155
      %s157 = sphi 0, %s155
      %s158 = sphi 0, %s157
      %s172 = sphi 0, %s158
      %s178 = sphi 0, %s180
      %s181 = sphi 0, %s178
      %s182 = sphi 0, %s181
      %s198 = sphi 0, %s182
    $region4: #{conv_encoder_forward.1} parent=1 // loop_header_branch
      %19 = sbr.rel (%p17) target = $region8
    $region5: #{conv_encoder_forward.1} parent=1 // loop_body
      %s21 = ssub.s32 %s16, 1
      %s22 = ssub.s32 %s16, 2
      %s23 = sadd.s32 %s16, 1
      %s24 = ssub.s32 %s16, %s23
      %p25 = scmp.eq.s32.totalorder %s24, 0
      %s27 = sadd.s32 %s26, 1
      %s28 = scalar_select %p25, %s26, %s27
      %p31 = pneg %p25
      %p32 = scmp.eq.s32.totalorder %s16, 1
      %p33 = por %p31, %p32
      %p34 = scmp.ne.s32.totalorder %s26, %s29
      %p35 = scmp.eq.s32.totalorder %s16, 0
      %p36 = por %p34, %p35
      %p37 = scmp.ne.s32.totalorder %s26, %s29
      %p38 = scmp.eq.s32.totalorder %s21, 1
      %p39 = por %p37, %p38
      %p40 = scmp.ne.s32.totalorder %s29, %s30
      %p41 = scmp.eq.s32.totalorder %s21, 0
      %p42 = por %p40, %p41
      %p43 = scmp.ne.s32.totalorder %s29, %s30
      %p44 = scmp.eq.s32.totalorder %s22, 1
      %p45 = por %p43, %p44
      %p47 = scmp.ne.s32.totalorder %s30, %s46
      %p48 = scmp.eq.s32.totalorder %s22, 0
      %p49 = por %p47, %p48
      %s51 = sadd.s32 %s50, 1
      %p54 = scmp.eq.s32.totalorder %s16, 1
      %p55 = scmp.ne.s32.totalorder %s50, %s52
      %p56 = scmp.eq.s32.totalorder %s16, 0
      %p57 = por %p55, %p56
      %p58 = scmp.ne.s32.totalorder %s50, %s52
      %p59 = scmp.eq.s32.totalorder %s21, 1
      %p60 = por %p58, %p59
      %p61 = scmp.ne.s32.totalorder %s52, %s53
      %p62 = scmp.eq.s32.totalorder %s21, 0
      %p63 = por %p61, %p62
      %p64 = scmp.ne.s32.totalorder %s52, %s53
      %p65 = scmp.eq.s32.totalorder %s22, 1
      %p66 = por %p64, %p65
      %p68 = scmp.ne.s32.totalorder %s53, %s67
      %p69 = scmp.eq.s32.totalorder %s22, 0
      %p70 = por %p68, %p69
      %s72 = sadd.s32 %s71, 1
      %p75 = scmp.eq.s32.totalorder %s16, 1
      %p76 = scmp.ne.s32.totalorder %s71, %s73
      %p77 = scmp.eq.s32.totalorder %s16, 0
      %p78 = por %p76, %p77
      %p79 = scmp.ne.s32.totalorder %s71, %s73
      %p80 = scmp.eq.s32.totalorder %s21, 1
      %p81 = por %p79, %p80
      %p82 = scmp.ne.s32.totalorder %s73, %s74
      %p83 = scmp.eq.s32.totalorder %s21, 0
      %p84 = por %p82, %p83
      %p85 = scmp.ne.s32.totalorder %s73, %s74
      %p86 = scmp.eq.s32.totalorder %s22, 1
      %p87 = por %p85, %p86
      %p89 = scmp.ne.s32.totalorder %s74, %s88
      %p90 = scmp.eq.s32.totalorder %s22, 0
      %p91 = por %p89, %p90
      %s93 = sadd.s32 %s92, 1
      %p96 = scmp.eq.s32.totalorder %s16, 1
      %p97 = scmp.ne.s32.totalorder %s92, %s94
      %p98 = scmp.eq.s32.totalorder %s16, 0
      %p99 = por %p97, %p98
      %p100 = scmp.ne.s32.totalorder %s92, %s94
      %p101 = scmp.eq.s32.totalorder %s21, 1
      %p102 = por %p100, %p101
      %p103 = scmp.ne.s32.totalorder %s94, %s95
      %p104 = scmp.eq.s32.totalorder %s21, 0
      %p105 = por %p103, %p104
      %p106 = scmp.ne.s32.totalorder %s94, %s95
      %p107 = scmp.eq.s32.totalorder %s22, 1
      %p108 = por %p106, %p107
      %p110 = scmp.ne.s32.totalorder %s95, %s109
      %p111 = scmp.eq.s32.totalorder %s22, 0
      %p112 = por %p110, %p111
      %s114 = sadd.s32 %s113, 1
      %p117 = scmp.eq.s32.totalorder %s16, 1
      %p118 = scmp.ne.s32.totalorder %s113, %s115
      %p119 = scmp.eq.s32.totalorder %s16, 0
      %p120 = por %p118, %p119
      %p121 = scmp.ne.s32.totalorder %s113, %s115
      %p122 = scmp.eq.s32.totalorder %s21, 1
      %p123 = por %p121, %p122
      %p124 = scmp.ne.s32.totalorder %s115, %s116
      %p125 = scmp.eq.s32.totalorder %s21, 0
      %p126 = por %p124, %p125
      %p127 = scmp.ne.s32.totalorder %s115, %s116
      %p128 = scmp.eq.s32.totalorder %s22, 1
      %p129 = por %p127, %p128
      %p131 = scmp.ne.s32.totalorder %s116, %s130
      %p132 = scmp.eq.s32.totalorder %s22, 0
      %p133 = por %p131, %p132
      %s135 = sadd.s32 %s134, 1
      %p138 = scmp.eq.s32.totalorder %s16, 1
      %p139 = scmp.ne.s32.totalorder %s134, %s136
      %p140 = scmp.eq.s32.totalorder %s16, 0
      %p141 = por %p139, %p140
      %p142 = scmp.ne.s32.totalorder %s134, %s136
      %p143 = scmp.eq.s32.totalorder %s21, 1
      %p144 = por %p142, %p143
      %p145 = scmp.ne.s32.totalorder %s136, %s137
      %p146 = scmp.eq.s32.totalorder %s21, 0
      %p147 = por %p145, %p146
      %p148 = scmp.ne.s32.totalorder %s136, %s137
      %p149 = scmp.eq.s32.totalorder %s22, 1
      %p150 = por %p148, %p149
      %p152 = scmp.ne.s32.totalorder %s137, %s151
      %p153 = scmp.eq.s32.totalorder %s22, 0
      %p154 = por %p152, %p153
      %s156 = sadd.s32 %s155, 1
      %p159 = scmp.eq.s32.totalorder %s16, 1
      %p160 = scmp.ne.s32.totalorder %s155, %s157
      %p161 = scmp.eq.s32.totalorder %s16, 0
      %p162 = por %p160, %p161
      %p163 = scmp.ne.s32.totalorder %s155, %s157
      %p164 = scmp.eq.s32.totalorder %s21, 1
      %p165 = por %p163, %p164
      %p166 = scmp.ne.s32.totalorder %s157, %s158
      %p167 = scmp.eq.s32.totalorder %s21, 0
      %p168 = por %p166, %p167
      %p169 = scmp.ne.s32.totalorder %s157, %s158
      %p170 = scmp.eq.s32.totalorder %s22, 1
      %p171 = por %p169, %p170
      %p173 = scmp.ne.s32.totalorder %s158, %s172
      %p174 = scmp.eq.s32.totalorder %s22, 0
      %p175 = por %p173, %p174
      %s176 = ssub.s32 %s16, %s23
      %p177 = scmp.eq.s32.totalorder %s176, 0
      %s179 = sadd.s32 %s178, 1
      %s180 = scalar_select %p177, %s178, %s179
      %p183 = pneg %p177
      %p184 = scmp.eq.s32.totalorder %s16, 1
      %p185 = por %p183, %p184
      %p186 = scmp.ne.s32.totalorder %s178, %s181
      %p187 = scmp.eq.s32.totalorder %s16, 0
      %p188 = por %p186, %p187
      %p189 = scmp.ne.s32.totalorder %s178, %s181
      %p190 = scmp.eq.s32.totalorder %s21, 1
      %p191 = por %p189, %p190
      %p192 = scmp.ne.s32.totalorder %s181, %s182
      %p193 = scmp.eq.s32.totalorder %s21, 0
      %p194 = por %p192, %p193
      %p195 = scmp.ne.s32.totalorder %s181, %s182
      %p196 = scmp.eq.s32.totalorder %s22, 1
      %p197 = por %p195, %p196
      %p199 = scmp.ne.s32.totalorder %s182, %s198
      %p200 = scmp.eq.s32.totalorder %s22, 0
      %p201 = por %p199, %p200
      %p202 = scmp.le.s32.totalorder 1, %s16
      %p203 = scmp.lt.s32.totalorder %s16, 3
      %p204 = pnand %p202, %p203
      %p205 = pneg %p204
      // Predicated region
      $region9: #{conv_encoder_forward.1} parent=5 // pred_check
        _
      $region10: #{conv_encoder_forward.1} parent=5 // pred_check_branch
        %207 = sbr.rel (%p204) target = $region12
      $region11: #{conv_encoder_forward.1} parent=5 // pred_region
        %s208 = ssub.s32 %s16, 1
        // Predicated region
        $region13: #{conv_encoder_forward.1} parent=11 // pred_check
          %p209 = pneg %p63
        $region14: #{conv_encoder_forward.1} parent=11 // pred_check_branch
          %211 = sbr.rel (%p209) target = $region16
        $region15: #{conv_encoder_forward.1} parent=11 // pred_region
          _
        $region16: #{conv_encoder_forward.1} parent=11 // pred_fallthru
          _
        // Predicated region
        $region17: #{conv_encoder_forward.1} parent=11 // pred_check
          %p212 = pneg %p84
        $region18: #{conv_encoder_forward.1} parent=11 // pred_check_branch
          %214 = sbr.rel (%p212) target = $region20
        $region19: #{conv_encoder_forward.1} parent=11 // pred_region
          _
        $region20: #{conv_encoder_forward.1} parent=11 // pred_fallthru
          _
        // Predicated region
        $region21: #{conv_encoder_forward.1} parent=11 // pred_check
          %p215 = pneg %p105
        $region22: #{conv_encoder_forward.1} parent=11 // pred_check_branch
          %217 = sbr.rel (%p215) target = $region24
        $region23: #{conv_encoder_forward.1} parent=11 // pred_region
          _
        $region24: #{conv_encoder_forward.1} parent=11 // pred_fallthru
          _
        // Predicated region
        $region25: #{conv_encoder_forward.1} parent=11 // pred_check
          %p218 = pneg %p126
        $region26: #{conv_encoder_forward.1} parent=11 // pred_check_branch
          %220 = sbr.rel (%p218) target = $region28
        $region27: #{conv_encoder_forward.1} parent=11 // pred_region
          _
        $region28: #{conv_encoder_forward.1} parent=11 // pred_fallthru
          _
        // Predicated region
        $region29: #{conv_encoder_forward.1} parent=11 // pred_check
          %p221 = pneg %p147
        $region30: #{conv_encoder_forward.1} parent=11 // pred_check_branch
          %223 = sbr.rel (%p221) target = $region32
        $region31: #{conv_encoder_forward.1} parent=11 // pred_region
          _
        $region32: #{conv_encoder_forward.1} parent=11 // pred_fallthru
          _
        // Predicated region
        $region33: #{conv_encoder_forward.1} parent=11 // pred_check
          %p224 = pneg %p168
        $region34: #{conv_encoder_forward.1} parent=11 // pred_check_branch
          %226 = sbr.rel (%p224) target = $region36
        $region35: #{conv_encoder_forward.1} parent=11 // pred_region
          _
        $region36: #{conv_encoder_forward.1} parent=11 // pred_fallthru
          _
      $region12: #{conv_encoder_forward.1} parent=5 // pred_fallthru
        _
      %p227 = scmp.lt.s32.totalorder %s16, 2
      // Predicated region
      $region37: #{conv_encoder_forward.1} parent=5 // pred_check
        %p228 = pneg %p227
      $region38: #{conv_encoder_forward.1} parent=5 // pred_check_branch
        %230 = sbr.rel (%p228) target = $region40
      $region39: #{conv_encoder_forward.1} parent=5 // pred_region
        // Predicated region
        $region41: #{conv_encoder_forward.1} parent=39 // pred_check
          %p231 = pneg %p36
        $region42: #{conv_encoder_forward.1} parent=39 // pred_check_branch
          %233 = sbr.rel (%p231) target = $region44
        $region43: #{conv_encoder_forward.1} parent=39 // pred_region
          %s234 = smul.u32 2, %s16
          %p235 = scmp.lt.s32.totalorder %s234, 3
          %s236 = scalar_select %p235, %s234, 3
          %s237 = smul.addr %s236, 8
          %s238 = scalar_lea.vmem %s0, %s237
          %s239 = smul.u32 2, %s16
        $region44: #{conv_encoder_forward.1} parent=39 // pred_fallthru
          _
      $region40: #{conv_encoder_forward.1} parent=5 // pred_fallthru
        _
      %p240 = scmp.le.s32.totalorder 1, %s16
      %p241 = scmp.lt.s32.totalorder %s16, 3
      %p242 = pnand %p240, %p241
      %p243 = pneg %p242
      // Predicated region
      $region45: #{conv_encoder_forward.1} parent=5 // pred_check
        _
      $region46: #{conv_encoder_forward.1} parent=5 // pred_check_branch
        %245 = sbr.rel (%p242) target = $region48
      $region47: #{conv_encoder_forward.1} parent=5 // pred_region
        %s246 = ssub.s32 %s16, 1
        %s247 = smul.u32 2, %s21
        %p248 = scmp.lt.s32.totalorder %s247, 3
        %s249 = scalar_select %p248, %s247, 3
        %s250 = smul.addr %s249, 8
        %s251 = scalar_lea.vmem %s0, %s250
        %p252 = pneg %p42
        %p253 = pneg %p39
        %p254 = pneg %p63
        %p255 = pneg %p60
        %p256 = pneg %p84
        %p257 = pneg %p81
        %p258 = pneg %p105
        %p259 = pneg %p102
        %p260 = pneg %p126
        %p261 = pneg %p123
        %p262 = pneg %p147
        %p263 = pneg %p144
        %p264 = pneg %p168
        %p265 = pneg %p165
        %p266 = pneg %p194
        %p267 = pneg %p191
        %s268 = sand.u32 %s181, 1
        %s269 = scalar_lea.sflag [#allocation3], %s268
        %s270 = sand.u32 %s181, 1
        %s271 = scalar_lea.vmem [#allocation2], %s270
        %s272 = smul.u32 2, %s21
        %p273 = scmp.lt.s32.totalorder %s272, 3
        %s274 = scalar_select %p273, %s272, 3
        %s275 = smul.addr %s274, 8
        %s276 = scalar_lea.vmem %s0, %s275
        %s277 = smul.u32 2, %s21
        %v278 = vld [vmem:[%s276] sm:$0xff]
        %v279 = vld [vmem:[%s276 + $0x8] sm:$0xff]
        %v280 = vld [vmem:[%s1] sm:$0xff]
        %v281 = vld [vmem:[%s1 + $0x8] sm:$0xff]
        %v282 = vld [vmem:[%s1 + $0x10] sm:$0xff]
        %v283 = vld [vmem:[%s1 + $0x18] sm:$0xff]
        %v284 = vld [vmem:[%s1 + $0x20] sm:$0xff]
        %v285 = vld [vmem:[%s1 + $0x28] sm:$0xff]
        %v286 = vld [vmem:[%s1 + $0x30] sm:$0xff]
        %v287 = vld [vmem:[%s1 + $0x38] sm:$0xff]
        %v288 = vld [vmem:[%s1 + $0x40] sm:$0xff]
        %v289 = vld [vmem:[%s1 + $0x48] sm:$0xff]
        %v290 = vld [vmem:[%s1 + $0x50] sm:$0xff]
        %v291 = vld [vmem:[%s1 + $0x58] sm:$0xff]
        %v292 = vld [vmem:[%s1 + $0x60] sm:$0xff]
        %v293 = vld [vmem:[%s1 + $0x68] sm:$0xff]
        %v294 = vld [vmem:[%s1 + $0x70] sm:$0xff]
        %v295 = vld [vmem:[%s1 + $0x78] sm:$0xff]
        %v296 = vld [vmem:[%s1 + $0x80] sm:$0xff]
        %v297 = vld [vmem:[%s1 + $0x88] sm:$0xff]
        %v298 = vld [vmem:[%s1 + $0x90] sm:$0xff]
        %v299 = vld [vmem:[%s1 + $0x98] sm:$0xff]
        %v300 = vld [vmem:[%s1 + $0xa0] sm:$0xff]
        %v301 = vld [vmem:[%s1 + $0xa8] sm:$0xff]
        %v302 = vld [vmem:[%s1 + $0xb0] sm:$0xff]
        %v303 = vld [vmem:[%s1 + $0xb8] sm:$0xff]
        %v304 = vld [vmem:[%s1 + $0xc0] sm:$0xff]
        %v305 = vld [vmem:[%s1 + $0xc8] sm:$0xff]
        %v306 = vld [vmem:[%s1 + $0xd0] sm:$0xff]
        %v307 = vld [vmem:[%s1 + $0xd8] sm:$0xff]
        %v308 = vld [vmem:[%s1 + $0xe0] sm:$0xff]
        %v309 = vld [vmem:[%s1 + $0xe8] sm:$0xff]
        %v310 = vld [vmem:[%s1 + $0xf0] sm:$0xff]
        %v311 = vld [vmem:[%s1 + $0xf8] sm:$0xff]
        %vm314 = vcmask 1046528
        %v315 = vrot.slane %v278, 1
        %v316 = vrot.slane %v279, 1
        %v317 = vsel %vm314, %v315, %v316
        %v320 = vsel %vm314, %v316, %v315
        %s321 = scalar_lea.vmem %s1, 256
        %v322 = vld [vmem:[%s321] sm:$0xff]
        %v323 = vld [vmem:[%s321 + $0x8] sm:$0xff]
        %v324 = vld [vmem:[%s321 + $0x10] sm:$0xff]
        %v325 = vld [vmem:[%s321 + $0x18] sm:$0xff]
        %v326 = vld [vmem:[%s321 + $0x20] sm:$0xff]
        %v327 = vld [vmem:[%s321 + $0x28] sm:$0xff]
        %v328 = vld [vmem:[%s321 + $0x30] sm:$0xff]
        %v329 = vld [vmem:[%s321 + $0x38] sm:$0xff]
        %v330 = vld [vmem:[%s321 + $0x40] sm:$0xff]
        %v331 = vld [vmem:[%s321 + $0x48] sm:$0xff]
        %v332 = vld [vmem:[%s321 + $0x50] sm:$0xff]
        %v333 = vld [vmem:[%s321 + $0x58] sm:$0xff]
        %v334 = vld [vmem:[%s321 + $0x60] sm:$0xff]
        %v335 = vld [vmem:[%s321 + $0x68] sm:$0xff]
        %v336 = vld [vmem:[%s321 + $0x70] sm:$0xff]
        %v337 = vld [vmem:[%s321 + $0x78] sm:$0xff]
        %v338 = vld [vmem:[%s321 + $0x80] sm:$0xff]
        %v339 = vld [vmem:[%s321 + $0x88] sm:$0xff]
        %v340 = vld [vmem:[%s321 + $0x90] sm:$0xff]
        %v341 = vld [vmem:[%s321 + $0x98] sm:$0xff]
        %v342 = vld [vmem:[%s321 + $0xa0] sm:$0xff]
        %v343 = vld [vmem:[%s321 + $0xa8] sm:$0xff]
        %v344 = vld [vmem:[%s321 + $0xb0] sm:$0xff]
        %v345 = vld [vmem:[%s321 + $0xb8] sm:$0xff]
        %v346 = vld [vmem:[%s321 + $0xc0] sm:$0xff]
        %v347 = vld [vmem:[%s321 + $0xc8] sm:$0xff]
        %v348 = vld [vmem:[%s321 + $0xd0] sm:$0xff]
        %v349 = vld [vmem:[%s321 + $0xd8] sm:$0xff]
        %v350 = vld [vmem:[%s321 + $0xe0] sm:$0xff]
        %v351 = vld [vmem:[%s321 + $0xe8] sm:$0xff]
        %v352 = vld [vmem:[%s321 + $0xf0] sm:$0xff]
        %v353 = vld [vmem:[%s321 + $0xf8] sm:$0xff]
        %vm354 = vcmask 523264
        %v355 = vsel %vm354, %v317, 0
        %v358 = vsel %vm354, %v320, 0
        %360 = vmatprep.subr.mxu0 %v323
        %361 = vmatpush1.msra.mxu0 %v322
        %362 = vmatprep.subr.mxu0 %v327
        %363 = vmatpush1.msra.mxu0 %v326
        %364 = vmatprep.subr.mxu0 %v331
        %365 = vmatpush1.msra.mxu0 %v330
        %366 = vmatprep.subr.mxu0 %v335
        %367 = vmatpush1.msra.mxu0 %v334
        %368 = vmatprep.subr.mxu0 %v339
        %369 = vmatpush1.msra.mxu0 %v338
        %370 = vmatprep.subr.mxu0 %v343
        %371 = vmatpush1.msra.mxu0 %v342
        %372 = vmatprep.subr.mxu0 %v347
        %373 = vmatpush1.msra.mxu0 %v346
        %374 = vmatprep.subr.mxu0 %v351
        %375 = vmatpush1.msra.mxu0 %v350
        %376 = vmatprep.subr.mxu0 0.0
        %377 = vmatpush1.msra.mxu0 0.0
        %378 = vmatprep.subr.mxu0 0.0
        %379 = vmatpush1.msra.mxu0 0.0
        %380 = vmatprep.subr.mxu0 0.0
        %381 = vmatpush1.msra.mxu0 0.0
        %382 = vmatprep.subr.mxu0 0.0
        %383 = vmatpush1.msra.mxu0 0.0
        %384 = vmatprep.subr.mxu0 0.0
        %385 = vmatpush1.msra.mxu0 0.0
        %386 = vmatprep.subr.mxu0 0.0
        %387 = vmatpush1.msra.mxu0 0.0
        %388 = vmatprep.subr.mxu0 0.0
        %389 = vmatpush1.msra.mxu0 0.0
        %390 = vmatprep.subr.mxu0 0.0
        %391 = vmatpush1.msra.mxu0 0.0
        %392 = vmatprep.subr.mxu0 0.0
        %393 = vmatpush1.msra.mxu0 0.0
        %394 = vmatprep.subr.mxu0 0.0
        %395 = vmatpush1.msra.mxu0 0.0
        %396 = vmatprep.subr.mxu0 0.0
        %397 = vmatpush1.msra.mxu0 0.0
        %398 = vmatprep.subr.mxu0 0.0
        %399 = vmatpush1.msra.mxu0 0.0
        %400 = vmatprep.subr.mxu0 0.0
        %401 = vmatpush1.msra.mxu0 0.0
        %402 = vmatprep.subr.mxu0 0.0
        %403 = vmatpush1.msra.mxu0 0.0
        %404 = vmatprep.subr.mxu0 0.0
        %405 = vmatpush1.msra.mxu0 0.0
        %406 = vmatprep.subr.mxu0 0.0
        %407 = vmatpush1.msra.mxu0 0.0
        %408 = vmatprep.subr.mxu0 0.0
        %409 = vmatpush1.msra.mxu0 0.0
        %410 = vmatprep.subr.mxu0 0.0
        %411 = vmatpush1.msra.mxu0 0.0
        %412 = vmatprep.subr.mxu0 0.0
        %413 = vmatpush1.msra.mxu0 0.0
        %414 = vmatprep.subr.mxu0 0.0
        %415 = vmatpush1.msra.mxu0 0.0
        %416 = vmatprep.subr.mxu0 0.0
        %417 = vmatpush1.msra.mxu0 0.0
        %418 = vmatprep.subr.mxu0 0.0
        %419 = vmatpush1.msra.mxu0 0.0
        %420 = vmatprep.subr.mxu0 0.0
        %421 = vmatpush1.msra.mxu0 0.0
        %422 = vmatprep.subr.mxu0 0.0
        %423 = vmatpush1.msra.mxu0 0.0
        %424 = vmatprep.mubr.f32.mxu0 0.0
        %425 = vmatmul.mubr.f32.gmra.mrb[0].mxu0 %v355
        %v426 = vpop.f32.mrb[0].mxu0
        %v427 = vadd.f32 0.0, %v426
        %v428 = vpop.f32.mrb[0].mxu0
        %v429 = vadd.f32 0.0, %v428
        %430 = vmatprep.mubr.f32.mxu0 0.0
        %431 = vmatmul.mubr.f32.gmra.mrb[0].mxu0 %v358
        %v432 = vpop.f32.mrb[0].mxu0
        %v433 = vadd.f32 0.0, %v432
        %v434 = vpop.f32.mrb[0].mxu0
        %v435 = vadd.f32 0.0, %v434
        %436 = vdwg.mxu0
        %437 = vmatprep.subr.mxu0 %v325
        %438 = vmatpush1.msra.mxu0 %v324
        %439 = vmatprep.subr.mxu0 %v329
        %440 = vmatpush1.msra.mxu0 %v328
        %441 = vmatprep.subr.mxu0 %v333
        %442 = vmatpush1.msra.mxu0 %v332
        %443 = vmatprep.subr.mxu0 %v337
        %444 = vmatpush1.msra.mxu0 %v336
        %445 = vmatprep.subr.mxu0 %v341
        %446 = vmatpush1.msra.mxu0 %v340
        %447 = vmatprep.subr.mxu0 %v345
        %448 = vmatpush1.msra.mxu0 %v344
        %449 = vmatprep.subr.mxu0 %v349
        %450 = vmatpush1.msra.mxu0 %v348
        %451 = vmatprep.subr.mxu0 %v353
        %452 = vmatpush1.msra.mxu0 %v352
        %453 = vmatprep.subr.mxu0 0.0
        %454 = vmatpush1.msra.mxu0 0.0
        %455 = vmatprep.subr.mxu0 0.0
        %456 = vmatpush1.msra.mxu0 0.0
        %457 = vmatprep.subr.mxu0 0.0
        %458 = vmatpush1.msra.mxu0 0.0
        %459 = vmatprep.subr.mxu0 0.0
        %460 = vmatpush1.msra.mxu0 0.0
        %461 = vmatprep.subr.mxu0 0.0
        %462 = vmatpush1.msra.mxu0 0.0
        %463 = vmatprep.subr.mxu0 0.0
        %464 = vmatpush1.msra.mxu0 0.0
        %465 = vmatprep.subr.mxu0 0.0
        %466 = vmatpush1.msra.mxu0 0.0
        %467 = vmatprep.subr.mxu0 0.0
        %468 = vmatpush1.msra.mxu0 0.0
        %469 = vmatprep.subr.mxu0 0.0
        %470 = vmatpush1.msra.mxu0 0.0
        %471 = vmatprep.subr.mxu0 0.0
        %472 = vmatpush1.msra.mxu0 0.0
        %473 = vmatprep.subr.mxu0 0.0
        %474 = vmatpush1.msra.mxu0 0.0
        %475 = vmatprep.subr.mxu0 0.0
        %476 = vmatpush1.msra.mxu0 0.0
        %477 = vmatprep.subr.mxu0 0.0
        %478 = vmatpush1.msra.mxu0 0.0
        %479 = vmatprep.subr.mxu0 0.0
        %480 = vmatpush1.msra.mxu0 0.0
        %481 = vmatprep.subr.mxu0 0.0
        %482 = vmatpush1.msra.mxu0 0.0
        %483 = vmatprep.subr.mxu0 0.0
        %484 = vmatpush1.msra.mxu0 0.0
        %485 = vmatprep.subr.mxu0 0.0
        %486 = vmatpush1.msra.mxu0 0.0
        %487 = vmatprep.subr.mxu0 0.0
        %488 = vmatpush1.msra.mxu0 0.0
        %489 = vmatprep.subr.mxu0 0.0
        %490 = vmatpush1.msra.mxu0 0.0
        %491 = vmatprep.subr.mxu0 0.0
        %492 = vmatpush1.msra.mxu0 0.0
        %493 = vmatprep.subr.mxu0 0.0
        %494 = vmatpush1.msra.mxu0 0.0
        %495 = vmatprep.subr.mxu0 0.0
        %496 = vmatpush1.msra.mxu0 0.0
        %497 = vmatprep.subr.mxu0 0.0
        %498 = vmatpush1.msra.mxu0 0.0
        %499 = vmatprep.subr.mxu0 0.0
        %500 = vmatpush1.msra.mxu0 0.0
        %501 = vmatprep.mubr.f32.mxu0 0.0
        %502 = vmatmul.mubr.f32.gmra.mrb[0].mxu0 %v355
        %v503 = vpop.f32.mrb[0].mxu0
        %v504 = vadd.f32 0.0, %v503
        %v505 = vpop.f32.mrb[0].mxu0
        %v506 = vadd.f32 0.0, %v505
        %507 = vmatprep.mubr.f32.mxu0 0.0
        %508 = vmatmul.mubr.f32.gmra.mrb[0].mxu0 %v358
        %v509 = vpop.f32.mrb[0].mxu0
        %v510 = vadd.f32 0.0, %v509
        %v511 = vpop.f32.mrb[0].mxu0
        %v512 = vadd.f32 0.0, %v511
        %513 = vdwg.mxu0
        %v514 = vsel %vm354, %v278, 0
        %v516 = vsel %vm354, %v279, 0
        %518 = vmatprep.subr.mxu0 %v281
        %519 = vmatpush1.msra.mxu0 %v280
        %520 = vmatprep.subr.mxu0 %v285
        %521 = vmatpush1.msra.mxu0 %v284
        %522 = vmatprep.subr.mxu0 %v289
        %523 = vmatpush1.msra.mxu0 %v288
        %524 = vmatprep.subr.mxu0 %v293
        %525 = vmatpush1.msra.mxu0 %v292
        %526 = vmatprep.subr.mxu0 %v297
        %527 = vmatpush1.msra.mxu0 %v296
        %528 = vmatprep.subr.mxu0 %v301
        %529 = vmatpush1.msra.mxu0 %v300
        %530 = vmatprep.subr.mxu0 %v305
        %531 = vmatpush1.msra.mxu0 %v304
        %532 = vmatprep.subr.mxu0 %v309
        %533 = vmatpush1.msra.mxu0 %v308
        %534 = vmatprep.subr.mxu0 0.0
        %535 = vmatpush1.msra.mxu0 0.0
        %536 = vmatprep.subr.mxu0 0.0
        %537 = vmatpush1.msra.mxu0 0.0
        %538 = vmatprep.subr.mxu0 0.0
        %539 = vmatpush1.msra.mxu0 0.0
        %540 = vmatprep.subr.mxu0 0.0
        %541 = vmatpush1.msra.mxu0 0.0
        %542 = vmatprep.subr.mxu0 0.0
        %543 = vmatpush1.msra.mxu0 0.0
        %544 = vmatprep.subr.mxu0 0.0
        %545 = vmatpush1.msra.mxu0 0.0
        %546 = vmatprep.subr.mxu0 0.0
        %547 = vmatpush1.msra.mxu0 0.0
        %548 = vmatprep.subr.mxu0 0.0
        %549 = vmatpush1.msra.mxu0 0.0
        %550 = vmatprep.subr.mxu0 0.0
        %551 = vmatpush1.msra.mxu0 0.0
        %552 = vmatprep.subr.mxu0 0.0
        %553 = vmatpush1.msra.mxu0 0.0
        %554 = vmatprep.subr.mxu0 0.0
        %555 = vmatpush1.msra.mxu0 0.0
        %556 = vmatprep.subr.mxu0 0.0
        %557 = vmatpush1.msra.mxu0 0.0
        %558 = vmatprep.subr.mxu0 0.0
        %559 = vmatpush1.msra.mxu0 0.0
        %560 = vmatprep.subr.mxu0 0.0
        %561 = vmatpush1.msra.mxu0 0.0
        %562 = vmatprep.subr.mxu0 0.0
        %563 = vmatpush1.msra.mxu0 0.0
        %564 = vmatprep.subr.mxu0 0.0
        %565 = vmatpush1.msra.mxu0 0.0
        %566 = vmatprep.subr.mxu0 0.0
        %567 = vmatpush1.msra.mxu0 0.0
        %568 = vmatprep.subr.mxu0 0.0
        %569 = vmatpush1.msra.mxu0 0.0
        %570 = vmatprep.subr.mxu0 0.0
        %571 = vmatpush1.msra.mxu0 0.0
        %572 = vmatprep.subr.mxu0 0.0
        %573 = vmatpush1.msra.mxu0 0.0
        %574 = vmatprep.subr.mxu0 0.0
        %575 = vmatpush1.msra.mxu0 0.0
        %576 = vmatprep.subr.mxu0 0.0
        %577 = vmatpush1.msra.mxu0 0.0
        %578 = vmatprep.subr.mxu0 0.0
        %579 = vmatpush1.msra.mxu0 0.0
        %580 = vmatprep.subr.mxu0 0.0
        %581 = vmatpush1.msra.mxu0 0.0
        %582 = vmatprep.mubr.f32.mxu0 0.0
        %583 = vmatmul.mubr.f32.gmra.mrb[0].mxu0 %v514
        %v584 = vpop.f32.mrb[0].mxu0
        %v585 = vadd.f32 %v427, %v584
        %v586 = vpop.f32.mrb[0].mxu0
        %v587 = vadd.f32 %v429, %v586
        %588 = vmatprep.mubr.f32.mxu0 0.0
        %589 = vmatmul.mubr.f32.gmra.mrb[0].mxu0 %v516
        %v590 = vpop.f32.mrb[0].mxu0
        %v591 = vadd.f32 %v433, %v590
        %v592 = vpop.f32.mrb[0].mxu0
        %v593 = vadd.f32 %v435, %v592
        %594 = vdwg.mxu0
        %595 = vmatprep.subr.mxu0 %v283
        %596 = vmatpush1.msra.mxu0 %v282
        %597 = vmatprep.subr.mxu0 %v287
        %598 = vmatpush1.msra.mxu0 %v286
        %599 = vmatprep.subr.mxu0 %v291
        %600 = vmatpush1.msra.mxu0 %v290
        %601 = vmatprep.subr.mxu0 %v295
        %602 = vmatpush1.msra.mxu0 %v294
        %603 = vmatprep.subr.mxu0 %v299
        %604 = vmatpush1.msra.mxu0 %v298
        %605 = vmatprep.subr.mxu0 %v303
        %606 = vmatpush1.msra.mxu0 %v302
        %607 = vmatprep.subr.mxu0 %v307
        %608 = vmatpush1.msra.mxu0 %v306
        %609 = vmatprep.subr.mxu0 %v311
        %610 = vmatpush1.msra.mxu0 %v310
        %611 = vmatprep.subr.mxu0 0.0
        %612 = vmatpush1.msra.mxu0 0.0
        %613 = vmatprep.subr.mxu0 0.0
        %614 = vmatpush1.msra.mxu0 0.0
        %615 = vmatprep.subr.mxu0 0.0
        %616 = vmatpush1.msra.mxu0 0.0
        %617 = vmatprep.subr.mxu0 0.0
        %618 = vmatpush1.msra.mxu0 0.0
        %619 = vmatprep.subr.mxu0 0.0
        %620 = vmatpush1.msra.mxu0 0.0
        %621 = vmatprep.subr.mxu0 0.0
        %622 = vmatpush1.msra.mxu0 0.0
        %623 = vmatprep.subr.mxu0 0.0
        %624 = vmatpush1.msra.mxu0 0.0
        %625 = vmatprep.subr.mxu0 0.0
        %626 = vmatpush1.msra.mxu0 0.0
        %627 = vmatprep.subr.mxu0 0.0
        %628 = vmatpush1.msra.mxu0 0.0
        %629 = vmatprep.subr.mxu0 0.0
        %630 = vmatpush1.msra.mxu0 0.0
        %631 = vmatprep.subr.mxu0 0.0
        %632 = vmatpush1.msra.mxu0 0.0
        %633 = vmatprep.subr.mxu0 0.0
        %634 = vmatpush1.msra.mxu0 0.0
        %635 = vmatprep.subr.mxu0 0.0
        %636 = vmatpush1.msra.mxu0 0.0
        %637 = vmatprep.subr.mxu0 0.0
        %638 = vmatpush1.msra.mxu0 0.0
        %639 = vmatprep.subr.mxu0 0.0
        %640 = vmatpush1.msra.mxu0 0.0
        %641 = vmatprep.subr.mxu0 0.0
        %642 = vmatpush1.msra.mxu0 0.0
        %643 = vmatprep.subr.mxu0 0.0
        %644 = vmatpush1.msra.mxu0 0.0
        %645 = vmatprep.subr.mxu0 0.0
        %646 = vmatpush1.msra.mxu0 0.0
        %647 = vmatprep.subr.mxu0 0.0
        %648 = vmatpush1.msra.mxu0 0.0
        %649 = vmatprep.subr.mxu0 0.0
        %650 = vmatpush1.msra.mxu0 0.0
        %651 = vmatprep.subr.mxu0 0.0
        %652 = vmatpush1.msra.mxu0 0.0
        %653 = vmatprep.subr.mxu0 0.0
        %654 = vmatpush1.msra.mxu0 0.0
        %655 = vmatprep.subr.mxu0 0.0
        %656 = vmatpush1.msra.mxu0 0.0
        %657 = vmatprep.subr.mxu0 0.0
        %658 = vmatpush1.msra.mxu0 0.0
        %659 = vmatprep.mubr.f32.mxu0 0.0
        %660 = vmatmul.mubr.f32.gmra.mrb[0].mxu0 %v514
        %v661 = vpop.f32.mrb[0].mxu0
        %v662 = vadd.f32 %v504, %v661
        %v663 = vpop.f32.mrb[0].mxu0
        %v664 = vadd.f32 %v506, %v663
        %665 = vmatprep.mubr.f32.mxu0 0.0
        %666 = vmatmul.mubr.f32.gmra.mrb[0].mxu0 %v516
        %v667 = vpop.f32.mrb[0].mxu0
        %v668 = vadd.f32 %v510, %v667
        %v669 = vpop.f32.mrb[0].mxu0
        %v670 = vadd.f32 %v512, %v669
        %671 = vdwg.mxu0
        %vm672 = vcmask 1045504
        %v673 = vrot.slane %v278, 2
        %v674 = vrot.slane %v279, 2
        %v675 = vsel %vm672, %v673, %v674
        %v678 = vsel %vm672, %v674, %v673
        %s679 = scalar_lea.vmem %s1, 512
        %v680 = vld [vmem:[%s679] sm:$0xff]
        %v681 = vld [vmem:[%s679 + $0x8] sm:$0xff]
        %v682 = vld [vmem:[%s679 + $0x10] sm:$0xff]
        %v683 = vld [vmem:[%s679 + $0x18] sm:$0xff]
        %v684 = vld [vmem:[%s679 + $0x20] sm:$0xff]
        %v685 = vld [vmem:[%s679 + $0x28] sm:$0xff]
        %v686 = vld [vmem:[%s679 + $0x30] sm:$0xff]
        %v687 = vld [vmem:[%s679 + $0x38] sm:$0xff]
        %v688 = vld [vmem:[%s679 + $0x40] sm:$0xff]
        %v689 = vld [vmem:[%s679 + $0x48] sm:$0xff]
        %v690 = vld [vmem:[%s679 + $0x50] sm:$0xff]
        %v691 = vld [vmem:[%s679 + $0x58] sm:$0xff]
        %v692 = vld [vmem:[%s679 + $0x60] sm:$0xff]
        %v693 = vld [vmem:[%s679 + $0x68] sm:$0xff]
        %v694 = vld [vmem:[%s679 + $0x70] sm:$0xff]
        %v695 = vld [vmem:[%s679 + $0x78] sm:$0xff]
        %v696 = vld [vmem:[%s679 + $0x80] sm:$0xff]
        %v697 = vld [vmem:[%s679 + $0x88] sm:$0xff]
        %v698 = vld [vmem:[%s679 + $0x90] sm:$0xff]
        %v699 = vld [vmem:[%s679 + $0x98] sm:$0xff]
        %v700 = vld [vmem:[%s679 + $0xa0] sm:$0xff]
        %v701 = vld [vmem:[%s679 + $0xa8] sm:$0xff]
        %v702 = vld [vmem:[%s679 + $0xb0] sm:$0xff]
        %v703 = vld [vmem:[%s679 + $0xb8] sm:$0xff]
        %v704 = vld [vmem:[%s679 + $0xc0] sm:$0xff]
        %v705 = vld [vmem:[%s679 + $0xc8] sm:$0xff]
        %v706 = vld [vmem:[%s679 + $0xd0] sm:$0xff]
        %v707 = vld [vmem:[%s679 + $0xd8] sm:$0xff]
        %v708 = vld [vmem:[%s679 + $0xe0] sm:$0xff]
        %v709 = vld [vmem:[%s679 + $0xe8] sm:$0xff]
        %v710 = vld [vmem:[%s679 + $0xf0] sm:$0xff]
        %v711 = vld [vmem:[%s679 + $0xf8] sm:$0xff]
        %v712 = vsel %vm354, %v675, 0
        %v715 = vsel %vm354, %v678, 0
        %717 = vmatprep.subr.mxu0 %v681
        %718 = vmatpush1.msra.mxu0 %v680
        %719 = vmatprep.subr.mxu0 %v685
        %720 = vmatpush1.msra.mxu0 %v684
        %721 = vmatprep.subr.mxu0 %v689
        %722 = vmatpush1.msra.mxu0 %v688
        %723 = vmatprep.subr.mxu0 %v693
        %724 = vmatpush1.msra.mxu0 %v692
        %725 = vmatprep.subr.mxu0 %v697
        %726 = vmatpush1.msra.mxu0 %v696
        %727 = vmatprep.subr.mxu0 %v701
        %728 = vmatpush1.msra.mxu0 %v700
        %729 = vmatprep.subr.mxu0 %v705
        %730 = vmatpush1.msra.mxu0 %v704
        %731 = vmatprep.subr.mxu0 %v709
        %732 = vmatpush1.msra.mxu0 %v708
        %733 = vmatprep.subr.mxu0 0.0
        %734 = vmatpush1.msra.mxu0 0.0
        %735 = vmatprep.subr.mxu0 0.0
        %736 = vmatpush1.msra.mxu0 0.0
        %737 = vmatprep.subr.mxu0 0.0
        %738 = vmatpush1.msra.mxu0 0.0
        %739 = vmatprep.subr.mxu0 0.0
        %740 = vmatpush1.msra.mxu0 0.0
        %741 = vmatprep.subr.mxu0 0.0
        %742 = vmatpush1.msra.mxu0 0.0
        %743 = vmatprep.subr.mxu0 0.0
        %744 = vmatpush1.msra.mxu0 0.0
        %745 = vmatprep.subr.mxu0 0.0
        %746 = vmatpush1.msra.mxu0 0.0
        %747 = vmatprep.subr.mxu0 0.0
        %748 = vmatpush1.msra.mxu0 0.0
        %749 = vmatprep.subr.mxu0 0.0
        %750 = vmatpush1.msra.mxu0 0.0
        %751 = vmatprep.subr.mxu0 0.0
        %752 = vmatpush1.msra.mxu0 0.0
        %753 = vmatprep.subr.mxu0 0.0
        %754 = vmatpush1.msra.mxu0 0.0
        %755 = vmatprep.subr.mxu0 0.0
        %756 = vmatpush1.msra.mxu0 0.0
        %757 = vmatprep.subr.mxu0 0.0
        %758 = vmatpush1.msra.mxu0 0.0
        %759 = vmatprep.subr.mxu0 0.0
        %760 = vmatpush1.msra.mxu0 0.0
        %761 = vmatprep.subr.mxu0 0.0
        %762 = vmatpush1.msra.mxu0 0.0
        %763 = vmatprep.subr.mxu0 0.0
        %764 = vmatpush1.msra.mxu0 0.0
        %765 = vmatprep.subr.mxu0 0.0
        %766 = vmatpush1.msra.mxu0 0.0
        %767 = vmatprep.subr.mxu0 0.0
        %768 = vmatpush1.msra.mxu0 0.0
        %769 = vmatprep.subr.mxu0 0.0
        %770 = vmatpush1.msra.mxu0 0.0
        %771 = vmatprep.subr.mxu0 0.0
        %772 = vmatpush1.msra.mxu0 0.0
        %773 = vmatprep.subr.mxu0 0.0
        %774 = vmatpush1.msra.mxu0 0.0
        %775 = vmatprep.subr.mxu0 0.0
        %776 = vmatpush1.msra.mxu0 0.0
        %777 = vmatprep.subr.mxu0 0.0
        %778 = vmatpush1.msra.mxu0 0.0
        %779 = vmatprep.subr.mxu0 0.0
        %780 = vmatpush1.msra.mxu0 0.0
        %781 = vmatprep.mubr.f32.mxu0 0.0
        %782 = vmatmul.mubr.f32.gmra.mrb[0].mxu0 %v712
        %v783 = vpop.f32.mrb[0].mxu0
        %v784 = vadd.f32 0.0, %v783
        %v785 = vpop.f32.mrb[0].mxu0
        %v786 = vadd.f32 0.0, %v785
        %787 = vmatprep.mubr.f32.mxu0 0.0
        %788 = vmatmul.mubr.f32.gmra.mrb[0].mxu0 %v715
        %v789 = vpop.f32.mrb[0].mxu0
        %v790 = vadd.f32 0.0, %v789
        %v791 = vpop.f32.mrb[0].mxu0
        %v792 = vadd.f32 0.0, %v791
        %793 = vdwg.mxu0
        %794 = vmatprep.subr.mxu0 %v683
        %795 = vmatpush1.msra.mxu0 %v682
        %796 = vmatprep.subr.mxu0 %v687
        %797 = vmatpush1.msra.mxu0 %v686
        %798 = vmatprep.subr.mxu0 %v691
        %799 = vmatpush1.msra.mxu0 %v690
        %800 = vmatprep.subr.mxu0 %v695
        %801 = vmatpush1.msra.mxu0 %v694
        %802 = vmatprep.subr.mxu0 %v699
        %803 = vmatpush1.msra.mxu0 %v698
        %804 = vmatprep.subr.mxu0 %v703
        %805 = vmatpush1.msra.mxu0 %v702
        %806 = vmatprep.subr.mxu0 %v707
        %807 = vmatpush1.msra.mxu0 %v706
        %808 = vmatprep.subr.mxu0 %v711
        %809 = vmatpush1.msra.mxu0 %v710
        %810 = vmatprep.subr.mxu0 0.0
        %811 = vmatpush1.msra.mxu0 0.0
        %812 = vmatprep.subr.mxu0 0.0
        %813 = vmatpush1.msra.mxu0 0.0
        %814 = vmatprep.subr.mxu0 0.0
        %815 = vmatpush1.msra.mxu0 0.0
        %816 = vmatprep.subr.mxu0 0.0
        %817 = vmatpush1.msra.mxu0 0.0
        %818 = vmatprep.subr.mxu0 0.0
        %819 = vmatpush1.msra.mxu0 0.0
        %820 = vmatprep.subr.mxu0 0.0
        %821 = vmatpush1.msra.mxu0 0.0
        %822 = vmatprep.subr.mxu0 0.0
        %823 = vmatpush1.msra.mxu0 0.0
        %824 = vmatprep.subr.mxu0 0.0
        %825 = vmatpush1.msra.mxu0 0.0
        %826 = vmatprep.subr.mxu0 0.0
        %827 = vmatpush1.msra.mxu0 0.0
        %828 = vmatprep.subr.mxu0 0.0
        %829 = vmatpush1.msra.mxu0 0.0
        %830 = vmatprep.subr.mxu0 0.0
        %831 = vmatpush1.msra.mxu0 0.0
        %832 = vmatprep.subr.mxu0 0.0
        %833 = vmatpush1.msra.mxu0 0.0
        %834 = vmatprep.subr.mxu0 0.0
        %835 = vmatpush1.msra.mxu0 0.0
        %836 = vmatprep.subr.mxu0 0.0
        %837 = vmatpush1.msra.mxu0 0.0
        %838 = vmatprep.subr.mxu0 0.0
        %839 = vmatpush1.msra.mxu0 0.0
        %840 = vmatprep.subr.mxu0 0.0
        %841 = vmatpush1.msra.mxu0 0.0
        %842 = vmatprep.subr.mxu0 0.0
        %843 = vmatpush1.msra.mxu0 0.0
        %844 = vmatprep.subr.mxu0 0.0
        %845 = vmatpush1.msra.mxu0 0.0
        %846 = vmatprep.subr.mxu0 0.0
        %847 = vmatpush1.msra.mxu0 0.0
        %848 = vmatprep.subr.mxu0 0.0
        %849 = vmatpush1.msra.mxu0 0.0
        %850 = vmatprep.subr.mxu0 0.0
        %851 = vmatpush1.msra.mxu0 0.0
        %852 = vmatprep.subr.mxu0 0.0
        %853 = vmatpush1.msra.mxu0 0.0
        %854 = vmatprep.subr.mxu0 0.0
        %855 = vmatpush1.msra.mxu0 0.0
        %856 = vmatprep.subr.mxu0 0.0
        %857 = vmatpush1.msra.mxu0 0.0
        %858 = vmatprep.mubr.f32.mxu0 0.0
        %859 = vmatmul.mubr.f32.gmra.mrb[0].mxu0 %v712
        %v860 = vpop.f32.mrb[0].mxu0
        %v861 = vadd.f32 0.0, %v860
        %v862 = vpop.f32.mrb[0].mxu0
        %v863 = vadd.f32 0.0, %v862
        %864 = vmatprep.mubr.f32.mxu0 0.0
        %865 = vmatmul.mubr.f32.gmra.mrb[0].mxu0 %v715
        %v866 = vpop.f32.mrb[0].mxu0
        %v867 = vadd.f32 0.0, %v866
        %v868 = vpop.f32.mrb[0].mxu0
        %v869 = vadd.f32 0.0, %v868
        %870 = vdwg.mxu0
        %v871 = vadd.f32 %v585, %v784
        %v872 = vadd.f32 %v587, %v786
        %v873 = vadd.f32 %v662, %v861
        %v874 = vadd.f32 %v664, %v863
        %v875 = vadd.f32 %v591, %v790
        %v876 = vadd.f32 %v593, %v792
        %v877 = vadd.f32 %v668, %v867
        %v878 = vadd.f32 %v670, %v869
        %v879 = vld [vmem:[%s2] sm:$0xf]
        %v881 = vlaneseq
        %v882 = vshrl.u32 %v881, 7
        %v883 = vsub.s32 0, %v882
        %v884 = vrot.slane %v879, %v883
        %v885 = vlaneseq
        %v886 = vshrl.u32 %v885, 7
        %v887 = vsub.s32 1, %v886
        %v888 = vrot.slane %v879, %v887
        %v889 = vlaneseq
        %v890 = vshrl.u32 %v889, 7
        %v891 = vsub.s32 2, %v890
        %v892 = vrot.slane %v879, %v891
        %v893 = vlaneseq
        %v894 = vshrl.u32 %v893, 7
        %v895 = vsub.s32 3, %v894
        %v896 = vrot.slane %v879, %v895
        %v901 = vadd.f32 %v871, %v884
        %v902 = vadd.f32 %v872, %v888
        %v903 = vadd.f32 %v873, %v892
        %v904 = vadd.f32 %v874, %v896
        %v905 = vadd.f32 %v875, %v884
        %v906 = vadd.f32 %v876, %v888
        %v907 = vadd.f32 %v877, %v892
        %v908 = vadd.f32 %v878, %v896
        %v909 = vmax.f32 %v901, 0.0
        %v910 = vmax.f32 %v902, 0.0
        %v911 = vmax.f32 %v903, 0.0
        %v912 = vmax.f32 %v904, 0.0
        %v913 = vmax.f32 %v905, 0.0
        %v914 = vmax.f32 %v906, 0.0
        %v915 = vmax.f32 %v907, 0.0
        %v916 = vmax.f32 %v908, 0.0
        %v917 = vld [vmem:[%s3] sm:$0xff]
        %v918 = vld [vmem:[%s3 + $0x8] sm:$0xff]
        %v919 = vld [vmem:[%s3 + $0x10] sm:$0xff]
        %v920 = vld [vmem:[%s3 + $0x18] sm:$0xff]
        %v921 = vld [vmem:[%s3 + $0x20] sm:$0xff]
        %v922 = vld [vmem:[%s3 + $0x28] sm:$0xff]
        %v923 = vld [vmem:[%s3 + $0x30] sm:$0xff]
        %v924 = vld [vmem:[%s3 + $0x38] sm:$0xff]
        %v925 = vld [vmem:[%s3 + $0x40] sm:$0xff]
        %v926 = vld [vmem:[%s3 + $0x48] sm:$0xff]
        %v927 = vld [vmem:[%s3 + $0x50] sm:$0xff]
        %v928 = vld [vmem:[%s3 + $0x58] sm:$0xff]
        %v929 = vld [vmem:[%s3 + $0x60] sm:$0xff]
        %v930 = vld [vmem:[%s3 + $0x68] sm:$0xff]
        %v931 = vld [vmem:[%s3 + $0x70] sm:$0xff]
        %v932 = vld [vmem:[%s3 + $0x78] sm:$0xff]
        %v933 = vld [vmem:[%s3 + $0x80] sm:$0xff]
        %v934 = vld [vmem:[%s3 + $0x88] sm:$0xff]
        %v935 = vld [vmem:[%s3 + $0x90] sm:$0xff]
        %v936 = vld [vmem:[%s3 + $0x98] sm:$0xff]
        %v937 = vld [vmem:[%s3 + $0xa0] sm:$0xff]
        %v938 = vld [vmem:[%s3 + $0xa8] sm:$0xff]
        %v939 = vld [vmem:[%s3 + $0xb0] sm:$0xff]
        %v940 = vld [vmem:[%s3 + $0xb8] sm:$0xff]
        %v941 = vld [vmem:[%s3 + $0xc0] sm:$0xff]
        %v942 = vld [vmem:[%s3 + $0xc8] sm:$0xff]
        %v943 = vld [vmem:[%s3 + $0xd0] sm:$0xff]
        %v944 = vld [vmem:[%s3 + $0xd8] sm:$0xff]
        %v945 = vld [vmem:[%s3 + $0xe0] sm:$0xff]
        %v946 = vld [vmem:[%s3 + $0xe8] sm:$0xff]
        %v947 = vld [vmem:[%s3 + $0xf0] sm:$0xff]
        %v948 = vld [vmem:[%s3 + $0xf8] sm:$0xff]
        %v949 = vld [vmem:[%s3 + $0x100] sm:$0xff]
        %v950 = vld [vmem:[%s3 + $0x108] sm:$0xff]
        %v951 = vld [vmem:[%s3 + $0x110] sm:$0xff]
        %v952 = vld [vmem:[%s3 + $0x118] sm:$0xff]
        %v953 = vld [vmem:[%s3 + $0x120] sm:$0xff]
        %v954 = vld [vmem:[%s3 + $0x128] sm:$0xff]
        %v955 = vld [vmem:[%s3 + $0x130] sm:$0xff]
        %v956 = vld [vmem:[%s3 + $0x138] sm:$0xff]
        %v957 = vld [vmem:[%s3 + $0x140] sm:$0xff]
        %v958 = vld [vmem:[%s3 + $0x148] sm:$0xff]
        %v959 = vld [vmem:[%s3 + $0x150] sm:$0xff]
        %v960 = vld [vmem:[%s3 + $0x158] sm:$0xff]
        %v961 = vld [vmem:[%s3 + $0x160] sm:$0xff]
        %v962 = vld [vmem:[%s3 + $0x168] sm:$0xff]
        %v963 = vld [vmem:[%s3 + $0x170] sm:$0xff]
        %v964 = vld [vmem:[%s3 + $0x178] sm:$0xff]
        %v965 = vld [vmem:[%s3 + $0x180] sm:$0xff]
        %v966 = vld [vmem:[%s3 + $0x188] sm:$0xff]
        %v967 = vld [vmem:[%s3 + $0x190] sm:$0xff]
        %v968 = vld [vmem:[%s3 + $0x198] sm:$0xff]
        %v969 = vld [vmem:[%s3 + $0x1a0] sm:$0xff]
        %v970 = vld [vmem:[%s3 + $0x1a8] sm:$0xff]
        %v971 = vld [vmem:[%s3 + $0x1b0] sm:$0xff]
        %v972 = vld [vmem:[%s3 + $0x1b8] sm:$0xff]
        %v973 = vld [vmem:[%s3 + $0x1c0] sm:$0xff]
        %v974 = vld [vmem:[%s3 + $0x1c8] sm:$0xff]
        %v975 = vld [vmem:[%s3 + $0x1d0] sm:$0xff]
        %v976 = vld [vmem:[%s3 + $0x1d8] sm:$0xff]
        %v977 = vld [vmem:[%s3 + $0x1e0] sm:$0xff]
        %v978 = vld [vmem:[%s3 + $0x1e8] sm:$0xff]
        %v979 = vld [vmem:[%s3 + $0x1f0] sm:$0xff]
        %v980 = vld [vmem:[%s3 + $0x1f8] sm:$0xff]
        %v981 = vld [vmem:[%s3 + $0x200] sm:$0xff]
        %v982 = vld [vmem:[%s3 + $0x208] sm:$0xff]
        %v983 = vld [vmem:[%s3 + $0x210] sm:$0xff]
        %v984 = vld [vmem:[%s3 + $0x218] sm:$0xff]
        %v985 = vld [vmem:[%s3 + $0x220] sm:$0xff]
        %v986 = vld [vmem:[%s3 + $0x228] sm:$0xff]
        %v987 = vld [vmem:[%s3 + $0x230] sm:$0xff]
        %v988 = vld [vmem:[%s3 + $0x238] sm:$0xff]
        %v989 = vld [vmem:[%s3 + $0x240] sm:$0xff]
        %v990 = vld [vmem:[%s3 + $0x248] sm:$0xff]
        %v991 = vld [vmem:[%s3 + $0x250] sm:$0xff]
        %v992 = vld [vmem:[%s3 + $0x258] sm:$0xff]
        %v993 = vld [vmem:[%s3 + $0x260] sm:$0xff]
        %v994 = vld [vmem:[%s3 + $0x268] sm:$0xff]
        %v995 = vld [vmem:[%s3 + $0x270] sm:$0xff]
        %v996 = vld [vmem:[%s3 + $0x278] sm:$0xff]
        %v997 = vld [vmem:[%s3 + $0x280] sm:$0xff]
        %v998 = vld [vmem:[%s3 + $0x288] sm:$0xff]
        %v999 = vld [vmem:[%s3 + $0x290] sm:$0xff]
        %v1000 = vld [vmem:[%s3 + $0x298] sm:$0xff]
        %v1001 = vld [vmem:[%s3 + $0x2a0] sm:$0xff]
        %v1002 = vld [vmem:[%s3 + $0x2a8] sm:$0xff]
        %v1003 = vld [vmem:[%s3 + $0x2b0] sm:$0xff]
        %v1004 = vld [vmem:[%s3 + $0x2b8] sm:$0xff]
        %v1005 = vld [vmem:[%s3 + $0x2c0] sm:$0xff]
        %v1006 = vld [vmem:[%s3 + $0x2c8] sm:$0xff]
        %v1007 = vld [vmem:[%s3 + $0x2d0] sm:$0xff]
        %v1008 = vld [vmem:[%s3 + $0x2d8] sm:$0xff]
        %v1009 = vld [vmem:[%s3 + $0x2e0] sm:$0xff]
        %v1010 = vld [vmem:[%s3 + $0x2e8] sm:$0xff]
        %v1011 = vld [vmem:[%s3 + $0x2f0] sm:$0xff]
        %v1012 = vld [vmem:[%s3 + $0x2f8] sm:$0xff]
        %v1013 = vld [vmem:[%s3 + $0x300] sm:$0xff]
        %v1014 = vld [vmem:[%s3 + $0x308] sm:$0xff]
        %v1015 = vld [vmem:[%s3 + $0x310] sm:$0xff]
        %v1016 = vld [vmem:[%s3 + $0x318] sm:$0xff]
        %v1017 = vld [vmem:[%s3 + $0x320] sm:$0xff]
        %v1018 = vld [vmem:[%s3 + $0x328] sm:$0xff]
        %v1019 = vld [vmem:[%s3 + $0x330] sm:$0xff]
        %v1020 = vld [vmem:[%s3 + $0x338] sm:$0xff]
        %v1021 = vld [vmem:[%s3 + $0x340] sm:$0xff]
        %v1022 = vld [vmem:[%s3 + $0x348] sm:$0xff]
        %v1023 = vld [vmem:[%s3 + $0x350] sm:$0xff]
        %v1024 = vld [vmem:[%s3 + $0x358] sm:$0xff]
        %v1025 = vld [vmem:[%s3 + $0x360] sm:$0xff]
        %v1026 = vld [vmem:[%s3 + $0x368] sm:$0xff]
        %v1027 = vld [vmem:[%s3 + $0x370] sm:$0xff]
        %v1028 = vld [vmem:[%s3 + $0x378] sm:$0xff]
        %v1029 = vld [vmem:[%s3 + $0x380] sm:$0xff]
        %v1030 = vld [vmem:[%s3 + $0x388] sm:$0xff]
        %v1031 = vld [vmem:[%s3 + $0x390] sm:$0xff]
        %v1032 = vld [vmem:[%s3 + $0x398] sm:$0xff]
        %v1033 = vld [vmem:[%s3 + $0x3a0] sm:$0xff]
        %v1034 = vld [vmem:[%s3 + $0x3a8] sm:$0xff]
        %v1035 = vld [vmem:[%s3 + $0x3b0] sm:$0xff]
        %v1036 = vld [vmem:[%s3 + $0x3b8] sm:$0xff]
        %v1037 = vld [vmem:[%s3 + $0x3c0] sm:$0xff]
        %v1038 = vld [vmem:[%s3 + $0x3c8] sm:$0xff]
        %v1039 = vld [vmem:[%s3 + $0x3d0] sm:$0xff]
        %v1040 = vld [vmem:[%s3 + $0x3d8] sm:$0xff]
        %v1041 = vld [vmem:[%s3 + $0x3e0] sm:$0xff]
        %v1042 = vld [vmem:[%s3 + $0x3e8] sm:$0xff]
        %v1043 = vld [vmem:[%s3 + $0x3f0] sm:$0xff]
        %v1044 = vld [vmem:[%s3 + $0x3f8] sm:$0xff]
        %v1053 = vrot.slane %v909, 1
        %v1054 = vrot.slane %v913, 1
        %v1055 = vsel %vm314, %v1053, %v1054
        %v1056 = vrot.slane %v910, 1
        %v1057 = vrot.slane %v914, 1
        %v1058 = vsel %vm314, %v1056, %v1057
        %v1059 = vrot.slane %v911, 1
        %v1060 = vrot.slane %v915, 1
        %v1061 = vsel %vm314, %v1059, %v1060
        %v1062 = vrot.slane %v912, 1
        %v1063 = vrot.slane %v916, 1
        %v1064 = vsel %vm314, %v1062, %v1063
        %v1077 = vsel %vm314, %v1054, %v1053
        %v1078 = vsel %vm314, %v1057, %v1056
        %v1079 = vsel %vm314, %v1060, %v1059
        %v1080 = vsel %vm314, %v1063, %v1062
        %s1081 = scalar_lea.vmem %s3, 1024
        %v1082 = vld [vmem:[%s1081] sm:$0xff]
        %v1083 = vld [vmem:[%s1081 + $0x8] sm:$0xff]
        %v1084 = vld [vmem:[%s1081 + $0x10] sm:$0xff]
        %v1085 = vld [vmem:[%s1081 + $0x18] sm:$0xff]
        %v1086 = vld [vmem:[%s1081 + $0x20] sm:$0xff]
        %v1087 = vld [vmem:[%s1081 + $0x28] sm:$0xff]
        %v1088 = vld [vmem:[%s1081 + $0x30] sm:$0xff]
        %v1089 = vld [vmem:[%s1081 + $0x38] sm:$0xff]
        %v1090 = vld [vmem:[%s1081 + $0x40] sm:$0xff]
        %v1091 = vld [vmem:[%s1081 + $0x48] sm:$0xff]
        %v1092 = vld [vmem:[%s1081 + $0x50] sm:$0xff]
        %v1093 = vld [vmem:[%s1081 + $0x58] sm:$0xff]
        %v1094 = vld [vmem:[%s1081 + $0x60] sm:$0xff]
        %v1095 = vld [vmem:[%s1081 + $0x68] sm:$0xff]
        %v1096 = vld [vmem:[%s1081 + $0x70] sm:$0xff]
        %v1097 = vld [vmem:[%s1081 + $0x78] sm:$0xff]
        %v1098 = vld [vmem:[%s1081 + $0x80] sm:$0xff]
        %v1099 = vld [vmem:[%s1081 + $0x88] sm:$0xff]
        %v1100 = vld [vmem:[%s1081 + $0x90] sm:$0xff]
        %v1101 = vld [vmem:[%s1081 + $0x98] sm:$0xff]
        %v1102 = vld [vmem:[%s1081 + $0xa0] sm:$0xff]
        %v1103 = vld [vmem:[%s1081 + $0xa8] sm:$0xff]
        %v1104 = vld [vmem:[%s1081 + $0xb0] sm:$0xff]
        %v1105 = vld [vmem:[%s1081 + $0xb8] sm:$0xff]
        %v1106 = vld [vmem:[%s1081 + $0xc0] sm:$0xff]
        %v1107 = vld [vmem:[%s1081 + $0xc8] sm:$0xff]
        %v1108 = vld [vmem:[%s1081 + $0xd0] sm:$0xff]
        %v1109 = vld [vmem:[%s1081 + $0xd8] sm:$0xff]
        %v1110 = vld [vmem:[%s1081 + $0xe0] sm:$0xff]
        %v1111 = vld [vmem:[%s1081 + $0xe8] sm:$0xff]
        %v1112 = vld [vmem:[%s1081 + $0xf0] sm:$0xff]
        %v1113 = vld [vmem:[%s1081 + $0xf8] sm:$0xff]
        %v1114 = vld [vmem:[%s1081 + $0x100] sm:$0xff]
        %v1115 = vld [vmem:[%s1081 + $0x108] sm:$0xff]
        %v1116 = vld [vmem:[%s1081 + $0x110] sm:$0xff]
        %v1117 = vld [vmem:[%s1081 + $0x118] sm:$0xff]
        %v1118 = vld [vmem:[%s1081 + $0x120] sm:$0xff]
        %v1119 = vld [vmem:[%s1081 + $0x128] sm:$0xff]
        %v1120 = vld [vmem:[%s1081 + $0x130] sm:$0xff]
        %v1121 = vld [vmem:[%s1081 + $0x138] sm:$0xff]
        %v1122 = vld [vmem:[%s1081 + $0x140] sm:$0xff]
        %v1123 = vld [vmem:[%s1081 + $0x148] sm:$0xff]
        %v1124 = vld [vmem:[%s1081 + $0x150] sm:$0xff]
        %v1125 = vld [vmem:[%s1081 + $0x158] sm:$0xff]
        %v1126 = vld [vmem:[%s1081 + $0x160] sm:$0xff]
        %v1127 = vld [vmem:[%s1081 + $0x168] sm:$0xff]
        %v1128 = vld [vmem:[%s1081 + $0x170] sm:$0xff]
        %v1129 = vld [vmem:[%s1081 + $0x178] sm:$0xff]
        %v1130 = vld [vmem:[%s1081 + $0x180] sm:$0xff]
        %v1131 = vld [vmem:[%s1081 + $0x188] sm:$0xff]
        %v1132 = vld [vmem:[%s1081 + $0x190] sm:$0xff]
        %v1133 = vld [vmem:[%s1081 + $0x198] sm:$0xff]
        %v1134 = vld [vmem:[%s1081 + $0x1a0] sm:$0xff]
        %v1135 = vld [vmem:[%s1081 + $0x1a8] sm:$0xff]
        %v1136 = vld [vmem:[%s1081 + $0x1b0] sm:$0xff]
        %v1137 = vld [vmem:[%s1081 + $0x1b8] sm:$0xff]
        %v1138 = vld [vmem:[%s1081 + $0x1c0] sm:$0xff]
        %v1139 = vld [vmem:[%s1081 + $0x1c8] sm:$0xff]
        %v1140 = vld [vmem:[%s1081 + $0x1d0] sm:$0xff]
        %v1141 = vld [vmem:[%s1081 + $0x1d8] sm:$0xff]
        %v1142 = vld [vmem:[%s1081 + $0x1e0] sm:$0xff]
        %v1143 = vld [vmem:[%s1081 + $0x1e8] sm:$0xff]
        %v1144 = vld [vmem:[%s1081 + $0x1f0] sm:$0xff]
        %v1145 = vld [vmem:[%s1081 + $0x1f8] sm:$0xff]
        %v1146 = vld [vmem:[%s1081 + $0x200] sm:$0xff]
        %v1147 = vld [vmem:[%s1081 + $0x208] sm:$0xff]
        %v1148 = vld [vmem:[%s1081 + $0x210] sm:$0xff]
        %v1149 = vld [vmem:[%s1081 + $0x218] sm:$0xff]
        %v1150 = vld [vmem:[%s1081 + $0x220] sm:$0xff]
        %v1151 = vld [vmem:[%s1081 + $0x228] sm:$0xff]
        %v1152 = vld [vmem:[%s1081 + $0x230] sm:$0xff]
        %v1153 = vld [vmem:[%s1081 + $0x238] sm:$0xff]
        %v1154 = vld [vmem:[%s1081 + $0x240] sm:$0xff]
        %v1155 = vld [vmem:[%s1081 + $0x248] sm:$0xff]
        %v1156 = vld [vmem:[%s1081 + $0x250] sm:$0xff]
        %v1157 = vld [vmem:[%s1081 + $0x258] sm:$0xff]
        %v1158 = vld [vmem:[%s1081 + $0x260] sm:$0xff]
        %v1159 = vld [vmem:[%s1081 + $0x268] sm:$0xff]
        %v1160 = vld [vmem:[%s1081 + $0x270] sm:$0xff]
        %v1161 = vld [vmem:[%s1081 + $0x278] sm:$0xff]
        %v1162 = vld [vmem:[%s1081 + $0x280] sm:$0xff]
        %v1163 = vld [vmem:[%s1081 + $0x288] sm:$0xff]
        %v1164 = vld [vmem:[%s1081 + $0x290] sm:$0xff]
        %v1165 = vld [vmem:[%s1081 + $0x298] sm:$0xff]
        %v1166 = vld [vmem:[%s1081 + $0x2a0] sm:$0xff]
        %v1167 = vld [vmem:[%s1081 + $0x2a8] sm:$0xff]
        %v1168 = vld [vmem:[%s1081 + $0x2b0] sm:$0xff]
        %v1169 = vld [vmem:[%s1081 + $0x2b8] sm:$0xff]
        %v1170 = vld [vmem:[%s1081 + $0x2c0] sm:$0xff]
        %v1171 = vld [vmem:[%s1081 + $0x2c8] sm:$0xff]
        %v1172 = vld [vmem:[%s1081 + $0x2d0] sm:$0xff]
        %v1173 = vld [vmem:[%s1081 + $0x2d8] sm:$0xff]
        %v1174 = vld [vmem:[%s1081 + $0x2e0] sm:$0xff]
        %v1175 = vld [vmem:[%s1081 + $0x2e8] sm:$0xff]
        %v1176 = vld [vmem:[%s1081 + $0x2f0] sm:$0xff]
        %v1177 = vld [vmem:[%s1081 + $0x2f8] sm:$0xff]
        %v1178 = vld [vmem:[%s1081 + $0x300] sm:$0xff]
        %v1179 = vld [vmem:[%s1081 + $0x308] sm:$0xff]
        %v1180 = vld [vmem:[%s1081 + $0x310] sm:$0xff]
        %v1181 = vld [vmem:[%s1081 + $0x318] sm:$0xff]
        %v1182 = vld [vmem:[%s1081 + $0x320] sm:$0xff]
        %v1183 = vld [vmem:[%s1081 + $0x328] sm:$0xff]
        %v1184 = vld [vmem:[%s1081 + $0x330] sm:$0xff]
        %v1185 = vld [vmem:[%s1081 + $0x338] sm:$0xff]
        %v1186 = vld [vmem:[%s1081 + $0x340] sm:$0xff]
        %v1187 = vld [vmem:[%s1081 + $0x348] sm:$0xff]
        %v1188 = vld [vmem:[%s1081 + $0x350] sm:$0xff]
        %v1189 = vld [vmem:[%s1081 + $0x358] sm:$0xff]
        %v1190 = vld [vmem:[%s1081 + $0x360] sm:$0xff]
        %v1191 = vld [vmem:[%s1081 + $0x368] sm:$0xff]
        %v1192 = vld [vmem:[%s1081 + $0x370] sm:$0xff]
        %v1193 = vld [vmem:[%s1081 + $0x378] sm:$0xff]
        %v1194 = vld [vmem:[%s1081 + $0x380] sm:$0xff]
        %v1195 = vld [vmem:[%s1081 + $0x388] sm:$0xff]
        %v1196 = vld [vmem:[%s1081 + $0x390] sm:$0xff]
        %v1197 = vld [vmem:[%s1081 + $0x398] sm:$0xff]
        %v1198 = vld [vmem:[%s1081 + $0x3a0] sm:$0xff]
        %v1199 = vld [vmem:[%s1081 + $0x3a8] sm:$0xff]
        %v1200 = vld [vmem:[%s1081 + $0x3b0] sm:$0xff]
        %v1201 = vld [vmem:[%s1081 + $0x3b8] sm:$0xff]
        %v1202 = vld [vmem:[%s1081 + $0x3c0] sm:$0xff]
        %v1203 = vld [vmem:[%s1081 + $0x3c8] sm:$0xff]
        %v1204 = vld [vmem:[%s1081 + $0x3d0] sm:$0xff]
        %v1205 = vld [vmem:[%s1081 + $0x3d8] sm:$0xff]
        %v1206 = vld [vmem:[%s1081 + $0x3e0] sm:$0xff]
        %v1207 = vld [vmem:[%s1081 + $0x3e8] sm:$0xff]
        %v1208 = vld [vmem:[%s1081 + $0x3f0] sm:$0xff]
        %v1209 = vld [vmem:[%s1081 + $0x3f8] sm:$0xff]
        %1210 = vmatprep.subr.mxu0 %v1083
        %1211 = vmatpush1.msra.mxu0 %v1082
        %1212 = vmatprep.subr.mxu0 %v1085
        %1213 = vmatpush1.msra.mxu0 %v1084
        %1214 = vmatprep.subr.mxu0 %v1087
        %1215 = vmatpush1.msra.mxu0 %v1086
        %1216 = vmatprep.subr.mxu0 %v1089
        %1217 = vmatpush1.msra.mxu0 %v1088
        %1218 = vmatprep.subr.mxu0 %v1091
        %1219 = vmatpush1.msra.mxu0 %v1090
        %1220 = vmatprep.subr.mxu0 %v1093
        %1221 = vmatpush1.msra.mxu0 %v1092
        %1222 = vmatprep.subr.mxu0 %v1095
        %1223 = vmatpush1.msra.mxu0 %v1094
        %1224 = vmatprep.subr.mxu0 %v1097
        %1225 = vmatpush1.msra.mxu0 %v1096
        %1226 = vmatprep.subr.mxu0 %v1099
        %1227 = vmatpush1.msra.mxu0 %v1098
        %1228 = vmatprep.subr.mxu0 %v1101
        %1229 = vmatpush1.msra.mxu0 %v1100
        %1230 = vmatprep.subr.mxu0 %v1103
        %1231 = vmatpush1.msra.mxu0 %v1102
        %1232 = vmatprep.subr.mxu0 %v1105
        %1233 = vmatpush1.msra.mxu0 %v1104
        %1234 = vmatprep.subr.mxu0 %v1107
        %1235 = vmatpush1.msra.mxu0 %v1106
        %1236 = vmatprep.subr.mxu0 %v1109
        %1237 = vmatpush1.msra.mxu0 %v1108
        %1238 = vmatprep.subr.mxu0 %v1111
        %1239 = vmatpush1.msra.mxu0 %v1110
        %1240 = vmatprep.subr.mxu0 %v1113
        %1241 = vmatpush1.msra.mxu0 %v1112
        %1242 = vmatprep.subr.mxu0 %v1115
        %1243 = vmatpush1.msra.mxu0 %v1114
        %1244 = vmatprep.subr.mxu0 %v1117
        %1245 = vmatpush1.msra.mxu0 %v1116
        %1246 = vmatprep.subr.mxu0 %v1119
        %1247 = vmatpush1.msra.mxu0 %v1118
        %1248 = vmatprep.subr.mxu0 %v1121
        %1249 = vmatpush1.msra.mxu0 %v1120
        %1250 = vmatprep.subr.mxu0 %v1123
        %1251 = vmatpush1.msra.mxu0 %v1122
        %1252 = vmatprep.subr.mxu0 %v1125
        %1253 = vmatpush1.msra.mxu0 %v1124
        %1254 = vmatprep.subr.mxu0 %v1127
        %1255 = vmatpush1.msra.mxu0 %v1126
        %1256 = vmatprep.subr.mxu0 %v1129
        %1257 = vmatpush1.msra.mxu0 %v1128
        %1258 = vmatprep.subr.mxu0 %v1131
        %1259 = vmatpush1.msra.mxu0 %v1130
        %1260 = vmatprep.subr.mxu0 %v1133
        %1261 = vmatpush1.msra.mxu0 %v1132
        %1262 = vmatprep.subr.mxu0 %v1135
        %1263 = vmatpush1.msra.mxu0 %v1134
        %1264 = vmatprep.subr.mxu0 %v1137
        %1265 = vmatpush1.msra.mxu0 %v1136
        %1266 = vmatprep.subr.mxu0 %v1139
        %1267 = vmatpush1.msra.mxu0 %v1138
        %1268 = vmatprep.subr.mxu0 %v1141
        %1269 = vmatpush1.msra.mxu0 %v1140
        %1270 = vmatprep.subr.mxu0 %v1143
        %1271 = vmatpush1.msra.mxu0 %v1142
        %1272 = vmatprep.subr.mxu0 %v1145
        %1273 = vmatpush1.msra.mxu0 %v1144
        %1274 = vmatprep.mubr.f32.mxu0 %v1058
        %1275 = vmatmul.mubr.f32.gmra.mrb[0].mxu0 %v1055
        %v1276 = vpop.f32.mrb[0].mxu0
        %v1277 = vadd.f32 0.0, %v1276
        %v1278 = vpop.f32.mrb[0].mxu0
        %v1279 = vadd.f32 0.0, %v1278
        %1280 = vmatprep.mubr.f32.mxu0 %v1078
        %1281 = vmatmul.mubr.f32.gmra.mrb[0].mxu0 %v1077
        %v1282 = vpop.f32.mrb[0].mxu0
        %v1283 = vadd.f32 0.0, %v1282
        %v1284 = vpop.f32.mrb[0].mxu0
        %v1285 = vadd.f32 0.0, %v1284
        %1286 = vdwg.mxu0
        %1287 = vmatprep.subr.mxu0 %v1147
        %1288 = vmatpush1.msra.mxu0 %v1146
        %1289 = vmatprep.subr.mxu0 %v1149
        %1290 = vmatpush1.msra.mxu0 %v1148
        %1291 = vmatprep.subr.mxu0 %v1151
        %1292 = vmatpush1.msra.mxu0 %v1150
        %1293 = vmatprep.subr.mxu0 %v1153
        %1294 = vmatpush1.msra.mxu0 %v1152
        %1295 = vmatprep.subr.mxu0 %v1155
        %1296 = vmatpush1.msra.mxu0 %v1154
        %1297 = vmatprep.subr.mxu0 %v1157
        %1298 = vmatpush1.msra.mxu0 %v1156
        %1299 = vmatprep.subr.mxu0 %v1159
        %1300 = vmatpush1.msra.mxu0 %v1158
        %1301 = vmatprep.subr.mxu0 %v1161
        %1302 = vmatpush1.msra.mxu0 %v1160
        %1303 = vmatprep.subr.mxu0 %v1163
        %1304 = vmatpush1.msra.mxu0 %v1162
        %1305 = vmatprep.subr.mxu0 %v1165
        %1306 = vmatpush1.msra.mxu0 %v1164
        %1307 = vmatprep.subr.mxu0 %v1167
        %1308 = vmatpush1.msra.mxu0 %v1166
        %1309 = vmatprep.subr.mxu0 %v1169
        %1310 = vmatpush1.msra.mxu0 %v1168
        %1311 = vmatprep.subr.mxu0 %v1171
        %1312 = vmatpush1.msra.mxu0 %v1170
        %1313 = vmatprep.subr.mxu0 %v1173
        %1314 = vmatpush1.msra.mxu0 %v1172
        %1315 = vmatprep.subr.mxu0 %v1175
        %1316 = vmatpush1.msra.mxu0 %v1174
        %1317 = vmatprep.subr.mxu0 %v1177
        %1318 = vmatpush1.msra.mxu0 %v1176
        %1319 = vmatprep.subr.mxu0 %v1179
        %1320 = vmatpush1.msra.mxu0 %v1178
        %1321 = vmatprep.subr.mxu0 %v1181
        %1322 = vmatpush1.msra.mxu0 %v1180
        %1323 = vmatprep.subr.mxu0 %v1183
        %1324 = vmatpush1.msra.mxu0 %v1182
        %1325 = vmatprep.subr.mxu0 %v1185
        %1326 = vmatpush1.msra.mxu0 %v1184
        %1327 = vmatprep.subr.mxu0 %v1187
        %1328 = vmatpush1.msra.mxu0 %v1186
        %1329 = vmatprep.subr.mxu0 %v1189
        %1330 = vmatpush1.msra.mxu0 %v1188
        %1331 = vmatprep.subr.mxu0 %v1191
        %1332 = vmatpush1.msra.mxu0 %v1190
        %1333 = vmatprep.subr.mxu0 %v1193
        %1334 = vmatpush1.msra.mxu0 %v1192
        %1335 = vmatprep.subr.mxu0 %v1195
        %1336 = vmatpush1.msra.mxu0 %v1194
        %1337 = vmatprep.subr.mxu0 %v1197
        %1338 = vmatpush1.msra.mxu0 %v1196
        %1339 = vmatprep.subr.mxu0 %v1199
        %1340 = vmatpush1.msra.mxu0 %v1198
        %1341 = vmatprep.subr.mxu0 %v1201
        %1342 = vmatpush1.msra.mxu0 %v1200
        %1343 = vmatprep.subr.mxu0 %v1203
        %1344 = vmatpush1.msra.mxu0 %v1202
        %1345 = vmatprep.subr.mxu0 %v1205
        %1346 = vmatpush1.msra.mxu0 %v1204
        %1347 = vmatprep.subr.mxu0 %v1207
        %1348 = vmatpush1.msra.mxu0 %v1206
        %1349 = vmatprep.subr.mxu0 %v1209
        %1350 = vmatpush1.msra.mxu0 %v1208
        %1351 = vmatprep.mubr.f32.mxu0 %v1064
        %1352 = vmatmul.mubr.f32.gmra.mrb[0].mxu0 %v1061
        %v1353 = vpop.f32.mrb[0].mxu0
        %v1354 = vadd.f32 %v1277, %v1353
        %v1355 = vpop.f32.mrb[0].mxu0
        %v1356 = vadd.f32 %v1279, %v1355
        %1357 = vmatprep.mubr.f32.mxu0 %v1080
        %1358 = vmatmul.mubr.f32.gmra.mrb[0].mxu0 %v1079
        %v1359 = vpop.f32.mrb[0].mxu0
        %v1360 = vadd.f32 %v1283, %v1359
        %v1361 = vpop.f32.mrb[0].mxu0
        %v1362 = vadd.f32 %v1285, %v1361
        %1363 = vdwg.mxu0
        %1364 = vmatprep.subr.mxu0 %v918
        %1365 = vmatpush1.msra.mxu0 %v917
        %1366 = vmatprep.subr.mxu0 %v920
        %1367 = vmatpush1.msra.mxu0 %v919
        %1368 = vmatprep.subr.mxu0 %v922
        %1369 = vmatpush1.msra.mxu0 %v921
        %1370 = vmatprep.subr.mxu0 %v924
        %1371 = vmatpush1.msra.mxu0 %v923
        %1372 = vmatprep.subr.mxu0 %v926
        %1373 = vmatpush1.msra.mxu0 %v925
        %1374 = vmatprep.subr.mxu0 %v928
        %1375 = vmatpush1.msra.mxu0 %v927
        %1376 = vmatprep.subr.mxu0 %v930
        %1377 = vmatpush1.msra.mxu0 %v929
        %1378 = vmatprep.subr.mxu0 %v932
        %1379 = vmatpush1.msra.mxu0 %v931
        %1380 = vmatprep.subr.mxu0 %v934
        %1381 = vmatpush1.msra.mxu0 %v933
        %1382 = vmatprep.subr.mxu0 %v936
        %1383 = vmatpush1.msra.mxu0 %v935
        %1384 = vmatprep.subr.mxu0 %v938
        %1385 = vmatpush1.msra.mxu0 %v937
        %1386 = vmatprep.subr.mxu0 %v940
        %1387 = vmatpush1.msra.mxu0 %v939
        %1388 = vmatprep.subr.mxu0 %v942
        %1389 = vmatpush1.msra.mxu0 %v941
        %1390 = vmatprep.subr.mxu0 %v944
        %1391 = vmatpush1.msra.mxu0 %v943
        %1392 = vmatprep.subr.mxu0 %v946
        %1393 = vmatpush1.msra.mxu0 %v945
        %1394 = vmatprep.subr.mxu0 %v948
        %1395 = vmatpush1.msra.mxu0 %v947
        %1396 = vmatprep.subr.mxu0 %v950
        %1397 = vmatpush1.msra.mxu0 %v949
        %1398 = vmatprep.subr.mxu0 %v952
        %1399 = vmatpush1.msra.mxu0 %v951
        %1400 = vmatprep.subr.mxu0 %v954
        %1401 = vmatpush1.msra.mxu0 %v953
        %1402 = vmatprep.subr.mxu0 %v956
        %1403 = vmatpush1.msra.mxu0 %v955
        %1404 = vmatprep.subr.mxu0 %v958
        %1405 = vmatpush1.msra.mxu0 %v957
        %1406 = vmatprep.subr.mxu0 %v960
        %1407 = vmatpush1.msra.mxu0 %v959
        %1408 = vmatprep.subr.mxu0 %v962
        %1409 = vmatpush1.msra.mxu0 %v961
        %1410 = vmatprep.subr.mxu0 %v964
        %1411 = vmatpush1.msra.mxu0 %v963
        %1412 = vmatprep.subr.mxu0 %v966
        %1413 = vmatpush1.msra.mxu0 %v965
        %1414 = vmatprep.subr.mxu0 %v968
        %1415 = vmatpush1.msra.mxu0 %v967
        %1416 = vmatprep.subr.mxu0 %v970
        %1417 = vmatpush1.msra.mxu0 %v969
        %1418 = vmatprep.subr.mxu0 %v972
        %1419 = vmatpush1.msra.mxu0 %v971
        %1420 = vmatprep.subr.mxu0 %v974
        %1421 = vmatpush1.msra.mxu0 %v973
        %1422 = vmatprep.subr.mxu0 %v976
        %1423 = vmatpush1.msra.mxu0 %v975
        %1424 = vmatprep.subr.mxu0 %v978
        %1425 = vmatpush1.msra.mxu0 %v977
        %1426 = vmatprep.subr.mxu0 %v980
        %1427 = vmatpush1.msra.mxu0 %v979
        %1428 = vmatprep.mubr.f32.mxu0 %v910
        %1429 = vmatmul.mubr.f32.gmra.mrb[0].mxu0 %v909
        %v1430 = vpop.f32.mrb[0].mxu0
        %v1431 = vadd.f32 %v1354, %v1430
        %v1432 = vpop.f32.mrb[0].mxu0
        %v1433 = vadd.f32 %v1356, %v1432
        %1434 = vmatprep.mubr.f32.mxu0 %v914
        %1435 = vmatmul.mubr.f32.gmra.mrb[0].mxu0 %v913
        %v1436 = vpop.f32.mrb[0].mxu0
        %v1437 = vadd.f32 %v1360, %v1436
        %v1438 = vpop.f32.mrb[0].mxu0
        %v1439 = vadd.f32 %v1362, %v1438
        %1440 = vdwg.mxu0
        %1441 = vmatprep.subr.mxu0 %v982
        %1442 = vmatpush1.msra.mxu0 %v981
        %1443 = vmatprep.subr.mxu0 %v984
        %1444 = vmatpush1.msra.mxu0 %v983
        %1445 = vmatprep.subr.mxu0 %v986
        %1446 = vmatpush1.msra.mxu0 %v985
        %1447 = vmatprep.subr.mxu0 %v988
        %1448 = vmatpush1.msra.mxu0 %v987
        %1449 = vmatprep.subr.mxu0 %v990
        %1450 = vmatpush1.msra.mxu0 %v989
        %1451 = vmatprep.subr.mxu0 %v992
        %1452 = vmatpush1.msra.mxu0 %v991
        %1453 = vmatprep.subr.mxu0 %v994
        %1454 = vmatpush1.msra.mxu0 %v993
        %1455 = vmatprep.subr.mxu0 %v996
        %1456 = vmatpush1.msra.mxu0 %v995
        %1457 = vmatprep.subr.mxu0 %v998
        %1458 = vmatpush1.msra.mxu0 %v997
        %1459 = vmatprep.subr.mxu0 %v1000
        %1460 = vmatpush1.msra.mxu0 %v999
        %1461 = vmatprep.subr.mxu0 %v1002
        %1462 = vmatpush1.msra.mxu0 %v1001
        %1463 = vmatprep.subr.mxu0 %v1004
        %1464 = vmatpush1.msra.mxu0 %v1003
        %1465 = vmatprep.subr.mxu0 %v1006
        %1466 = vmatpush1.msra.mxu0 %v1005
        %1467 = vmatprep.subr.mxu0 %v1008
        %1468 = vmatpush1.msra.mxu0 %v1007
        %1469 = vmatprep.subr.mxu0 %v1010
        %1470 = vmatpush1.msra.mxu0 %v1009
        %1471 = vmatprep.subr.mxu0 %v1012
        %1472 = vmatpush1.msra.mxu0 %v1011
        %1473 = vmatprep.subr.mxu0 %v1014
        %1474 = vmatpush1.msra.mxu0 %v1013
        %1475 = vmatprep.subr.mxu0 %v1016
        %1476 = vmatpush1.msra.mxu0 %v1015
        %1477 = vmatprep.subr.mxu0 %v1018
        %1478 = vmatpush1.msra.mxu0 %v1017
        %1479 = vmatprep.subr.mxu0 %v1020
        %1480 = vmatpush1.msra.mxu0 %v1019
        %1481 = vmatprep.subr.mxu0 %v1022
        %1482 = vmatpush1.msra.mxu0 %v1021
        %1483 = vmatprep.subr.mxu0 %v1024
        %1484 = vmatpush1.msra.mxu0 %v1023
        %1485 = vmatprep.subr.mxu0 %v1026
        %1486 = vmatpush1.msra.mxu0 %v1025
        %1487 = vmatprep.subr.mxu0 %v1028
        %1488 = vmatpush1.msra.mxu0 %v1027
        %1489 = vmatprep.subr.mxu0 %v1030
        %1490 = vmatpush1.msra.mxu0 %v1029
        %1491 = vmatprep.subr.mxu0 %v1032
        %1492 = vmatpush1.msra.mxu0 %v1031
        %1493 = vmatprep.subr.mxu0 %v1034
        %1494 = vmatpush1.msra.mxu0 %v1033
        %1495 = vmatprep.subr.mxu0 %v1036
        %1496 = vmatpush1.msra.mxu0 %v1035
        %1497 = vmatprep.subr.mxu0 %v1038
        %1498 = vmatpush1.msra.mxu0 %v1037
        %1499 = vmatprep.subr.mxu0 %v1040
        %1500 = vmatpush1.msra.mxu0 %v1039
        %1501 = vmatprep.subr.mxu0 %v1042
        %1502 = vmatpush1.msra.mxu0 %v1041
        %1503 = vmatprep.subr.mxu0 %v1044
        %1504 = vmatpush1.msra.mxu0 %v1043
        %1505 = vmatprep.mubr.f32.mxu0 %v912
        %1506 = vmatmul.mubr.f32.gmra.mrb[0].mxu0 %v911
        %v1507 = vpop.f32.mrb[0].mxu0
        %v1508 = vadd.f32 %v1431, %v1507
        %v1509 = vpop.f32.mrb[0].mxu0
        %v1510 = vadd.f32 %v1433, %v1509
        %1511 = vmatprep.mubr.f32.mxu0 %v916
        %1512 = vmatmul.mubr.f32.gmra.mrb[0].mxu0 %v915
        %v1513 = vpop.f32.mrb[0].mxu0
        %v1514 = vadd.f32 %v1437, %v1513
        %v1515 = vpop.f32.mrb[0].mxu0
        %v1516 = vadd.f32 %v1439, %v1515
        %1517 = vdwg.mxu0
        %v1518 = vrot.slane %v909, 2
        %v1519 = vrot.slane %v913, 2
        %v1520 = vsel %vm672, %v1518, %v1519
        %v1521 = vrot.slane %v910, 2
        %v1522 = vrot.slane %v914, 2
        %v1523 = vsel %vm672, %v1521, %v1522
        %v1524 = vrot.slane %v911, 2
        %v1525 = vrot.slane %v915, 2
        %v1526 = vsel %vm672, %v1524, %v1525
        %v1527 = vrot.slane %v912, 2
        %v1528 = vrot.slane %v916, 2
        %v1529 = vsel %vm672, %v1527, %v1528
        %v1542 = vsel %vm672, %v1519, %v1518
        %v1543 = vsel %vm672, %v1522, %v1521
        %v1544 = vsel %vm672, %v1525, %v1524
        %v1545 = vsel %vm672, %v1528, %v1527
        %s1546 = scalar_lea.vmem %s3, 2048
        %v1547 = vld [vmem:[%s1546] sm:$0xff]
        %v1548 = vld [vmem:[%s1546 + $0x8] sm:$0xff]
        %v1549 = vld [vmem:[%s1546 + $0x10] sm:$0xff]
        %v1550 = vld [vmem:[%s1546 + $0x18] sm:$0xff]
        %v1551 = vld [vmem:[%s1546 + $0x20] sm:$0xff]
        %v1552 = vld [vmem:[%s1546 + $0x28] sm:$0xff]
        %v1553 = vld [vmem:[%s1546 + $0x30] sm:$0xff]
        %v1554 = vld [vmem:[%s1546 + $0x38] sm:$0xff]
        %v1555 = vld [vmem:[%s1546 + $0x40] sm:$0xff]
        %v1556 = vld [vmem:[%s1546 + $0x48] sm:$0xff]
        %v1557 = vld [vmem:[%s1546 + $0x50] sm:$0xff]
        %v1558 = vld [vmem:[%s1546 + $0x58] sm:$0xff]
        %v1559 = vld [vmem:[%s1546 + $0x60] sm:$0xff]
        %v1560 = vld [vmem:[%s1546 + $0x68] sm:$0xff]
        %v1561 = vld [vmem:[%s1546 + $0x70] sm:$0xff]
        %v1562 = vld [vmem:[%s1546 + $0x78] sm:$0xff]
        %v1563 = vld [vmem:[%s1546 + $0x80] sm:$0xff]
        %v1564 = vld [vmem:[%s1546 + $0x88] sm:$0xff]
        %v1565 = vld [vmem:[%s1546 + $0x90] sm:$0xff]
        %v1566 = vld [vmem:[%s1546 + $0x98] sm:$0xff]
        %v1567 = vld [vmem:[%s1546 + $0xa0] sm:$0xff]
        %v1568 = vld [vmem:[%s1546 + $0xa8] sm:$0xff]
        %v1569 = vld [vmem:[%s1546 + $0xb0] sm:$0xff]
        %v1570 = vld [vmem:[%s1546 + $0xb8] sm:$0xff]
        %v1571 = vld [vmem:[%s1546 + $0xc0] sm:$0xff]
        %v1572 = vld [vmem:[%s1546 + $0xc8] sm:$0xff]
        %v1573 = vld [vmem:[%s1546 + $0xd0] sm:$0xff]
        %v1574 = vld [vmem:[%s1546 + $0xd8] sm:$0xff]
        %v1575 = vld [vmem:[%s1546 + $0xe0] sm:$0xff]
        %v1576 = vld [vmem:[%s1546 + $0xe8] sm:$0xff]
        %v1577 = vld [vmem:[%s1546 + $0xf0] sm:$0xff]
        %v1578 = vld [vmem:[%s1546 + $0xf8] sm:$0xff]
        %v1579 = vld [vmem:[%s1546 + $0x100] sm:$0xff]
        %v1580 = vld [vmem:[%s1546 + $0x108] sm:$0xff]
        %v1581 = vld [vmem:[%s1546 + $0x110] sm:$0xff]
        %v1582 = vld [vmem:[%s1546 + $0x118] sm:$0xff]
        %v1583 = vld [vmem:[%s1546 + $0x120] sm:$0xff]
        %v1584 = vld [vmem:[%s1546 + $0x128] sm:$0xff]
        %v1585 = vld [vmem:[%s1546 + $0x130] sm:$0xff]
        %v1586 = vld [vmem:[%s1546 + $0x138] sm:$0xff]
        %v1587 = vld [vmem:[%s1546 + $0x140] sm:$0xff]
        %v1588 = vld [vmem:[%s1546 + $0x148] sm:$0xff]
        %v1589 = vld [vmem:[%s1546 + $0x150] sm:$0xff]
        %v1590 = vld [vmem:[%s1546 + $0x158] sm:$0xff]
        %v1591 = vld [vmem:[%s1546 + $0x160] sm:$0xff]
        %v1592 = vld [vmem:[%s1546 + $0x168] sm:$0xff]
        %v1593 = vld [vmem:[%s1546 + $0x170] sm:$0xff]
        %v1594 = vld [vmem:[%s1546 + $0x178] sm:$0xff]
        %v1595 = vld [vmem:[%s1546 + $0x180] sm:$0xff]
        %v1596 = vld [vmem:[%s1546 + $0x188] sm:$0xff]
        %v1597 = vld [vmem:[%s1546 + $0x190] sm:$0xff]
        %v1598 = vld [vmem:[%s1546 + $0x198] sm:$0xff]
        %v1599 = vld [vmem:[%s1546 + $0x1a0] sm:$0xff]
        %v1600 = vld [vmem:[%s1546 + $0x1a8] sm:$0xff]
        %v1601 = vld [vmem:[%s1546 + $0x1b0] sm:$0xff]
        %v1602 = vld [vmem:[%s1546 + $0x1b8] sm:$0xff]
        %v1603 = vld [vmem:[%s1546 + $0x1c0] sm:$0xff]
        %v1604 = vld [vmem:[%s1546 + $0x1c8] sm:$0xff]
        %v1605 = vld [vmem:[%s1546 + $0x1d0] sm:$0xff]
        %v1606 = vld [vmem:[%s1546 + $0x1d8] sm:$0xff]
        %v1607 = vld [vmem:[%s1546 + $0x1e0] sm:$0xff]
        %v1608 = vld [vmem:[%s1546 + $0x1e8] sm:$0xff]
        %v1609 = vld [vmem:[%s1546 + $0x1f0] sm:$0xff]
        %v1610 = vld [vmem:[%s1546 + $0x1f8] sm:$0xff]
        %v1611 = vld [vmem:[%s1546 + $0x200] sm:$0xff]
        %v1612 = vld [vmem:[%s1546 + $0x208] sm:$0xff]
        %v1613 = vld [vmem:[%s1546 + $0x210] sm:$0xff]
        %v1614 = vld [vmem:[%s1546 + $0x218] sm:$0xff]
        %v1615 = vld [vmem:[%s1546 + $0x220] sm:$0xff]
        %v1616 = vld [vmem:[%s1546 + $0x228] sm:$0xff]
        %v1617 = vld [vmem:[%s1546 + $0x230] sm:$0xff]
        %v1618 = vld [vmem:[%s1546 + $0x238] sm:$0xff]
        %v1619 = vld [vmem:[%s1546 + $0x240] sm:$0xff]
        %v1620 = vld [vmem:[%s1546 + $0x248] sm:$0xff]
        %v1621 = vld [vmem:[%s1546 + $0x250] sm:$0xff]
        %v1622 = vld [vmem:[%s1546 + $0x258] sm:$0xff]
        %v1623 = vld [vmem:[%s1546 + $0x260] sm:$0xff]
        %v1624 = vld [vmem:[%s1546 + $0x268] sm:$0xff]
        %v1625 = vld [vmem:[%s1546 + $0x270] sm:$0xff]
        %v1626 = vld [vmem:[%s1546 + $0x278] sm:$0xff]
        %v1627 = vld [vmem:[%s1546 + $0x280] sm:$0xff]
        %v1628 = vld [vmem:[%s1546 + $0x288] sm:$0xff]
        %v1629 = vld [vmem:[%s1546 + $0x290] sm:$0xff]
        %v1630 = vld [vmem:[%s1546 + $0x298] sm:$0xff]
        %v1631 = vld [vmem:[%s1546 + $0x2a0] sm:$0xff]
        %v1632 = vld [vmem:[%s1546 + $0x2a8] sm:$0xff]
        %v1633 = vld [vmem:[%s1546 + $0x2b0] sm:$0xff]
        %v1634 = vld [vmem:[%s1546 + $0x2b8] sm:$0xff]
        %v1635 = vld [vmem:[%s1546 + $0x2c0] sm:$0xff]
        %v1636 = vld [vmem:[%s1546 + $0x2c8] sm:$0xff]
        %v1637 = vld [vmem:[%s1546 + $0x2d0] sm:$0xff]
        %v1638 = vld [vmem:[%s1546 + $0x2d8] sm:$0xff]
        %v1639 = vld [vmem:[%s1546 + $0x2e0] sm:$0xff]
        %v1640 = vld [vmem:[%s1546 + $0x2e8] sm:$0xff]
        %v1641 = vld [vmem:[%s1546 + $0x2f0] sm:$0xff]
        %v1642 = vld [vmem:[%s1546 + $0x2f8] sm:$0xff]
        %v1643 = vld [vmem:[%s1546 + $0x300] sm:$0xff]
        %v1644 = vld [vmem:[%s1546 + $0x308] sm:$0xff]
        %v1645 = vld [vmem:[%s1546 + $0x310] sm:$0xff]
        %v1646 = vld [vmem:[%s1546 + $0x318] sm:$0xff]
        %v1647 = vld [vmem:[%s1546 + $0x320] sm:$0xff]
        %v1648 = vld [vmem:[%s1546 + $0x328] sm:$0xff]
        %v1649 = vld [vmem:[%s1546 + $0x330] sm:$0xff]
        %v1650 = vld [vmem:[%s1546 + $0x338] sm:$0xff]
        %v1651 = vld [vmem:[%s1546 + $0x340] sm:$0xff]
        %v1652 = vld [vmem:[%s1546 + $0x348] sm:$0xff]
        %v1653 = vld [vmem:[%s1546 + $0x350] sm:$0xff]
        %v1654 = vld [vmem:[%s1546 + $0x358] sm:$0xff]
        %v1655 = vld [vmem:[%s1546 + $0x360] sm:$0xff]
        %v1656 = vld [vmem:[%s1546 + $0x368] sm:$0xff]
        %v1657 = vld [vmem:[%s1546 + $0x370] sm:$0xff]
        %v1658 = vld [vmem:[%s1546 + $0x378] sm:$0xff]
        %v1659 = vld [vmem:[%s1546 + $0x380] sm:$0xff]
        %v1660 = vld [vmem:[%s1546 + $0x388] sm:$0xff]
        %v1661 = vld [vmem:[%s1546 + $0x390] sm:$0xff]
        %v1662 = vld [vmem:[%s1546 + $0x398] sm:$0xff]
        %v1663 = vld [vmem:[%s1546 + $0x3a0] sm:$0xff]
        %v1664 = vld [vmem:[%s1546 + $0x3a8] sm:$0xff]
        %v1665 = vld [vmem:[%s1546 + $0x3b0] sm:$0xff]
        %v1666 = vld [vmem:[%s1546 + $0x3b8] sm:$0xff]
        %v1667 = vld [vmem:[%s1546 + $0x3c0] sm:$0xff]
        %v1668 = vld [vmem:[%s1546 + $0x3c8] sm:$0xff]
        %v1669 = vld [vmem:[%s1546 + $0x3d0] sm:$0xff]
        %v1670 = vld [vmem:[%s1546 + $0x3d8] sm:$0xff]
        %v1671 = vld [vmem:[%s1546 + $0x3e0] sm:$0xff]
        %v1672 = vld [vmem:[%s1546 + $0x3e8] sm:$0xff]
        %v1673 = vld [vmem:[%s1546 + $0x3f0] sm:$0xff]
        %v1674 = vld [vmem:[%s1546 + $0x3f8] sm:$0xff]
        %1675 = vmatprep.subr.mxu0 %v1548
        %1676 = vmatpush1.msra.mxu0 %v1547
        %1677 = vmatprep.subr.mxu0 %v1550
        %1678 = vmatpush1.msra.mxu0 %v1549
        %1679 = vmatprep.subr.mxu0 %v1552
        %1680 = vmatpush1.msra.mxu0 %v1551
        %1681 = vmatprep.subr.mxu0 %v1554
        %1682 = vmatpush1.msra.mxu0 %v1553
        %1683 = vmatprep.subr.mxu0 %v1556
        %1684 = vmatpush1.msra.mxu0 %v1555
        %1685 = vmatprep.subr.mxu0 %v1558
        %1686 = vmatpush1.msra.mxu0 %v1557
        %1687 = vmatprep.subr.mxu0 %v1560
        %1688 = vmatpush1.msra.mxu0 %v1559
        %1689 = vmatprep.subr.mxu0 %v1562
        %1690 = vmatpush1.msra.mxu0 %v1561
        %1691 = vmatprep.subr.mxu0 %v1564
        %1692 = vmatpush1.msra.mxu0 %v1563
        %1693 = vmatprep.subr.mxu0 %v1566
        %1694 = vmatpush1.msra.mxu0 %v1565
        %1695 = vmatprep.subr.mxu0 %v1568
        %1696 = vmatpush1.msra.mxu0 %v1567
        %1697 = vmatprep.subr.mxu0 %v1570
        %1698 = vmatpush1.msra.mxu0 %v1569
        %1699 = vmatprep.subr.mxu0 %v1572
        %1700 = vmatpush1.msra.mxu0 %v1571
        %1701 = vmatprep.subr.mxu0 %v1574
        %1702 = vmatpush1.msra.mxu0 %v1573
        %1703 = vmatprep.subr.mxu0 %v1576
        %1704 = vmatpush1.msra.mxu0 %v1575
        %1705 = vmatprep.subr.mxu0 %v1578
        %1706 = vmatpush1.msra.mxu0 %v1577
        %1707 = vmatprep.subr.mxu0 %v1580
        %1708 = vmatpush1.msra.mxu0 %v1579
        %1709 = vmatprep.subr.mxu0 %v1582
        %1710 = vmatpush1.msra.mxu0 %v1581
        %1711 = vmatprep.subr.mxu0 %v1584
        %1712 = vmatpush1.msra.mxu0 %v1583
        %1713 = vmatprep.subr.mxu0 %v1586
        %1714 = vmatpush1.msra.mxu0 %v1585
        %1715 = vmatprep.subr.mxu0 %v1588
        %1716 = vmatpush1.msra.mxu0 %v1587
        %1717 = vmatprep.subr.mxu0 %v1590
        %1718 = vmatpush1.msra.mxu0 %v1589
        %1719 = vmatprep.subr.mxu0 %v1592
        %1720 = vmatpush1.msra.mxu0 %v1591
        %1721 = vmatprep.subr.mxu0 %v1594
        %1722 = vmatpush1.msra.mxu0 %v1593
        %1723 = vmatprep.subr.mxu0 %v1596
        %1724 = vmatpush1.msra.mxu0 %v1595
        %1725 = vmatprep.subr.mxu0 %v1598
        %1726 = vmatpush1.msra.mxu0 %v1597
        %1727 = vmatprep.subr.mxu0 %v1600
        %1728 = vmatpush1.msra.mxu0 %v1599
        %1729 = vmatprep.subr.mxu0 %v1602
        %1730 = vmatpush1.msra.mxu0 %v1601
        %1731 = vmatprep.subr.mxu0 %v1604
        %1732 = vmatpush1.msra.mxu0 %v1603
        %1733 = vmatprep.subr.mxu0 %v1606
        %1734 = vmatpush1.msra.mxu0 %v1605
        %1735 = vmatprep.subr.mxu0 %v1608
        %1736 = vmatpush1.msra.mxu0 %v1607
        %1737 = vmatprep.subr.mxu0 %v1610
        %1738 = vmatpush1.msra.mxu0 %v1609
        %1739 = vmatprep.mubr.f32.mxu0 %v1523
        %1740 = vmatmul.mubr.f32.gmra.mrb[0].mxu0 %v1520
        %v1741 = vpop.f32.mrb[0].mxu0
        %v1742 = vadd.f32 0.0, %v1741
        %v1743 = vpop.f32.mrb[0].mxu0
        %v1744 = vadd.f32 0.0, %v1743
        %1745 = vmatprep.mubr.f32.mxu0 %v1543
        %1746 = vmatmul.mubr.f32.gmra.mrb[0].mxu0 %v1542
        %v1747 = vpop.f32.mrb[0].mxu0
        %v1748 = vadd.f32 0.0, %v1747
        %v1749 = vpop.f32.mrb[0].mxu0
        %v1750 = vadd.f32 0.0, %v1749
        %1751 = vdwg.mxu0
        %1752 = vmatprep.subr.mxu0 %v1612
        %1753 = vmatpush1.msra.mxu0 %v1611
        %1754 = vmatprep.subr.mxu0 %v1614
        %1755 = vmatpush1.msra.mxu0 %v1613
        %1756 = vmatprep.subr.mxu0 %v1616
        %1757 = vmatpush1.msra.mxu0 %v1615
        %1758 = vmatprep.subr.mxu0 %v1618
        %1759 = vmatpush1.msra.mxu0 %v1617
        %1760 = vmatprep.subr.mxu0 %v1620
        %1761 = vmatpush1.msra.mxu0 %v1619
        %1762 = vmatprep.subr.mxu0 %v1622
        %1763 = vmatpush1.msra.mxu0 %v1621
        %1764 = vmatprep.subr.mxu0 %v1624
        %1765 = vmatpush1.msra.mxu0 %v1623
        %1766 = vmatprep.subr.mxu0 %v1626
        %1767 = vmatpush1.msra.mxu0 %v1625
        %1768 = vmatprep.subr.mxu0 %v1628
        %1769 = vmatpush1.msra.mxu0 %v1627
        %1770 = vmatprep.subr.mxu0 %v1630
        %1771 = vmatpush1.msra.mxu0 %v1629
        %1772 = vmatprep.subr.mxu0 %v1632
        %1773 = vmatpush1.msra.mxu0 %v1631
        %1774 = vmatprep.subr.mxu0 %v1634
        %1775 = vmatpush1.msra.mxu0 %v1633
        %1776 = vmatprep.subr.mxu0 %v1636
        %1777 = vmatpush1.msra.mxu0 %v1635
        %1778 = vmatprep.subr.mxu0 %v1638
        %1779 = vmatpush1.msra.mxu0 %v1637
        %1780 = vmatprep.subr.mxu0 %v1640
        %1781 = vmatpush1.msra.mxu0 %v1639
        %1782 = vmatprep.subr.mxu0 %v1642
        %1783 = vmatpush1.msra.mxu0 %v1641
        %1784 = vmatprep.subr.mxu0 %v1644
        %1785 = vmatpush1.msra.mxu0 %v1643
        %1786 = vmatprep.subr.mxu0 %v1646
        %1787 = vmatpush1.msra.mxu0 %v1645
        %1788 = vmatprep.subr.mxu0 %v1648
        %1789 = vmatpush1.msra.mxu0 %v1647
        %1790 = vmatprep.subr.mxu0 %v1650
        %1791 = vmatpush1.msra.mxu0 %v1649
        %1792 = vmatprep.subr.mxu0 %v1652
        %1793 = vmatpush1.msra.mxu0 %v1651
        %1794 = vmatprep.subr.mxu0 %v1654
        %1795 = vmatpush1.msra.mxu0 %v1653
        %1796 = vmatprep.subr.mxu0 %v1656
        %1797 = vmatpush1.msra.mxu0 %v1655
        %1798 = vmatprep.subr.mxu0 %v1658
        %1799 = vmatpush1.msra.mxu0 %v1657
        %1800 = vmatprep.subr.mxu0 %v1660
        %1801 = vmatpush1.msra.mxu0 %v1659
        %1802 = vmatprep.subr.mxu0 %v1662
        %1803 = vmatpush1.msra.mxu0 %v1661
        %1804 = vmatprep.subr.mxu0 %v1664
        %1805 = vmatpush1.msra.mxu0 %v1663
        %1806 = vmatprep.subr.mxu0 %v1666
        %1807 = vmatpush1.msra.mxu0 %v1665
        %1808 = vmatprep.subr.mxu0 %v1668
        %1809 = vmatpush1.msra.mxu0 %v1667
        %1810 = vmatprep.subr.mxu0 %v1670
        %1811 = vmatpush1.msra.mxu0 %v1669
        %1812 = vmatprep.subr.mxu0 %v1672
        %1813 = vmatpush1.msra.mxu0 %v1671
        %1814 = vmatprep.subr.mxu0 %v1674
        %1815 = vmatpush1.msra.mxu0 %v1673
        %1816 = vmatprep.mubr.f32.mxu0 %v1529
        %1817 = vmatmul.mubr.f32.gmra.mrb[0].mxu0 %v1526
        %v1818 = vpop.f32.mrb[0].mxu0
        %v1819 = vadd.f32 %v1742, %v1818
        %v1820 = vpop.f32.mrb[0].mxu0
        %v1821 = vadd.f32 %v1744, %v1820
        %1822 = vmatprep.mubr.f32.mxu0 %v1545
        %1823 = vmatmul.mubr.f32.gmra.mrb[0].mxu0 %v1544
        %v1824 = vpop.f32.mrb[0].mxu0
        %v1825 = vadd.f32 %v1748, %v1824
        %v1826 = vpop.f32.mrb[0].mxu0
        %v1827 = vadd.f32 %v1750, %v1826
        %1828 = vdwg.mxu0
        %v1829 = vadd.f32 %v1508, %v1819
        %v1830 = vadd.f32 %v1510, %v1821
        %v1831 = vadd.f32 %v1514, %v1825
        %v1832 = vadd.f32 %v1516, %v1827
        %v1833 = vld [vmem:[%s4] sm:$0x3]
        %v1835 = vlaneseq
        %v1836 = vshrl.u32 %v1835, 7
        %v1837 = vsub.s32 0, %v1836
        %v1838 = vrot.slane %v1833, %v1837
        %v1839 = vlaneseq
        %v1840 = vshrl.u32 %v1839, 7
        %v1841 = vsub.s32 1, %v1840
        %v1842 = vrot.slane %v1833, %v1841
        %v1845 = vadd.f32 %v1829, %v1838
        %v1846 = vadd.f32 %v1830, %v1842
        %v1847 = vadd.f32 %v1831, %v1838
        %v1848 = vadd.f32 %v1832, %v1842
        %v1849 = vmax.f32 %v1845, 0.0
        %v1850 = vmax.f32 %v1846, 0.0
        %v1851 = vmax.f32 %v1847, 0.0
        %v1852 = vmax.f32 %v1848, 0.0
        %v1853 = vld [vmem:[%s5] sm:$0xff]
        %v1854 = vld [vmem:[%s5 + $0x8] sm:$0xff]
        %v1855 = vld [vmem:[%s5 + $0x10] sm:$0xff]
        %v1856 = vld [vmem:[%s5 + $0x18] sm:$0xff]
        %v1857 = vld [vmem:[%s5 + $0x20] sm:$0xff]
        %v1858 = vld [vmem:[%s5 + $0x28] sm:$0xff]
        %v1859 = vld [vmem:[%s5 + $0x30] sm:$0xff]
        %v1860 = vld [vmem:[%s5 + $0x38] sm:$0xff]
        %v1861 = vld [vmem:[%s5 + $0x40] sm:$0xff]
        %v1862 = vld [vmem:[%s5 + $0x48] sm:$0xff]
        %v1863 = vld [vmem:[%s5 + $0x50] sm:$0xff]
        %v1864 = vld [vmem:[%s5 + $0x58] sm:$0xff]
        %v1865 = vld [vmem:[%s5 + $0x60] sm:$0xff]
        %v1866 = vld [vmem:[%s5 + $0x68] sm:$0xff]
        %v1867 = vld [vmem:[%s5 + $0x70] sm:$0xff]
        %v1868 = vld [vmem:[%s5 + $0x78] sm:$0xff]
        %v1869 = vld [vmem:[%s5 + $0x80] sm:$0xff]
        %v1870 = vld [vmem:[%s5 + $0x88] sm:$0xff]
        %v1871 = vld [vmem:[%s5 + $0x90] sm:$0xff]
        %v1872 = vld [vmem:[%s5 + $0x98] sm:$0xff]
        %v1873 = vld [vmem:[%s5 + $0xa0] sm:$0xff]
        %v1874 = vld [vmem:[%s5 + $0xa8] sm:$0xff]
        %v1875 = vld [vmem:[%s5 + $0xb0] sm:$0xff]
        %v1876 = vld [vmem:[%s5 + $0xb8] sm:$0xff]
        %v1877 = vld [vmem:[%s5 + $0xc0] sm:$0xff]
        %v1878 = vld [vmem:[%s5 + $0xc8] sm:$0xff]
        %v1879 = vld [vmem:[%s5 + $0xd0] sm:$0xff]
        %v1880 = vld [vmem:[%s5 + $0xd8] sm:$0xff]
        %v1881 = vld [vmem:[%s5 + $0xe0] sm:$0xff]
        %v1882 = vld [vmem:[%s5 + $0xe8] sm:$0xff]
        %v1883 = vld [vmem:[%s5 + $0xf0] sm:$0xff]
        %v1884 = vld [vmem:[%s5 + $0xf8] sm:$0xff]
        %s1885 = scalar_lea.vmem %s5, 256
        %v1886 = vld [vmem:[%s1885] sm:$0xff]
        %v1887 = vld [vmem:[%s1885 + $0x8] sm:$0xff]
        %v1888 = vld [vmem:[%s1885 + $0x10] sm:$0xff]
        %v1889 = vld [vmem:[%s1885 + $0x18] sm:$0xff]
        %v1890 = vld [vmem:[%s1885 + $0x20] sm:$0xff]
        %v1891 = vld [vmem:[%s1885 + $0x28] sm:$0xff]
        %v1892 = vld [vmem:[%s1885 + $0x30] sm:$0xff]
        %v1893 = vld [vmem:[%s1885 + $0x38] sm:$0xff]
        %v1894 = vld [vmem:[%s1885 + $0x40] sm:$0xff]
        %v1895 = vld [vmem:[%s1885 + $0x48] sm:$0xff]
        %v1896 = vld [vmem:[%s1885 + $0x50] sm:$0xff]
        %v1897 = vld [vmem:[%s1885 + $0x58] sm:$0xff]
        %v1898 = vld [vmem:[%s1885 + $0x60] sm:$0xff]
        %v1899 = vld [vmem:[%s1885 + $0x68] sm:$0xff]
        %v1900 = vld [vmem:[%s1885 + $0x70] sm:$0xff]
        %v1901 = vld [vmem:[%s1885 + $0x78] sm:$0xff]
        %v1902 = vld [vmem:[%s1885 + $0x80] sm:$0xff]
        %v1903 = vld [vmem:[%s1885 + $0x88] sm:$0xff]
        %v1904 = vld [vmem:[%s1885 + $0x90] sm:$0xff]
        %v1905 = vld [vmem:[%s1885 + $0x98] sm:$0xff]
        %v1906 = vld [vmem:[%s1885 + $0xa0] sm:$0xff]
        %v1907 = vld [vmem:[%s1885 + $0xa8] sm:$0xff]
        %v1908 = vld [vmem:[%s1885 + $0xb0] sm:$0xff]
        %v1909 = vld [vmem:[%s1885 + $0xb8] sm:$0xff]
        %v1910 = vld [vmem:[%s1885 + $0xc0] sm:$0xff]
        %v1911 = vld [vmem:[%s1885 + $0xc8] sm:$0xff]
        %v1912 = vld [vmem:[%s1885 + $0xd0] sm:$0xff]
        %v1913 = vld [vmem:[%s1885 + $0xd8] sm:$0xff]
        %v1914 = vld [vmem:[%s1885 + $0xe0] sm:$0xff]
        %v1915 = vld [vmem:[%s1885 + $0xe8] sm:$0xff]
        %v1916 = vld [vmem:[%s1885 + $0xf0] sm:$0xff]
        %v1917 = vld [vmem:[%s1885 + $0xf8] sm:$0xff]
        %v1920 = vrot.slane %v1849, 1
        %v1921 = vrot.slane %v1850, 1
        %1924 = vmatprep.subr.mxu0 0.0
        %1925 = vmatpush1.msra.mxu0 %v1886
        %1926 = vmatprep.subr.mxu0 0.0
        %1927 = vmatpush1.msra.mxu0 %v1887
        %1928 = vmatprep.subr.mxu0 0.0
        %1929 = vmatpush1.msra.mxu0 %v1888
        %1930 = vmatprep.subr.mxu0 0.0
        %1931 = vmatpush1.msra.mxu0 %v1889
        %1932 = vmatprep.subr.mxu0 0.0
        %1933 = vmatpush1.msra.mxu0 %v1890
        %1934 = vmatprep.subr.mxu0 0.0
        %1935 = vmatpush1.msra.mxu0 %v1891
        %1936 = vmatprep.subr.mxu0 0.0
        %1937 = vmatpush1.msra.mxu0 %v1892
        %1938 = vmatprep.subr.mxu0 0.0
        %1939 = vmatpush1.msra.mxu0 %v1893
        %1940 = vmatprep.subr.mxu0 0.0
        %1941 = vmatpush1.msra.mxu0 %v1894
        %1942 = vmatprep.subr.mxu0 0.0
        %1943 = vmatpush1.msra.mxu0 %v1895
        %1944 = vmatprep.subr.mxu0 0.0
        %1945 = vmatpush1.msra.mxu0 %v1896
        %1946 = vmatprep.subr.mxu0 0.0
        %1947 = vmatpush1.msra.mxu0 %v1897
        %1948 = vmatprep.subr.mxu0 0.0
        %1949 = vmatpush1.msra.mxu0 %v1898
        %1950 = vmatprep.subr.mxu0 0.0
        %1951 = vmatpush1.msra.mxu0 %v1899
        %1952 = vmatprep.subr.mxu0 0.0
        %1953 = vmatpush1.msra.mxu0 %v1900
        %1954 = vmatprep.subr.mxu0 0.0
        %1955 = vmatpush1.msra.mxu0 %v1901
        %1956 = vmatprep.subr.mxu0 0.0
        %1957 = vmatpush1.msra.mxu0 %v1902
        %1958 = vmatprep.subr.mxu0 0.0
        %1959 = vmatpush1.msra.mxu0 %v1903
        %1960 = vmatprep.subr.mxu0 0.0
        %1961 = vmatpush1.msra.mxu0 %v1904
        %1962 = vmatprep.subr.mxu0 0.0
        %1963 = vmatpush1.msra.mxu0 %v1905
        %1964 = vmatprep.subr.mxu0 0.0
        %1965 = vmatpush1.msra.mxu0 %v1906
        %1966 = vmatprep.subr.mxu0 0.0
        %1967 = vmatpush1.msra.mxu0 %v1907
        %1968 = vmatprep.subr.mxu0 0.0
        %1969 = vmatpush1.msra.mxu0 %v1908
        %1970 = vmatprep.subr.mxu0 0.0
        %1971 = vmatpush1.msra.mxu0 %v1909
        %1972 = vmatprep.subr.mxu0 0.0
        %1973 = vmatpush1.msra.mxu0 %v1910
        %1974 = vmatprep.subr.mxu0 0.0
        %1975 = vmatpush1.msra.mxu0 %v1911
        %1976 = vmatprep.subr.mxu0 0.0
        %1977 = vmatpush1.msra.mxu0 %v1912
        %1978 = vmatprep.subr.mxu0 0.0
        %1979 = vmatpush1.msra.mxu0 %v1913
        %1980 = vmatprep.subr.mxu0 0.0
        %1981 = vmatpush1.msra.mxu0 %v1914
        %1982 = vmatprep.subr.mxu0 0.0
        %1983 = vmatpush1.msra.mxu0 %v1915
        %1984 = vmatprep.subr.mxu0 0.0
        %1985 = vmatpush1.msra.mxu0 %v1916
        %1986 = vmatprep.subr.mxu0 0.0
        %1987 = vmatpush1.msra.mxu0 %v1917
        %1988 = vmatprep.mubr.f32.mxu0 %v1921
        %1989 = vmatmul.mubr.f32.gmra.mrb[0].mxu0 %v1920
        %v1990 = vpop.f32.mrb[0].mxu0
        %v1991 = vadd.f32 0.0, %v1990
        %v1992 = vpop.f32.mrb[0].mxu0
        %1993 = vdwg.mxu0
        %1994 = vmatprep.subr.mxu0 0.0
        %1995 = vmatpush1.msra.mxu0 %v1853
        %1996 = vmatprep.subr.mxu0 0.0
        %1997 = vmatpush1.msra.mxu0 %v1854
        %1998 = vmatprep.subr.mxu0 0.0
        %1999 = vmatpush1.msra.mxu0 %v1855
        %2000 = vmatprep.subr.mxu0 0.0
        %2001 = vmatpush1.msra.mxu0 %v1856
        %2002 = vmatprep.subr.mxu0 0.0
        %2003 = vmatpush1.msra.mxu0 %v1857
        %2004 = vmatprep.subr.mxu0 0.0
        %2005 = vmatpush1.msra.mxu0 %v1858
        %2006 = vmatprep.subr.mxu0 0.0
        %2007 = vmatpush1.msra.mxu0 %v1859
        %2008 = vmatprep.subr.mxu0 0.0
        %2009 = vmatpush1.msra.mxu0 %v1860
        %2010 = vmatprep.subr.mxu0 0.0
        %2011 = vmatpush1.msra.mxu0 %v1861
        %2012 = vmatprep.subr.mxu0 0.0
        %2013 = vmatpush1.msra.mxu0 %v1862
        %2014 = vmatprep.subr.mxu0 0.0
        %2015 = vmatpush1.msra.mxu0 %v1863
        %2016 = vmatprep.subr.mxu0 0.0
        %2017 = vmatpush1.msra.mxu0 %v1864
        %2018 = vmatprep.subr.mxu0 0.0
        %2019 = vmatpush1.msra.mxu0 %v1865
        %2020 = vmatprep.subr.mxu0 0.0
        %2021 = vmatpush1.msra.mxu0 %v1866
        %2022 = vmatprep.subr.mxu0 0.0
        %2023 = vmatpush1.msra.mxu0 %v1867
        %2024 = vmatprep.subr.mxu0 0.0
        %2025 = vmatpush1.msra.mxu0 %v1868
        %2026 = vmatprep.subr.mxu0 0.0
        %2027 = vmatpush1.msra.mxu0 %v1869
        %2028 = vmatprep.subr.mxu0 0.0
        %2029 = vmatpush1.msra.mxu0 %v1870
        %2030 = vmatprep.subr.mxu0 0.0
        %2031 = vmatpush1.msra.mxu0 %v1871
        %2032 = vmatprep.subr.mxu0 0.0
        %2033 = vmatpush1.msra.mxu0 %v1872
        %2034 = vmatprep.subr.mxu0 0.0
        %2035 = vmatpush1.msra.mxu0 %v1873
        %2036 = vmatprep.subr.mxu0 0.0
        %2037 = vmatpush1.msra.mxu0 %v1874
        %2038 = vmatprep.subr.mxu0 0.0
        %2039 = vmatpush1.msra.mxu0 %v1875
        %2040 = vmatprep.subr.mxu0 0.0
        %2041 = vmatpush1.msra.mxu0 %v1876
        %2042 = vmatprep.subr.mxu0 0.0
        %2043 = vmatpush1.msra.mxu0 %v1877
        %2044 = vmatprep.subr.mxu0 0.0
        %2045 = vmatpush1.msra.mxu0 %v1878
        %2046 = vmatprep.subr.mxu0 0.0
        %2047 = vmatpush1.msra.mxu0 %v1879
        %2048 = vmatprep.subr.mxu0 0.0
        %2049 = vmatpush1.msra.mxu0 %v1880
        %2050 = vmatprep.subr.mxu0 0.0
        %2051 = vmatpush1.msra.mxu0 %v1881
        %2052 = vmatprep.subr.mxu0 0.0
        %2053 = vmatpush1.msra.mxu0 %v1882
        %2054 = vmatprep.subr.mxu0 0.0
        %2055 = vmatpush1.msra.mxu0 %v1883
        %2056 = vmatprep.subr.mxu0 0.0
        %2057 = vmatpush1.msra.mxu0 %v1884
        %2058 = vmatprep.mubr.f32.mxu0 %v1850
        %2059 = vmatmul.mubr.f32.gmra.mrb[0].mxu0 %v1849
        %v2060 = vpop.f32.mrb[0].mxu0
        %v2061 = vadd.f32 %v1991, %v2060
        %v2062 = vpop.f32.mrb[0].mxu0
        %2063 = vdwg.mxu0
        %s2064 = scalar_lea.vmem %s5, 512
        %v2065 = vld [vmem:[%s2064] sm:$0xff]
        %v2066 = vld [vmem:[%s2064 + $0x8] sm:$0xff]
        %v2067 = vld [vmem:[%s2064 + $0x10] sm:$0xff]
        %v2068 = vld [vmem:[%s2064 + $0x18] sm:$0xff]
        %v2069 = vld [vmem:[%s2064 + $0x20] sm:$0xff]
        %v2070 = vld [vmem:[%s2064 + $0x28] sm:$0xff]
        %v2071 = vld [vmem:[%s2064 + $0x30] sm:$0xff]
        %v2072 = vld [vmem:[%s2064 + $0x38] sm:$0xff]
        %v2073 = vld [vmem:[%s2064 + $0x40] sm:$0xff]
        %v2074 = vld [vmem:[%s2064 + $0x48] sm:$0xff]
        %v2075 = vld [vmem:[%s2064 + $0x50] sm:$0xff]
        %v2076 = vld [vmem:[%s2064 + $0x58] sm:$0xff]
        %v2077 = vld [vmem:[%s2064 + $0x60] sm:$0xff]
        %v2078 = vld [vmem:[%s2064 + $0x68] sm:$0xff]
        %v2079 = vld [vmem:[%s2064 + $0x70] sm:$0xff]
        %v2080 = vld [vmem:[%s2064 + $0x78] sm:$0xff]
        %v2081 = vld [vmem:[%s2064 + $0x80] sm:$0xff]
        %v2082 = vld [vmem:[%s2064 + $0x88] sm:$0xff]
        %v2083 = vld [vmem:[%s2064 + $0x90] sm:$0xff]
        %v2084 = vld [vmem:[%s2064 + $0x98] sm:$0xff]
        %v2085 = vld [vmem:[%s2064 + $0xa0] sm:$0xff]
        %v2086 = vld [vmem:[%s2064 + $0xa8] sm:$0xff]
        %v2087 = vld [vmem:[%s2064 + $0xb0] sm:$0xff]
        %v2088 = vld [vmem:[%s2064 + $0xb8] sm:$0xff]
        %v2089 = vld [vmem:[%s2064 + $0xc0] sm:$0xff]
        %v2090 = vld [vmem:[%s2064 + $0xc8] sm:$0xff]
        %v2091 = vld [vmem:[%s2064 + $0xd0] sm:$0xff]
        %v2092 = vld [vmem:[%s2064 + $0xd8] sm:$0xff]
        %v2093 = vld [vmem:[%s2064 + $0xe0] sm:$0xff]
        %v2094 = vld [vmem:[%s2064 + $0xe8] sm:$0xff]
        %v2095 = vld [vmem:[%s2064 + $0xf0] sm:$0xff]
        %v2096 = vld [vmem:[%s2064 + $0xf8] sm:$0xff]
        %v2097 = vrot.slane %v1849, 2
        %v2098 = vrot.slane %v1850, 2
        %2101 = vmatprep.subr.mxu0 0.0
        %2102 = vmatpush1.msra.mxu0 %v2065
        %2103 = vmatprep.subr.mxu0 0.0
        %2104 = vmatpush1.msra.mxu0 %v2066
        %2105 = vmatprep.subr.mxu0 0.0
        %2106 = vmatpush1.msra.mxu0 %v2067
        %2107 = vmatprep.subr.mxu0 0.0
        %2108 = vmatpush1.msra.mxu0 %v2068
        %2109 = vmatprep.subr.mxu0 0.0
        %2110 = vmatpush1.msra.mxu0 %v2069
        %2111 = vmatprep.subr.mxu0 0.0
        %2112 = vmatpush1.msra.mxu0 %v2070
        %2113 = vmatprep.subr.mxu0 0.0
        %2114 = vmatpush1.msra.mxu0 %v2071
        %2115 = vmatprep.subr.mxu0 0.0
        %2116 = vmatpush1.msra.mxu0 %v2072
        %2117 = vmatprep.subr.mxu0 0.0
        %2118 = vmatpush1.msra.mxu0 %v2073
        %2119 = vmatprep.subr.mxu0 0.0
        %2120 = vmatpush1.msra.mxu0 %v2074
        %2121 = vmatprep.subr.mxu0 0.0
        %2122 = vmatpush1.msra.mxu0 %v2075
        %2123 = vmatprep.subr.mxu0 0.0
        %2124 = vmatpush1.msra.mxu0 %v2076
        %2125 = vmatprep.subr.mxu0 0.0
        %2126 = vmatpush1.msra.mxu0 %v2077
        %2127 = vmatprep.subr.mxu0 0.0
        %2128 = vmatpush1.msra.mxu0 %v2078
        %2129 = vmatprep.subr.mxu0 0.0
        %2130 = vmatpush1.msra.mxu0 %v2079
        %2131 = vmatprep.subr.mxu0 0.0
        %2132 = vmatpush1.msra.mxu0 %v2080
        %2133 = vmatprep.subr.mxu0 0.0
        %2134 = vmatpush1.msra.mxu0 %v2081
        %2135 = vmatprep.subr.mxu0 0.0
        %2136 = vmatpush1.msra.mxu0 %v2082
        %2137 = vmatprep.subr.mxu0 0.0
        %2138 = vmatpush1.msra.mxu0 %v2083
        %2139 = vmatprep.subr.mxu0 0.0
        %2140 = vmatpush1.msra.mxu0 %v2084
        %2141 = vmatprep.subr.mxu0 0.0
        %2142 = vmatpush1.msra.mxu0 %v2085
        %2143 = vmatprep.subr.mxu0 0.0
        %2144 = vmatpush1.msra.mxu0 %v2086
        %2145 = vmatprep.subr.mxu0 0.0
        %2146 = vmatpush1.msra.mxu0 %v2087
        %2147 = vmatprep.subr.mxu0 0.0
        %2148 = vmatpush1.msra.mxu0 %v2088
        %2149 = vmatprep.subr.mxu0 0.0
        %2150 = vmatpush1.msra.mxu0 %v2089
        %2151 = vmatprep.subr.mxu0 0.0
        %2152 = vmatpush1.msra.mxu0 %v2090
        %2153 = vmatprep.subr.mxu0 0.0
        %2154 = vmatpush1.msra.mxu0 %v2091
        %2155 = vmatprep.subr.mxu0 0.0
        %2156 = vmatpush1.msra.mxu0 %v2092
        %2157 = vmatprep.subr.mxu0 0.0
        %2158 = vmatpush1.msra.mxu0 %v2093
        %2159 = vmatprep.subr.mxu0 0.0
        %2160 = vmatpush1.msra.mxu0 %v2094
        %2161 = vmatprep.subr.mxu0 0.0
        %2162 = vmatpush1.msra.mxu0 %v2095
        %2163 = vmatprep.subr.mxu0 0.0
        %2164 = vmatpush1.msra.mxu0 %v2096
        %2165 = vmatprep.mubr.f32.mxu0 %v2098
        %2166 = vmatmul.mubr.f32.gmra.mrb[0].mxu0 %v2097
        %v2167 = vpop.f32.mrb[0].mxu0
        %v2168 = vadd.f32 0.0, %v2167
        %v2169 = vpop.f32.mrb[0].mxu0
        %2170 = vdwg.mxu0
        %v2171 = vadd.f32 %v2061, %v2168
        %s2172 = scalar_lea.vmem %s5, 768
        %v2173 = vld [vmem:[%s2172] sm:$0xff]
        %v2174 = vld [vmem:[%s2172 + $0x8] sm:$0xff]
        %v2175 = vld [vmem:[%s2172 + $0x10] sm:$0xff]
        %v2176 = vld [vmem:[%s2172 + $0x18] sm:$0xff]
        %v2177 = vld [vmem:[%s2172 + $0x20] sm:$0xff]
        %v2178 = vld [vmem:[%s2172 + $0x28] sm:$0xff]
        %v2179 = vld [vmem:[%s2172 + $0x30] sm:$0xff]
        %v2180 = vld [vmem:[%s2172 + $0x38] sm:$0xff]
        %v2181 = vld [vmem:[%s2172 + $0x40] sm:$0xff]
        %v2182 = vld [vmem:[%s2172 + $0x48] sm:$0xff]
        %v2183 = vld [vmem:[%s2172 + $0x50] sm:$0xff]
        %v2184 = vld [vmem:[%s2172 + $0x58] sm:$0xff]
        %v2185 = vld [vmem:[%s2172 + $0x60] sm:$0xff]
        %v2186 = vld [vmem:[%s2172 + $0x68] sm:$0xff]
        %v2187 = vld [vmem:[%s2172 + $0x70] sm:$0xff]
        %v2188 = vld [vmem:[%s2172 + $0x78] sm:$0xff]
        %v2189 = vld [vmem:[%s2172 + $0x80] sm:$0xff]
        %v2190 = vld [vmem:[%s2172 + $0x88] sm:$0xff]
        %v2191 = vld [vmem:[%s2172 + $0x90] sm:$0xff]
        %v2192 = vld [vmem:[%s2172 + $0x98] sm:$0xff]
        %v2193 = vld [vmem:[%s2172 + $0xa0] sm:$0xff]
        %v2194 = vld [vmem:[%s2172 + $0xa8] sm:$0xff]
        %v2195 = vld [vmem:[%s2172 + $0xb0] sm:$0xff]
        %v2196 = vld [vmem:[%s2172 + $0xb8] sm:$0xff]
        %v2197 = vld [vmem:[%s2172 + $0xc0] sm:$0xff]
        %v2198 = vld [vmem:[%s2172 + $0xc8] sm:$0xff]
        %v2199 = vld [vmem:[%s2172 + $0xd0] sm:$0xff]
        %v2200 = vld [vmem:[%s2172 + $0xd8] sm:$0xff]
        %v2201 = vld [vmem:[%s2172 + $0xe0] sm:$0xff]
        %v2202 = vld [vmem:[%s2172 + $0xe8] sm:$0xff]
        %v2203 = vld [vmem:[%s2172 + $0xf0] sm:$0xff]
        %v2204 = vld [vmem:[%s2172 + $0xf8] sm:$0xff]
        %v2205 = vrot.slane %v1849, 3
        %v2206 = vrot.slane %v1850, 3
        %2209 = vmatprep.subr.mxu0 0.0
        %2210 = vmatpush1.msra.mxu0 %v2173
        %2211 = vmatprep.subr.mxu0 0.0
        %2212 = vmatpush1.msra.mxu0 %v2174
        %2213 = vmatprep.subr.mxu0 0.0
        %2214 = vmatpush1.msra.mxu0 %v2175
        %2215 = vmatprep.subr.mxu0 0.0
        %2216 = vmatpush1.msra.mxu0 %v2176
        %2217 = vmatprep.subr.mxu0 0.0
        %2218 = vmatpush1.msra.mxu0 %v2177
        %2219 = vmatprep.subr.mxu0 0.0
        %2220 = vmatpush1.msra.mxu0 %v2178
        %2221 = vmatprep.subr.mxu0 0.0
        %2222 = vmatpush1.msra.mxu0 %v2179
        %2223 = vmatprep.subr.mxu0 0.0
        %2224 = vmatpush1.msra.mxu0 %v2180
        %2225 = vmatprep.subr.mxu0 0.0
        %2226 = vmatpush1.msra.mxu0 %v2181
        %2227 = vmatprep.subr.mxu0 0.0
        %2228 = vmatpush1.msra.mxu0 %v2182
        %2229 = vmatprep.subr.mxu0 0.0
        %2230 = vmatpush1.msra.mxu0 %v2183
        %2231 = vmatprep.subr.mxu0 0.0
        %2232 = vmatpush1.msra.mxu0 %v2184
        %2233 = vmatprep.subr.mxu0 0.0
        %2234 = vmatpush1.msra.mxu0 %v2185
        %2235 = vmatprep.subr.mxu0 0.0
        %2236 = vmatpush1.msra.mxu0 %v2186
        %2237 = vmatprep.subr.mxu0 0.0
        %2238 = vmatpush1.msra.mxu0 %v2187
        %2239 = vmatprep.subr.mxu0 0.0
        %2240 = vmatpush1.msra.mxu0 %v2188
        %2241 = vmatprep.subr.mxu0 0.0
        %2242 = vmatpush1.msra.mxu0 %v2189
        %2243 = vmatprep.subr.mxu0 0.0
        %2244 = vmatpush1.msra.mxu0 %v2190
        %2245 = vmatprep.subr.mxu0 0.0
        %2246 = vmatpush1.msra.mxu0 %v2191
        %2247 = vmatprep.subr.mxu0 0.0
        %2248 = vmatpush1.msra.mxu0 %v2192
        %2249 = vmatprep.subr.mxu0 0.0
        %2250 = vmatpush1.msra.mxu0 %v2193
        %2251 = vmatprep.subr.mxu0 0.0
        %2252 = vmatpush1.msra.mxu0 %v2194
        %2253 = vmatprep.subr.mxu0 0.0
        %2254 = vmatpush1.msra.mxu0 %v2195
        %2255 = vmatprep.subr.mxu0 0.0
        %2256 = vmatpush1.msra.mxu0 %v2196
        %2257 = vmatprep.subr.mxu0 0.0
        %2258 = vmatpush1.msra.mxu0 %v2197
        %2259 = vmatprep.subr.mxu0 0.0
        %2260 = vmatpush1.msra.mxu0 %v2198
        %2261 = vmatprep.subr.mxu0 0.0
        %2262 = vmatpush1.msra.mxu0 %v2199
        %2263 = vmatprep.subr.mxu0 0.0
        %2264 = vmatpush1.msra.mxu0 %v2200
        %2265 = vmatprep.subr.mxu0 0.0
        %2266 = vmatpush1.msra.mxu0 %v2201
        %2267 = vmatprep.subr.mxu0 0.0
        %2268 = vmatpush1.msra.mxu0 %v2202
        %2269 = vmatprep.subr.mxu0 0.0
        %2270 = vmatpush1.msra.mxu0 %v2203
        %2271 = vmatprep.subr.mxu0 0.0
        %2272 = vmatpush1.msra.mxu0 %v2204
        %2273 = vmatprep.mubr.f32.mxu0 %v2206
        %2274 = vmatmul.mubr.f32.gmra.mrb[0].mxu0 %v2205
        %v2275 = vpop.f32.mrb[0].mxu0
        %v2276 = vadd.f32 0.0, %v2275
        %v2277 = vpop.f32.mrb[0].mxu0
        %2278 = vdwg.mxu0
        %v2279 = vadd.f32 %v2171, %v2276
        %s2280 = scalar_lea.vmem %s5, 1024
        %v2281 = vld [vmem:[%s2280] sm:$0xff]
        %v2282 = vld [vmem:[%s2280 + $0x8] sm:$0xff]
        %v2283 = vld [vmem:[%s2280 + $0x10] sm:$0xff]
        %v2284 = vld [vmem:[%s2280 + $0x18] sm:$0xff]
        %v2285 = vld [vmem:[%s2280 + $0x20] sm:$0xff]
        %v2286 = vld [vmem:[%s2280 + $0x28] sm:$0xff]
        %v2287 = vld [vmem:[%s2280 + $0x30] sm:$0xff]
        %v2288 = vld [vmem:[%s2280 + $0x38] sm:$0xff]
        %v2289 = vld [vmem:[%s2280 + $0x40] sm:$0xff]
        %v2290 = vld [vmem:[%s2280 + $0x48] sm:$0xff]
        %v2291 = vld [vmem:[%s2280 + $0x50] sm:$0xff]
        %v2292 = vld [vmem:[%s2280 + $0x58] sm:$0xff]
        %v2293 = vld [vmem:[%s2280 + $0x60] sm:$0xff]
        %v2294 = vld [vmem:[%s2280 + $0x68] sm:$0xff]
        %v2295 = vld [vmem:[%s2280 + $0x70] sm:$0xff]
        %v2296 = vld [vmem:[%s2280 + $0x78] sm:$0xff]
        %v2297 = vld [vmem:[%s2280 + $0x80] sm:$0xff]
        %v2298 = vld [vmem:[%s2280 + $0x88] sm:$0xff]
        %v2299 = vld [vmem:[%s2280 + $0x90] sm:$0xff]
        %v2300 = vld [vmem:[%s2280 + $0x98] sm:$0xff]
        %v2301 = vld [vmem:[%s2280 + $0xa0] sm:$0xff]
        %v2302 = vld [vmem:[%s2280 + $0xa8] sm:$0xff]
        %v2303 = vld [vmem:[%s2280 + $0xb0] sm:$0xff]
        %v2304 = vld [vmem:[%s2280 + $0xb8] sm:$0xff]
        %v2305 = vld [vmem:[%s2280 + $0xc0] sm:$0xff]
        %v2306 = vld [vmem:[%s2280 + $0xc8] sm:$0xff]
        %v2307 = vld [vmem:[%s2280 + $0xd0] sm:$0xff]
        %v2308 = vld [vmem:[%s2280 + $0xd8] sm:$0xff]
        %v2309 = vld [vmem:[%s2280 + $0xe0] sm:$0xff]
        %v2310 = vld [vmem:[%s2280 + $0xe8] sm:$0xff]
        %v2311 = vld [vmem:[%s2280 + $0xf0] sm:$0xff]
        %v2312 = vld [vmem:[%s2280 + $0xf8] sm:$0xff]
        %v2313 = vrot.slane %v1849, 4
        %v2314 = vrot.slane %v1850, 4
        %2317 = vmatprep.subr.mxu0 0.0
        %2318 = vmatpush1.msra.mxu0 %v2281
        %2319 = vmatprep.subr.mxu0 0.0
        %2320 = vmatpush1.msra.mxu0 %v2282
        %2321 = vmatprep.subr.mxu0 0.0
        %2322 = vmatpush1.msra.mxu0 %v2283
        %2323 = vmatprep.subr.mxu0 0.0
        %2324 = vmatpush1.msra.mxu0 %v2284
        %2325 = vmatprep.subr.mxu0 0.0
        %2326 = vmatpush1.msra.mxu0 %v2285
        %2327 = vmatprep.subr.mxu0 0.0
        %2328 = vmatpush1.msra.mxu0 %v2286
        %2329 = vmatprep.subr.mxu0 0.0
        %2330 = vmatpush1.msra.mxu0 %v2287
        %2331 = vmatprep.subr.mxu0 0.0
        %2332 = vmatpush1.msra.mxu0 %v2288
        %2333 = vmatprep.subr.mxu0 0.0
        %2334 = vmatpush1.msra.mxu0 %v2289
        %2335 = vmatprep.subr.mxu0 0.0
        %2336 = vmatpush1.msra.mxu0 %v2290
        %2337 = vmatprep.subr.mxu0 0.0
        %2338 = vmatpush1.msra.mxu0 %v2291
        %2339 = vmatprep.subr.mxu0 0.0
        %2340 = vmatpush1.msra.mxu0 %v2292
        %2341 = vmatprep.subr.mxu0 0.0
        %2342 = vmatpush1.msra.mxu0 %v2293
        %2343 = vmatprep.subr.mxu0 0.0
        %2344 = vmatpush1.msra.mxu0 %v2294
        %2345 = vmatprep.subr.mxu0 0.0
        %2346 = vmatpush1.msra.mxu0 %v2295
        %2347 = vmatprep.subr.mxu0 0.0
        %2348 = vmatpush1.msra.mxu0 %v2296
        %2349 = vmatprep.subr.mxu0 0.0
        %2350 = vmatpush1.msra.mxu0 %v2297
        %2351 = vmatprep.subr.mxu0 0.0
        %2352 = vmatpush1.msra.mxu0 %v2298
        %2353 = vmatprep.subr.mxu0 0.0
        %2354 = vmatpush1.msra.mxu0 %v2299
        %2355 = vmatprep.subr.mxu0 0.0
        %2356 = vmatpush1.msra.mxu0 %v2300
        %2357 = vmatprep.subr.mxu0 0.0
        %2358 = vmatpush1.msra.mxu0 %v2301
        %2359 = vmatprep.subr.mxu0 0.0
        %2360 = vmatpush1.msra.mxu0 %v2302
        %2361 = vmatprep.subr.mxu0 0.0
        %2362 = vmatpush1.msra.mxu0 %v2303
        %2363 = vmatprep.subr.mxu0 0.0
        %2364 = vmatpush1.msra.mxu0 %v2304
        %2365 = vmatprep.subr.mxu0 0.0
        %2366 = vmatpush1.msra.mxu0 %v2305
        %2367 = vmatprep.subr.mxu0 0.0
        %2368 = vmatpush1.msra.mxu0 %v2306
        %2369 = vmatprep.subr.mxu0 0.0
        %2370 = vmatpush1.msra.mxu0 %v2307
        %2371 = vmatprep.subr.mxu0 0.0
        %2372 = vmatpush1.msra.mxu0 %v2308
        %2373 = vmatprep.subr.mxu0 0.0
        %2374 = vmatpush1.msra.mxu0 %v2309
        %2375 = vmatprep.subr.mxu0 0.0
        %2376 = vmatpush1.msra.mxu0 %v2310
        %2377 = vmatprep.subr.mxu0 0.0
        %2378 = vmatpush1.msra.mxu0 %v2311
        %2379 = vmatprep.subr.mxu0 0.0
        %2380 = vmatpush1.msra.mxu0 %v2312
        %2381 = vmatprep.mubr.f32.mxu0 %v2314
        %2382 = vmatmul.mubr.f32.gmra.mrb[0].mxu0 %v2313
        %v2383 = vpop.f32.mrb[0].mxu0
        %v2384 = vadd.f32 0.0, %v2383
        %v2385 = vpop.f32.mrb[0].mxu0
        %2386 = vdwg.mxu0
        %v2387 = vadd.f32 %v2279, %v2384
        %s2388 = scalar_lea.vmem %s5, 1280
        %v2389 = vld [vmem:[%s2388] sm:$0xff]
        %v2390 = vld [vmem:[%s2388 + $0x8] sm:$0xff]
        %v2391 = vld [vmem:[%s2388 + $0x10] sm:$0xff]
        %v2392 = vld [vmem:[%s2388 + $0x18] sm:$0xff]
        %v2393 = vld [vmem:[%s2388 + $0x20] sm:$0xff]
        %v2394 = vld [vmem:[%s2388 + $0x28] sm:$0xff]
        %v2395 = vld [vmem:[%s2388 + $0x30] sm:$0xff]
        %v2396 = vld [vmem:[%s2388 + $0x38] sm:$0xff]
        %v2397 = vld [vmem:[%s2388 + $0x40] sm:$0xff]
        %v2398 = vld [vmem:[%s2388 + $0x48] sm:$0xff]
        %v2399 = vld [vmem:[%s2388 + $0x50] sm:$0xff]
        %v2400 = vld [vmem:[%s2388 + $0x58] sm:$0xff]
        %v2401 = vld [vmem:[%s2388 + $0x60] sm:$0xff]
        %v2402 = vld [vmem:[%s2388 + $0x68] sm:$0xff]
        %v2403 = vld [vmem:[%s2388 + $0x70] sm:$0xff]
        %v2404 = vld [vmem:[%s2388 + $0x78] sm:$0xff]
        %v2405 = vld [vmem:[%s2388 + $0x80] sm:$0xff]
        %v2406 = vld [vmem:[%s2388 + $0x88] sm:$0xff]
        %v2407 = vld [vmem:[%s2388 + $0x90] sm:$0xff]
        %v2408 = vld [vmem:[%s2388 + $0x98] sm:$0xff]
        %v2409 = vld [vmem:[%s2388 + $0xa0] sm:$0xff]
        %v2410 = vld [vmem:[%s2388 + $0xa8] sm:$0xff]
        %v2411 = vld [vmem:[%s2388 + $0xb0] sm:$0xff]
        %v2412 = vld [vmem:[%s2388 + $0xb8] sm:$0xff]
        %v2413 = vld [vmem:[%s2388 + $0xc0] sm:$0xff]
        %v2414 = vld [vmem:[%s2388 + $0xc8] sm:$0xff]
        %v2415 = vld [vmem:[%s2388 + $0xd0] sm:$0xff]
        %v2416 = vld [vmem:[%s2388 + $0xd8] sm:$0xff]
        %v2417 = vld [vmem:[%s2388 + $0xe0] sm:$0xff]
        %v2418 = vld [vmem:[%s2388 + $0xe8] sm:$0xff]
        %v2419 = vld [vmem:[%s2388 + $0xf0] sm:$0xff]
        %v2420 = vld [vmem:[%s2388 + $0xf8] sm:$0xff]
        %v2421 = vrot.slane %v1849, 5
        %v2422 = vrot.slane %v1850, 5
        %2425 = vmatprep.subr.mxu0 0.0
        %2426 = vmatpush1.msra.mxu0 %v2389
        %2427 = vmatprep.subr.mxu0 0.0
        %2428 = vmatpush1.msra.mxu0 %v2390
        %2429 = vmatprep.subr.mxu0 0.0
        %2430 = vmatpush1.msra.mxu0 %v2391
        %2431 = vmatprep.subr.mxu0 0.0
        %2432 = vmatpush1.msra.mxu0 %v2392
        %2433 = vmatprep.subr.mxu0 0.0
        %2434 = vmatpush1.msra.mxu0 %v2393
        %2435 = vmatprep.subr.mxu0 0.0
        %2436 = vmatpush1.msra.mxu0 %v2394
        %2437 = vmatprep.subr.mxu0 0.0
        %2438 = vmatpush1.msra.mxu0 %v2395
        %2439 = vmatprep.subr.mxu0 0.0
        %2440 = vmatpush1.msra.mxu0 %v2396
        %2441 = vmatprep.subr.mxu0 0.0
        %2442 = vmatpush1.msra.mxu0 %v2397
        %2443 = vmatprep.subr.mxu0 0.0
        %2444 = vmatpush1.msra.mxu0 %v2398
        %2445 = vmatprep.subr.mxu0 0.0
        %2446 = vmatpush1.msra.mxu0 %v2399
        %2447 = vmatprep.subr.mxu0 0.0
        %2448 = vmatpush1.msra.mxu0 %v2400
        %2449 = vmatprep.subr.mxu0 0.0
        %2450 = vmatpush1.msra.mxu0 %v2401
        %2451 = vmatprep.subr.mxu0 0.0
        %2452 = vmatpush1.msra.mxu0 %v2402
        %2453 = vmatprep.subr.mxu0 0.0
        %2454 = vmatpush1.msra.mxu0 %v2403
        %2455 = vmatprep.subr.mxu0 0.0
        %2456 = vmatpush1.msra.mxu0 %v2404
        %2457 = vmatprep.subr.mxu0 0.0
        %2458 = vmatpush1.msra.mxu0 %v2405
        %2459 = vmatprep.subr.mxu0 0.0
        %2460 = vmatpush1.msra.mxu0 %v2406
        %2461 = vmatprep.subr.mxu0 0.0
        %2462 = vmatpush1.msra.mxu0 %v2407
        %2463 = vmatprep.subr.mxu0 0.0
        %2464 = vmatpush1.msra.mxu0 %v2408
        %2465 = vmatprep.subr.mxu0 0.0
        %2466 = vmatpush1.msra.mxu0 %v2409
        %2467 = vmatprep.subr.mxu0 0.0
        %2468 = vmatpush1.msra.mxu0 %v2410
        %2469 = vmatprep.subr.mxu0 0.0
        %2470 = vmatpush1.msra.mxu0 %v2411
        %2471 = vmatprep.subr.mxu0 0.0
        %2472 = vmatpush1.msra.mxu0 %v2412
        %2473 = vmatprep.subr.mxu0 0.0
        %2474 = vmatpush1.msra.mxu0 %v2413
        %2475 = vmatprep.subr.mxu0 0.0
        %2476 = vmatpush1.msra.mxu0 %v2414
        %2477 = vmatprep.subr.mxu0 0.0
        %2478 = vmatpush1.msra.mxu0 %v2415
        %2479 = vmatprep.subr.mxu0 0.0
        %2480 = vmatpush1.msra.mxu0 %v2416
        %2481 = vmatprep.subr.mxu0 0.0
        %2482 = vmatpush1.msra.mxu0 %v2417
        %2483 = vmatprep.subr.mxu0 0.0
        %2484 = vmatpush1.msra.mxu0 %v2418
        %2485 = vmatprep.subr.mxu0 0.0
        %2486 = vmatpush1.msra.mxu0 %v2419
        %2487 = vmatprep.subr.mxu0 0.0
        %2488 = vmatpush1.msra.mxu0 %v2420
        %2489 = vmatprep.mubr.f32.mxu0 %v2422
        %2490 = vmatmul.mubr.f32.gmra.mrb[0].mxu0 %v2421
        %v2491 = vpop.f32.mrb[0].mxu0
        %v2492 = vadd.f32 0.0, %v2491
        %v2493 = vpop.f32.mrb[0].mxu0
        %2494 = vdwg.mxu0
        %v2495 = vadd.f32 %v2387, %v2492
        %s2496 = scalar_lea.vmem %s5, 1536
        %v2497 = vld [vmem:[%s2496] sm:$0xff]
        %v2498 = vld [vmem:[%s2496 + $0x8] sm:$0xff]
        %v2499 = vld [vmem:[%s2496 + $0x10] sm:$0xff]
        %v2500 = vld [vmem:[%s2496 + $0x18] sm:$0xff]
        %v2501 = vld [vmem:[%s2496 + $0x20] sm:$0xff]
        %v2502 = vld [vmem:[%s2496 + $0x28] sm:$0xff]
        %v2503 = vld [vmem:[%s2496 + $0x30] sm:$0xff]
        %v2504 = vld [vmem:[%s2496 + $0x38] sm:$0xff]
        %v2505 = vld [vmem:[%s2496 + $0x40] sm:$0xff]
        %v2506 = vld [vmem:[%s2496 + $0x48] sm:$0xff]
        %v2507 = vld [vmem:[%s2496 + $0x50] sm:$0xff]
        %v2508 = vld [vmem:[%s2496 + $0x58] sm:$0xff]
        %v2509 = vld [vmem:[%s2496 + $0x60] sm:$0xff]
        %v2510 = vld [vmem:[%s2496 + $0x68] sm:$0xff]
        %v2511 = vld [vmem:[%s2496 + $0x70] sm:$0xff]
        %v2512 = vld [vmem:[%s2496 + $0x78] sm:$0xff]
        %v2513 = vld [vmem:[%s2496 + $0x80] sm:$0xff]
        %v2514 = vld [vmem:[%s2496 + $0x88] sm:$0xff]
        %v2515 = vld [vmem:[%s2496 + $0x90] sm:$0xff]
        %v2516 = vld [vmem:[%s2496 + $0x98] sm:$0xff]
        %v2517 = vld [vmem:[%s2496 + $0xa0] sm:$0xff]
        %v2518 = vld [vmem:[%s2496 + $0xa8] sm:$0xff]
        %v2519 = vld [vmem:[%s2496 + $0xb0] sm:$0xff]
        %v2520 = vld [vmem:[%s2496 + $0xb8] sm:$0xff]
        %v2521 = vld [vmem:[%s2496 + $0xc0] sm:$0xff]
        %v2522 = vld [vmem:[%s2496 + $0xc8] sm:$0xff]
        %v2523 = vld [vmem:[%s2496 + $0xd0] sm:$0xff]
        %v2524 = vld [vmem:[%s2496 + $0xd8] sm:$0xff]
        %v2525 = vld [vmem:[%s2496 + $0xe0] sm:$0xff]
        %v2526 = vld [vmem:[%s2496 + $0xe8] sm:$0xff]
        %v2527 = vld [vmem:[%s2496 + $0xf0] sm:$0xff]
        %v2528 = vld [vmem:[%s2496 + $0xf8] sm:$0xff]
        %v2529 = vrot.slane %v1849, 6
        %v2530 = vrot.slane %v1850, 6
        %2533 = vmatprep.subr.mxu0 0.0
        %2534 = vmatpush1.msra.mxu0 %v2497
        %2535 = vmatprep.subr.mxu0 0.0
        %2536 = vmatpush1.msra.mxu0 %v2498
        %2537 = vmatprep.subr.mxu0 0.0
        %2538 = vmatpush1.msra.mxu0 %v2499
        %2539 = vmatprep.subr.mxu0 0.0
        %2540 = vmatpush1.msra.mxu0 %v2500
        %2541 = vmatprep.subr.mxu0 0.0
        %2542 = vmatpush1.msra.mxu0 %v2501
        %2543 = vmatprep.subr.mxu0 0.0
        %2544 = vmatpush1.msra.mxu0 %v2502
        %2545 = vmatprep.subr.mxu0 0.0
        %2546 = vmatpush1.msra.mxu0 %v2503
        %2547 = vmatprep.subr.mxu0 0.0
        %2548 = vmatpush1.msra.mxu0 %v2504
        %2549 = vmatprep.subr.mxu0 0.0
        %2550 = vmatpush1.msra.mxu0 %v2505
        %2551 = vmatprep.subr.mxu0 0.0
        %2552 = vmatpush1.msra.mxu0 %v2506
        %2553 = vmatprep.subr.mxu0 0.0
        %2554 = vmatpush1.msra.mxu0 %v2507
        %2555 = vmatprep.subr.mxu0 0.0
        %2556 = vmatpush1.msra.mxu0 %v2508
        %2557 = vmatprep.subr.mxu0 0.0
        %2558 = vmatpush1.msra.mxu0 %v2509
        %2559 = vmatprep.subr.mxu0 0.0
        %2560 = vmatpush1.msra.mxu0 %v2510
        %2561 = vmatprep.subr.mxu0 0.0
        %2562 = vmatpush1.msra.mxu0 %v2511
        %2563 = vmatprep.subr.mxu0 0.0
        %2564 = vmatpush1.msra.mxu0 %v2512
        %2565 = vmatprep.subr.mxu0 0.0
        %2566 = vmatpush1.msra.mxu0 %v2513
        %2567 = vmatprep.subr.mxu0 0.0
        %2568 = vmatpush1.msra.mxu0 %v2514
        %2569 = vmatprep.subr.mxu0 0.0
        %2570 = vmatpush1.msra.mxu0 %v2515
        %2571 = vmatprep.subr.mxu0 0.0
        %2572 = vmatpush1.msra.mxu0 %v2516
        %2573 = vmatprep.subr.mxu0 0.0
        %2574 = vmatpush1.msra.mxu0 %v2517
        %2575 = vmatprep.subr.mxu0 0.0
        %2576 = vmatpush1.msra.mxu0 %v2518
        %2577 = vmatprep.subr.mxu0 0.0
        %2578 = vmatpush1.msra.mxu0 %v2519
        %2579 = vmatprep.subr.mxu0 0.0
        %2580 = vmatpush1.msra.mxu0 %v2520
        %2581 = vmatprep.subr.mxu0 0.0
        %2582 = vmatpush1.msra.mxu0 %v2521
        %2583 = vmatprep.subr.mxu0 0.0
        %2584 = vmatpush1.msra.mxu0 %v2522
        %2585 = vmatprep.subr.mxu0 0.0
        %2586 = vmatpush1.msra.mxu0 %v2523
        %2587 = vmatprep.subr.mxu0 0.0
        %2588 = vmatpush1.msra.mxu0 %v2524
        %2589 = vmatprep.subr.mxu0 0.0
        %2590 = vmatpush1.msra.mxu0 %v2525
        %2591 = vmatprep.subr.mxu0 0.0
        %2592 = vmatpush1.msra.mxu0 %v2526
        %2593 = vmatprep.subr.mxu0 0.0
        %2594 = vmatpush1.msra.mxu0 %v2527
        %2595 = vmatprep.subr.mxu0 0.0
        %2596 = vmatpush1.msra.mxu0 %v2528
        %2597 = vmatprep.mubr.f32.mxu0 %v2530
        %2598 = vmatmul.mubr.f32.gmra.mrb[0].mxu0 %v2529
        %v2599 = vpop.f32.mrb[0].mxu0
        %v2600 = vadd.f32 0.0, %v2599
        %v2601 = vpop.f32.mrb[0].mxu0
        %2602 = vdwg.mxu0
        %v2603 = vadd.f32 %v2495, %v2600
        %s2604 = scalar_lea.vmem %s5, 1792
        %v2605 = vld [vmem:[%s2604] sm:$0xff]
        %v2606 = vld [vmem:[%s2604 + $0x8] sm:$0xff]
        %v2607 = vld [vmem:[%s2604 + $0x10] sm:$0xff]
        %v2608 = vld [vmem:[%s2604 + $0x18] sm:$0xff]
        %v2609 = vld [vmem:[%s2604 + $0x20] sm:$0xff]
        %v2610 = vld [vmem:[%s2604 + $0x28] sm:$0xff]
        %v2611 = vld [vmem:[%s2604 + $0x30] sm:$0xff]
        %v2612 = vld [vmem:[%s2604 + $0x38] sm:$0xff]
        %v2613 = vld [vmem:[%s2604 + $0x40] sm:$0xff]
        %v2614 = vld [vmem:[%s2604 + $0x48] sm:$0xff]
        %v2615 = vld [vmem:[%s2604 + $0x50] sm:$0xff]
        %v2616 = vld [vmem:[%s2604 + $0x58] sm:$0xff]
        %v2617 = vld [vmem:[%s2604 + $0x60] sm:$0xff]
        %v2618 = vld [vmem:[%s2604 + $0x68] sm:$0xff]
        %v2619 = vld [vmem:[%s2604 + $0x70] sm:$0xff]
        %v2620 = vld [vmem:[%s2604 + $0x78] sm:$0xff]
        %v2621 = vld [vmem:[%s2604 + $0x80] sm:$0xff]
        %v2622 = vld [vmem:[%s2604 + $0x88] sm:$0xff]
        %v2623 = vld [vmem:[%s2604 + $0x90] sm:$0xff]
        %v2624 = vld [vmem:[%s2604 + $0x98] sm:$0xff]
        %v2625 = vld [vmem:[%s2604 + $0xa0] sm:$0xff]
        %v2626 = vld [vmem:[%s2604 + $0xa8] sm:$0xff]
        %v2627 = vld [vmem:[%s2604 + $0xb0] sm:$0xff]
        %v2628 = vld [vmem:[%s2604 + $0xb8] sm:$0xff]
        %v2629 = vld [vmem:[%s2604 + $0xc0] sm:$0xff]
        %v2630 = vld [vmem:[%s2604 + $0xc8] sm:$0xff]
        %v2631 = vld [vmem:[%s2604 + $0xd0] sm:$0xff]
        %v2632 = vld [vmem:[%s2604 + $0xd8] sm:$0xff]
        %v2633 = vld [vmem:[%s2604 + $0xe0] sm:$0xff]
        %v2634 = vld [vmem:[%s2604 + $0xe8] sm:$0xff]
        %v2635 = vld [vmem:[%s2604 + $0xf0] sm:$0xff]
        %v2636 = vld [vmem:[%s2604 + $0xf8] sm:$0xff]
        %v2637 = vrot.slane %v1849, 7
        %v2638 = vrot.slane %v1850, 7
        %2641 = vmatprep.subr.mxu0 0.0
        %2642 = vmatpush1.msra.mxu0 %v2605
        %2643 = vmatprep.subr.mxu0 0.0
        %2644 = vmatpush1.msra.mxu0 %v2606
        %2645 = vmatprep.subr.mxu0 0.0
        %2646 = vmatpush1.msra.mxu0 %v2607
        %2647 = vmatprep.subr.mxu0 0.0
        %2648 = vmatpush1.msra.mxu0 %v2608
        %2649 = vmatprep.subr.mxu0 0.0
        %2650 = vmatpush1.msra.mxu0 %v2609
        %2651 = vmatprep.subr.mxu0 0.0
        %2652 = vmatpush1.msra.mxu0 %v2610
        %2653 = vmatprep.subr.mxu0 0.0
        %2654 = vmatpush1.msra.mxu0 %v2611
        %2655 = vmatprep.subr.mxu0 0.0
        %2656 = vmatpush1.msra.mxu0 %v2612
        %2657 = vmatprep.subr.mxu0 0.0
        %2658 = vmatpush1.msra.mxu0 %v2613
        %2659 = vmatprep.subr.mxu0 0.0
        %2660 = vmatpush1.msra.mxu0 %v2614
        %2661 = vmatprep.subr.mxu0 0.0
        %2662 = vmatpush1.msra.mxu0 %v2615
        %2663 = vmatprep.subr.mxu0 0.0
        %2664 = vmatpush1.msra.mxu0 %v2616
        %2665 = vmatprep.subr.mxu0 0.0
        %2666 = vmatpush1.msra.mxu0 %v2617
        %2667 = vmatprep.subr.mxu0 0.0
        %2668 = vmatpush1.msra.mxu0 %v2618
        %2669 = vmatprep.subr.mxu0 0.0
        %2670 = vmatpush1.msra.mxu0 %v2619
        %2671 = vmatprep.subr.mxu0 0.0
        %2672 = vmatpush1.msra.mxu0 %v2620
        %2673 = vmatprep.subr.mxu0 0.0
        %2674 = vmatpush1.msra.mxu0 %v2621
        %2675 = vmatprep.subr.mxu0 0.0
        %2676 = vmatpush1.msra.mxu0 %v2622
        %2677 = vmatprep.subr.mxu0 0.0
        %2678 = vmatpush1.msra.mxu0 %v2623
        %2679 = vmatprep.subr.mxu0 0.0
        %2680 = vmatpush1.msra.mxu0 %v2624
        %2681 = vmatprep.subr.mxu0 0.0
        %2682 = vmatpush1.msra.mxu0 %v2625
        %2683 = vmatprep.subr.mxu0 0.0
        %2684 = vmatpush1.msra.mxu0 %v2626
        %2685 = vmatprep.subr.mxu0 0.0
        %2686 = vmatpush1.msra.mxu0 %v2627
        %2687 = vmatprep.subr.mxu0 0.0
        %2688 = vmatpush1.msra.mxu0 %v2628
        %2689 = vmatprep.subr.mxu0 0.0
        %2690 = vmatpush1.msra.mxu0 %v2629
        %2691 = vmatprep.subr.mxu0 0.0
        %2692 = vmatpush1.msra.mxu0 %v2630
        %2693 = vmatprep.subr.mxu0 0.0
        %2694 = vmatpush1.msra.mxu0 %v2631
        %2695 = vmatprep.subr.mxu0 0.0
        %2696 = vmatpush1.msra.mxu0 %v2632
        %2697 = vmatprep.subr.mxu0 0.0
        %2698 = vmatpush1.msra.mxu0 %v2633
        %2699 = vmatprep.subr.mxu0 0.0
        %2700 = vmatpush1.msra.mxu0 %v2634
        %2701 = vmatprep.subr.mxu0 0.0
        %2702 = vmatpush1.msra.mxu0 %v2635
        %2703 = vmatprep.subr.mxu0 0.0
        %2704 = vmatpush1.msra.mxu0 %v2636
        %2705 = vmatprep.mubr.f32.mxu0 %v2638
        %2706 = vmatmul.mubr.f32.gmra.mrb[0].mxu0 %v2637
        %v2707 = vpop.f32.mrb[0].mxu0
        %v2708 = vadd.f32 0.0, %v2707
        %v2709 = vpop.f32.mrb[0].mxu0
        %2710 = vdwg.mxu0
        %v2711 = vadd.f32 %v2603, %v2708
        %s2712 = scalar_lea.vmem %s5, 2048
        %v2713 = vld [vmem:[%s2712] sm:$0xff]
        %v2714 = vld [vmem:[%s2712 + $0x8] sm:$0xff]
        %v2715 = vld [vmem:[%s2712 + $0x10] sm:$0xff]
        %v2716 = vld [vmem:[%s2712 + $0x18] sm:$0xff]
        %v2717 = vld [vmem:[%s2712 + $0x20] sm:$0xff]
        %v2718 = vld [vmem:[%s2712 + $0x28] sm:$0xff]
        %v2719 = vld [vmem:[%s2712 + $0x30] sm:$0xff]
        %v2720 = vld [vmem:[%s2712 + $0x38] sm:$0xff]
        %v2721 = vld [vmem:[%s2712 + $0x40] sm:$0xff]
        %v2722 = vld [vmem:[%s2712 + $0x48] sm:$0xff]
        %v2723 = vld [vmem:[%s2712 + $0x50] sm:$0xff]
        %v2724 = vld [vmem:[%s2712 + $0x58] sm:$0xff]
        %v2725 = vld [vmem:[%s2712 + $0x60] sm:$0xff]
        %v2726 = vld [vmem:[%s2712 + $0x68] sm:$0xff]
        %v2727 = vld [vmem:[%s2712 + $0x70] sm:$0xff]
        %v2728 = vld [vmem:[%s2712 + $0x78] sm:$0xff]
        %v2729 = vld [vmem:[%s2712 + $0x80] sm:$0xff]
        %v2730 = vld [vmem:[%s2712 + $0x88] sm:$0xff]
        %v2731 = vld [vmem:[%s2712 + $0x90] sm:$0xff]
        %v2732 = vld [vmem:[%s2712 + $0x98] sm:$0xff]
        %v2733 = vld [vmem:[%s2712 + $0xa0] sm:$0xff]
        %v2734 = vld [vmem:[%s2712 + $0xa8] sm:$0xff]
        %v2735 = vld [vmem:[%s2712 + $0xb0] sm:$0xff]
        %v2736 = vld [vmem:[%s2712 + $0xb8] sm:$0xff]
        %v2737 = vld [vmem:[%s2712 + $0xc0] sm:$0xff]
        %v2738 = vld [vmem:[%s2712 + $0xc8] sm:$0xff]
        %v2739 = vld [vmem:[%s2712 + $0xd0] sm:$0xff]
        %v2740 = vld [vmem:[%s2712 + $0xd8] sm:$0xff]
        %v2741 = vld [vmem:[%s2712 + $0xe0] sm:$0xff]
        %v2742 = vld [vmem:[%s2712 + $0xe8] sm:$0xff]
        %v2743 = vld [vmem:[%s2712 + $0xf0] sm:$0xff]
        %v2744 = vld [vmem:[%s2712 + $0xf8] sm:$0xff]
        %2745 = vmatprep.subr.mxu0 0.0
        %2746 = vmatpush1.msra.mxu0 %v2713
        %2747 = vmatprep.subr.mxu0 0.0
        %2748 = vmatpush1.msra.mxu0 %v2714
        %2749 = vmatprep.subr.mxu0 0.0
        %2750 = vmatpush1.msra.mxu0 %v2715
        %2751 = vmatprep.subr.mxu0 0.0
        %2752 = vmatpush1.msra.mxu0 %v2716
        %2753 = vmatprep.subr.mxu0 0.0
        %2754 = vmatpush1.msra.mxu0 %v2717
        %2755 = vmatprep.subr.mxu0 0.0
        %2756 = vmatpush1.msra.mxu0 %v2718
        %2757 = vmatprep.subr.mxu0 0.0
        %2758 = vmatpush1.msra.mxu0 %v2719
        %2759 = vmatprep.subr.mxu0 0.0
        %2760 = vmatpush1.msra.mxu0 %v2720
        %2761 = vmatprep.subr.mxu0 0.0
        %2762 = vmatpush1.msra.mxu0 %v2721
        %2763 = vmatprep.subr.mxu0 0.0
        %2764 = vmatpush1.msra.mxu0 %v2722
        %2765 = vmatprep.subr.mxu0 0.0
        %2766 = vmatpush1.msra.mxu0 %v2723
        %2767 = vmatprep.subr.mxu0 0.0
        %2768 = vmatpush1.msra.mxu0 %v2724
        %2769 = vmatprep.subr.mxu0 0.0
        %2770 = vmatpush1.msra.mxu0 %v2725
        %2771 = vmatprep.subr.mxu0 0.0
        %2772 = vmatpush1.msra.mxu0 %v2726
        %2773 = vmatprep.subr.mxu0 0.0
        %2774 = vmatpush1.msra.mxu0 %v2727
        %2775 = vmatprep.subr.mxu0 0.0
        %2776 = vmatpush1.msra.mxu0 %v2728
        %2777 = vmatprep.subr.mxu0 0.0
        %2778 = vmatpush1.msra.mxu0 %v2729
        %2779 = vmatprep.subr.mxu0 0.0
        %2780 = vmatpush1.msra.mxu0 %v2730
        %2781 = vmatprep.subr.mxu0 0.0
        %2782 = vmatpush1.msra.mxu0 %v2731
        %2783 = vmatprep.subr.mxu0 0.0
        %2784 = vmatpush1.msra.mxu0 %v2732
        %2785 = vmatprep.subr.mxu0 0.0
        %2786 = vmatpush1.msra.mxu0 %v2733
        %2787 = vmatprep.subr.mxu0 0.0
        %2788 = vmatpush1.msra.mxu0 %v2734
        %2789 = vmatprep.subr.mxu0 0.0
        %2790 = vmatpush1.msra.mxu0 %v2735
        %2791 = vmatprep.subr.mxu0 0.0
        %2792 = vmatpush1.msra.mxu0 %v2736
        %2793 = vmatprep.subr.mxu0 0.0
        %2794 = vmatpush1.msra.mxu0 %v2737
        %2795 = vmatprep.subr.mxu0 0.0
        %2796 = vmatpush1.msra.mxu0 %v2738
        %2797 = vmatprep.subr.mxu0 0.0
        %2798 = vmatpush1.msra.mxu0 %v2739
        %2799 = vmatprep.subr.mxu0 0.0
        %2800 = vmatpush1.msra.mxu0 %v2740
        %2801 = vmatprep.subr.mxu0 0.0
        %2802 = vmatpush1.msra.mxu0 %v2741
        %2803 = vmatprep.subr.mxu0 0.0
        %2804 = vmatpush1.msra.mxu0 %v2742
        %2805 = vmatprep.subr.mxu0 0.0
        %2806 = vmatpush1.msra.mxu0 %v2743
        %2807 = vmatprep.subr.mxu0 0.0
        %2808 = vmatpush1.msra.mxu0 %v2744
        %2809 = vmatprep.mubr.f32.mxu0 %v1852
        %2810 = vmatmul.mubr.f32.gmra.mrb[0].mxu0 %v1851
        %v2811 = vpop.f32.mrb[0].mxu0
        %v2812 = vadd.f32 0.0, %v2811
        %v2813 = vpop.f32.mrb[0].mxu0
        %2814 = vdwg.mxu0
        %v2815 = vadd.f32 %v2711, %v2812
        %s2816 = scalar_lea.vmem %s5, 2304
        %v2817 = vld [vmem:[%s2816] sm:$0xff]
        %v2818 = vld [vmem:[%s2816 + $0x8] sm:$0xff]
        %v2819 = vld [vmem:[%s2816 + $0x10] sm:$0xff]
        %v2820 = vld [vmem:[%s2816 + $0x18] sm:$0xff]
        %v2821 = vld [vmem:[%s2816 + $0x20] sm:$0xff]
        %v2822 = vld [vmem:[%s2816 + $0x28] sm:$0xff]
        %v2823 = vld [vmem:[%s2816 + $0x30] sm:$0xff]
        %v2824 = vld [vmem:[%s2816 + $0x38] sm:$0xff]
        %v2825 = vld [vmem:[%s2816 + $0x40] sm:$0xff]
        %v2826 = vld [vmem:[%s2816 + $0x48] sm:$0xff]
        %v2827 = vld [vmem:[%s2816 + $0x50] sm:$0xff]
        %v2828 = vld [vmem:[%s2816 + $0x58] sm:$0xff]
        %v2829 = vld [vmem:[%s2816 + $0x60] sm:$0xff]
        %v2830 = vld [vmem:[%s2816 + $0x68] sm:$0xff]
        %v2831 = vld [vmem:[%s2816 + $0x70] sm:$0xff]
        %v2832 = vld [vmem:[%s2816 + $0x78] sm:$0xff]
        %v2833 = vld [vmem:[%s2816 + $0x80] sm:$0xff]
        %v2834 = vld [vmem:[%s2816 + $0x88] sm:$0xff]
        %v2835 = vld [vmem:[%s2816 + $0x90] sm:$0xff]
        %v2836 = vld [vmem:[%s2816 + $0x98] sm:$0xff]
        %v2837 = vld [vmem:[%s2816 + $0xa0] sm:$0xff]
        %v2838 = vld [vmem:[%s2816 + $0xa8] sm:$0xff]
        %v2839 = vld [vmem:[%s2816 + $0xb0] sm:$0xff]
        %v2840 = vld [vmem:[%s2816 + $0xb8] sm:$0xff]
        %v2841 = vld [vmem:[%s2816 + $0xc0] sm:$0xff]
        %v2842 = vld [vmem:[%s2816 + $0xc8] sm:$0xff]
        %v2843 = vld [vmem:[%s2816 + $0xd0] sm:$0xff]
        %v2844 = vld [vmem:[%s2816 + $0xd8] sm:$0xff]
        %v2845 = vld [vmem:[%s2816 + $0xe0] sm:$0xff]
        %v2846 = vld [vmem:[%s2816 + $0xe8] sm:$0xff]
        %v2847 = vld [vmem:[%s2816 + $0xf0] sm:$0xff]
        %v2848 = vld [vmem:[%s2816 + $0xf8] sm:$0xff]
        %v2851 = vrot.slane %v1851, 1
        %v2852 = vrot.slane %v1852, 1
        %2855 = vmatprep.subr.mxu0 0.0
        %2856 = vmatpush1.msra.mxu0 %v2817
        %2857 = vmatprep.subr.mxu0 0.0
        %2858 = vmatpush1.msra.mxu0 %v2818
        %2859 = vmatprep.subr.mxu0 0.0
        %2860 = vmatpush1.msra.mxu0 %v2819
        %2861 = vmatprep.subr.mxu0 0.0
        %2862 = vmatpush1.msra.mxu0 %v2820
        %2863 = vmatprep.subr.mxu0 0.0
        %2864 = vmatpush1.msra.mxu0 %v2821
        %2865 = vmatprep.subr.mxu0 0.0
        %2866 = vmatpush1.msra.mxu0 %v2822
        %2867 = vmatprep.subr.mxu0 0.0
        %2868 = vmatpush1.msra.mxu0 %v2823
        %2869 = vmatprep.subr.mxu0 0.0
        %2870 = vmatpush1.msra.mxu0 %v2824
        %2871 = vmatprep.subr.mxu0 0.0
        %2872 = vmatpush1.msra.mxu0 %v2825
        %2873 = vmatprep.subr.mxu0 0.0
        %2874 = vmatpush1.msra.mxu0 %v2826
        %2875 = vmatprep.subr.mxu0 0.0
        %2876 = vmatpush1.msra.mxu0 %v2827
        %2877 = vmatprep.subr.mxu0 0.0
        %2878 = vmatpush1.msra.mxu0 %v2828
        %2879 = vmatprep.subr.mxu0 0.0
        %2880 = vmatpush1.msra.mxu0 %v2829
        %2881 = vmatprep.subr.mxu0 0.0
        %2882 = vmatpush1.msra.mxu0 %v2830
        %2883 = vmatprep.subr.mxu0 0.0
        %2884 = vmatpush1.msra.mxu0 %v2831
        %2885 = vmatprep.subr.mxu0 0.0
        %2886 = vmatpush1.msra.mxu0 %v2832
        %2887 = vmatprep.subr.mxu0 0.0
        %2888 = vmatpush1.msra.mxu0 %v2833
        %2889 = vmatprep.subr.mxu0 0.0
        %2890 = vmatpush1.msra.mxu0 %v2834
        %2891 = vmatprep.subr.mxu0 0.0
        %2892 = vmatpush1.msra.mxu0 %v2835
        %2893 = vmatprep.subr.mxu0 0.0
        %2894 = vmatpush1.msra.mxu0 %v2836
        %2895 = vmatprep.subr.mxu0 0.0
        %2896 = vmatpush1.msra.mxu0 %v2837
        %2897 = vmatprep.subr.mxu0 0.0
        %2898 = vmatpush1.msra.mxu0 %v2838
        %2899 = vmatprep.subr.mxu0 0.0
        %2900 = vmatpush1.msra.mxu0 %v2839
        %2901 = vmatprep.subr.mxu0 0.0
        %2902 = vmatpush1.msra.mxu0 %v2840
        %2903 = vmatprep.subr.mxu0 0.0
        %2904 = vmatpush1.msra.mxu0 %v2841
        %2905 = vmatprep.subr.mxu0 0.0
        %2906 = vmatpush1.msra.mxu0 %v2842
        %2907 = vmatprep.subr.mxu0 0.0
        %2908 = vmatpush1.msra.mxu0 %v2843
        %2909 = vmatprep.subr.mxu0 0.0
        %2910 = vmatpush1.msra.mxu0 %v2844
        %2911 = vmatprep.subr.mxu0 0.0
        %2912 = vmatpush1.msra.mxu0 %v2845
        %2913 = vmatprep.subr.mxu0 0.0
        %2914 = vmatpush1.msra.mxu0 %v2846
        %2915 = vmatprep.subr.mxu0 0.0
        %2916 = vmatpush1.msra.mxu0 %v2847
        %2917 = vmatprep.subr.mxu0 0.0
        %2918 = vmatpush1.msra.mxu0 %v2848
        %2919 = vmatprep.mubr.f32.mxu0 %v2852
        %2920 = vmatmul.mubr.f32.gmra.mrb[0].mxu0 %v2851
        %v2921 = vpop.f32.mrb[0].mxu0
        %v2922 = vadd.f32 0.0, %v2921
        %v2923 = vpop.f32.mrb[0].mxu0
        %2924 = vdwg.mxu0
        %v2925 = vadd.f32 %v2815, %v2922
        %s2926 = scalar_lea.vmem %s5, 2560
        %v2927 = vld [vmem:[%s2926] sm:$0xff]
        %v2928 = vld [vmem:[%s2926 + $0x8] sm:$0xff]
        %v2929 = vld [vmem:[%s2926 + $0x10] sm:$0xff]
        %v2930 = vld [vmem:[%s2926 + $0x18] sm:$0xff]
        %v2931 = vld [vmem:[%s2926 + $0x20] sm:$0xff]
        %v2932 = vld [vmem:[%s2926 + $0x28] sm:$0xff]
        %v2933 = vld [vmem:[%s2926 + $0x30] sm:$0xff]
        %v2934 = vld [vmem:[%s2926 + $0x38] sm:$0xff]
        %v2935 = vld [vmem:[%s2926 + $0x40] sm:$0xff]
        %v2936 = vld [vmem:[%s2926 + $0x48] sm:$0xff]
        %v2937 = vld [vmem:[%s2926 + $0x50] sm:$0xff]
        %v2938 = vld [vmem:[%s2926 + $0x58] sm:$0xff]
        %v2939 = vld [vmem:[%s2926 + $0x60] sm:$0xff]
        %v2940 = vld [vmem:[%s2926 + $0x68] sm:$0xff]
        %v2941 = vld [vmem:[%s2926 + $0x70] sm:$0xff]
        %v2942 = vld [vmem:[%s2926 + $0x78] sm:$0xff]
        %v2943 = vld [vmem:[%s2926 + $0x80] sm:$0xff]
        %v2944 = vld [vmem:[%s2926 + $0x88] sm:$0xff]
        %v2945 = vld [vmem:[%s2926 + $0x90] sm:$0xff]
        %v2946 = vld [vmem:[%s2926 + $0x98] sm:$0xff]
        %v2947 = vld [vmem:[%s2926 + $0xa0] sm:$0xff]
        %v2948 = vld [vmem:[%s2926 + $0xa8] sm:$0xff]
        %v2949 = vld [vmem:[%s2926 + $0xb0] sm:$0xff]
        %v2950 = vld [vmem:[%s2926 + $0xb8] sm:$0xff]
        %v2951 = vld [vmem:[%s2926 + $0xc0] sm:$0xff]
        %v2952 = vld [vmem:[%s2926 + $0xc8] sm:$0xff]
        %v2953 = vld [vmem:[%s2926 + $0xd0] sm:$0xff]
        %v2954 = vld [vmem:[%s2926 + $0xd8] sm:$0xff]
        %v2955 = vld [vmem:[%s2926 + $0xe0] sm:$0xff]
        %v2956 = vld [vmem:[%s2926 + $0xe8] sm:$0xff]
        %v2957 = vld [vmem:[%s2926 + $0xf0] sm:$0xff]
        %v2958 = vld [vmem:[%s2926 + $0xf8] sm:$0xff]
        %v2959 = vrot.slane %v1851, 2
        %v2960 = vrot.slane %v1852, 2
        %2963 = vmatprep.subr.mxu0 0.0
        %2964 = vmatpush1.msra.mxu0 %v2927
        %2965 = vmatprep.subr.mxu0 0.0
        %2966 = vmatpush1.msra.mxu0 %v2928
        %2967 = vmatprep.subr.mxu0 0.0
        %2968 = vmatpush1.msra.mxu0 %v2929
        %2969 = vmatprep.subr.mxu0 0.0
        %2970 = vmatpush1.msra.mxu0 %v2930
        %2971 = vmatprep.subr.mxu0 0.0
        %2972 = vmatpush1.msra.mxu0 %v2931
        %2973 = vmatprep.subr.mxu0 0.0
        %2974 = vmatpush1.msra.mxu0 %v2932
        %2975 = vmatprep.subr.mxu0 0.0
        %2976 = vmatpush1.msra.mxu0 %v2933
        %2977 = vmatprep.subr.mxu0 0.0
        %2978 = vmatpush1.msra.mxu0 %v2934
        %2979 = vmatprep.subr.mxu0 0.0
        %2980 = vmatpush1.msra.mxu0 %v2935
        %2981 = vmatprep.subr.mxu0 0.0
        %2982 = vmatpush1.msra.mxu0 %v2936
        %2983 = vmatprep.subr.mxu0 0.0
        %2984 = vmatpush1.msra.mxu0 %v2937
        %2985 = vmatprep.subr.mxu0 0.0
        %2986 = vmatpush1.msra.mxu0 %v2938
        %2987 = vmatprep.subr.mxu0 0.0
        %2988 = vmatpush1.msra.mxu0 %v2939
        %2989 = vmatprep.subr.mxu0 0.0
        %2990 = vmatpush1.msra.mxu0 %v2940
        %2991 = vmatprep.subr.mxu0 0.0
        %2992 = vmatpush1.msra.mxu0 %v2941
        %2993 = vmatprep.subr.mxu0 0.0
        %2994 = vmatpush1.msra.mxu0 %v2942
        %2995 = vmatprep.subr.mxu0 0.0
        %2996 = vmatpush1.msra.mxu0 %v2943
        %2997 = vmatprep.subr.mxu0 0.0
        %2998 = vmatpush1.msra.mxu0 %v2944
        %2999 = vmatprep.subr.mxu0 0.0
        %3000 = vmatpush1.msra.mxu0 %v2945
        %3001 = vmatprep.subr.mxu0 0.0
        %3002 = vmatpush1.msra.mxu0 %v2946
        %3003 = vmatprep.subr.mxu0 0.0
        %3004 = vmatpush1.msra.mxu0 %v2947
        %3005 = vmatprep.subr.mxu0 0.0
        %3006 = vmatpush1.msra.mxu0 %v2948
        %3007 = vmatprep.subr.mxu0 0.0
        %3008 = vmatpush1.msra.mxu0 %v2949
        %3009 = vmatprep.subr.mxu0 0.0
        %3010 = vmatpush1.msra.mxu0 %v2950
        %3011 = vmatprep.subr.mxu0 0.0
        %3012 = vmatpush1.msra.mxu0 %v2951
        %3013 = vmatprep.subr.mxu0 0.0
        %3014 = vmatpush1.msra.mxu0 %v2952
        %3015 = vmatprep.subr.mxu0 0.0
        %3016 = vmatpush1.msra.mxu0 %v2953
        %3017 = vmatprep.subr.mxu0 0.0
        %3018 = vmatpush1.msra.mxu0 %v2954
        %3019 = vmatprep.subr.mxu0 0.0
        %3020 = vmatpush1.msra.mxu0 %v2955
        %3021 = vmatprep.subr.mxu0 0.0
        %3022 = vmatpush1.msra.mxu0 %v2956
        %3023 = vmatprep.subr.mxu0 0.0
        %3024 = vmatpush1.msra.mxu0 %v2957
        %3025 = vmatprep.subr.mxu0 0.0
        %3026 = vmatpush1.msra.mxu0 %v2958
        %3027 = vmatprep.mubr.f32.mxu0 %v2960
        %3028 = vmatmul.mubr.f32.gmra.mrb[0].mxu0 %v2959
        %v3029 = vpop.f32.mrb[0].mxu0
        %v3030 = vadd.f32 0.0, %v3029
        %v3031 = vpop.f32.mrb[0].mxu0
        %3032 = vdwg.mxu0
        %v3033 = vadd.f32 %v2925, %v3030
        %s3034 = scalar_lea.vmem %s5, 2816
        %v3035 = vld [vmem:[%s3034] sm:$0xff]
        %v3036 = vld [vmem:[%s3034 + $0x8] sm:$0xff]
        %v3037 = vld [vmem:[%s3034 + $0x10] sm:$0xff]
        %v3038 = vld [vmem:[%s3034 + $0x18] sm:$0xff]
        %v3039 = vld [vmem:[%s3034 + $0x20] sm:$0xff]
        %v3040 = vld [vmem:[%s3034 + $0x28] sm:$0xff]
        %v3041 = vld [vmem:[%s3034 + $0x30] sm:$0xff]
        %v3042 = vld [vmem:[%s3034 + $0x38] sm:$0xff]
        %v3043 = vld [vmem:[%s3034 + $0x40] sm:$0xff]
        %v3044 = vld [vmem:[%s3034 + $0x48] sm:$0xff]
        %v3045 = vld [vmem:[%s3034 + $0x50] sm:$0xff]
        %v3046 = vld [vmem:[%s3034 + $0x58] sm:$0xff]
        %v3047 = vld [vmem:[%s3034 + $0x60] sm:$0xff]
        %v3048 = vld [vmem:[%s3034 + $0x68] sm:$0xff]
        %v3049 = vld [vmem:[%s3034 + $0x70] sm:$0xff]
        %v3050 = vld [vmem:[%s3034 + $0x78] sm:$0xff]
        %v3051 = vld [vmem:[%s3034 + $0x80] sm:$0xff]
        %v3052 = vld [vmem:[%s3034 + $0x88] sm:$0xff]
        %v3053 = vld [vmem:[%s3034 + $0x90] sm:$0xff]
        %v3054 = vld [vmem:[%s3034 + $0x98] sm:$0xff]
        %v3055 = vld [vmem:[%s3034 + $0xa0] sm:$0xff]
        %v3056 = vld [vmem:[%s3034 + $0xa8] sm:$0xff]
        %v3057 = vld [vmem:[%s3034 + $0xb0] sm:$0xff]
        %v3058 = vld [vmem:[%s3034 + $0xb8] sm:$0xff]
        %v3059 = vld [vmem:[%s3034 + $0xc0] sm:$0xff]
        %v3060 = vld [vmem:[%s3034 + $0xc8] sm:$0xff]
        %v3061 = vld [vmem:[%s3034 + $0xd0] sm:$0xff]
        %v3062 = vld [vmem:[%s3034 + $0xd8] sm:$0xff]
        %v3063 = vld [vmem:[%s3034 + $0xe0] sm:$0xff]
        %v3064 = vld [vmem:[%s3034 + $0xe8] sm:$0xff]
        %v3065 = vld [vmem:[%s3034 + $0xf0] sm:$0xff]
        %v3066 = vld [vmem:[%s3034 + $0xf8] sm:$0xff]
        %v3067 = vrot.slane %v1851, 3
        %v3068 = vrot.slane %v1852, 3
        %3071 = vmatprep.subr.mxu0 0.0
        %3072 = vmatpush1.msra.mxu0 %v3035
        %3073 = vmatprep.subr.mxu0 0.0
        %3074 = vmatpush1.msra.mxu0 %v3036
        %3075 = vmatprep.subr.mxu0 0.0
        %3076 = vmatpush1.msra.mxu0 %v3037
        %3077 = vmatprep.subr.mxu0 0.0
        %3078 = vmatpush1.msra.mxu0 %v3038
        %3079 = vmatprep.subr.mxu0 0.0
        %3080 = vmatpush1.msra.mxu0 %v3039
        %3081 = vmatprep.subr.mxu0 0.0
        %3082 = vmatpush1.msra.mxu0 %v3040
        %3083 = vmatprep.subr.mxu0 0.0
        %3084 = vmatpush1.msra.mxu0 %v3041
        %3085 = vmatprep.subr.mxu0 0.0
        %3086 = vmatpush1.msra.mxu0 %v3042
        %3087 = vmatprep.subr.mxu0 0.0
        %3088 = vmatpush1.msra.mxu0 %v3043
        %3089 = vmatprep.subr.mxu0 0.0
        %3090 = vmatpush1.msra.mxu0 %v3044
        %3091 = vmatprep.subr.mxu0 0.0
        %3092 = vmatpush1.msra.mxu0 %v3045
        %3093 = vmatprep.subr.mxu0 0.0
        %3094 = vmatpush1.msra.mxu0 %v3046
        %3095 = vmatprep.subr.mxu0 0.0
        %3096 = vmatpush1.msra.mxu0 %v3047
        %3097 = vmatprep.subr.mxu0 0.0
        %3098 = vmatpush1.msra.mxu0 %v3048
        %3099 = vmatprep.subr.mxu0 0.0
        %3100 = vmatpush1.msra.mxu0 %v3049
        %3101 = vmatprep.subr.mxu0 0.0
        %3102 = vmatpush1.msra.mxu0 %v3050
        %3103 = vmatprep.subr.mxu0 0.0
        %3104 = vmatpush1.msra.mxu0 %v3051
        %3105 = vmatprep.subr.mxu0 0.0
        %3106 = vmatpush1.msra.mxu0 %v3052
        %3107 = vmatprep.subr.mxu0 0.0
        %3108 = vmatpush1.msra.mxu0 %v3053
        %3109 = vmatprep.subr.mxu0 0.0
        %3110 = vmatpush1.msra.mxu0 %v3054
        %3111 = vmatprep.subr.mxu0 0.0
        %3112 = vmatpush1.msra.mxu0 %v3055
        %3113 = vmatprep.subr.mxu0 0.0
        %3114 = vmatpush1.msra.mxu0 %v3056
        %3115 = vmatprep.subr.mxu0 0.0
        %3116 = vmatpush1.msra.mxu0 %v3057
        %3117 = vmatprep.subr.mxu0 0.0
        %3118 = vmatpush1.msra.mxu0 %v3058
        %3119 = vmatprep.subr.mxu0 0.0
        %3120 = vmatpush1.msra.mxu0 %v3059
        %3121 = vmatprep.subr.mxu0 0.0
        %3122 = vmatpush1.msra.mxu0 %v3060
        %3123 = vmatprep.subr.mxu0 0.0
        %3124 = vmatpush1.msra.mxu0 %v3061
        %3125 = vmatprep.subr.mxu0 0.0
        %3126 = vmatpush1.msra.mxu0 %v3062
        %3127 = vmatprep.subr.mxu0 0.0
        %3128 = vmatpush1.msra.mxu0 %v3063
        %3129 = vmatprep.subr.mxu0 0.0
        %3130 = vmatpush1.msra.mxu0 %v3064
        %3131 = vmatprep.subr.mxu0 0.0
        %3132 = vmatpush1.msra.mxu0 %v3065
        %3133 = vmatprep.subr.mxu0 0.0
        %3134 = vmatpush1.msra.mxu0 %v3066
        %3135 = vmatprep.mubr.f32.mxu0 %v3068
        %3136 = vmatmul.mubr.f32.gmra.mrb[0].mxu0 %v3067
        %v3137 = vpop.f32.mrb[0].mxu0
        %v3138 = vadd.f32 0.0, %v3137
        %v3139 = vpop.f32.mrb[0].mxu0
        %3140 = vdwg.mxu0
        %v3141 = vadd.f32 %v3033, %v3138
        %v3142 = vld [vmem:[%s6] sm:$0x1]
        %v3143 = vadd.f32 %v3141, %v3142
        %v3144 = vmax.f32 %v3143, 0.0
        %vm3145 = vcmask 253952
        %3146 = vst.msk [vmem:[%s271] sm:$0x1] %vm3145, %v3144
        %s3147 = sand.u32 %s181, 1
        %s3148 = scalar_lea.sflag [#allocation3], %s3147
        %s3149 = sand.u32 %s181, 1
        %s3150 = scalar_lea.vmem [#allocation2], %s3149
        // Predicated region
        $region49: #{conv_encoder_forward.1} parent=47 // pred_check
          %p3151 = pneg %p191
        $region50: #{conv_encoder_forward.1} parent=47 // pred_check_branch
          %3153 = sbr.rel (%p3151) target = $region52
        $region51: #{conv_encoder_forward.1} parent=47 // pred_region
          %s3155 = ssub.s32 16, 16
          %3156 = vsyncadd %s3148, %s3155
          %s3157 = smul.addr %s21, 16
          %s3158 = scalar_lea.hbm %s7, %s3157
          %s3160 = sshll.u32 %s3150, 4
          %s3161 = int_to_ptr.vmem [resolvable:$true] %s3160
          %3163 = dma.vmem_to_hbm [thread:$0]  %s3161, 16, %s3158, %s3148
        $region52: #{conv_encoder_forward.1} parent=47 // pred_fallthru
          _
      $region48: #{conv_encoder_forward.1} parent=5 // pred_fallthru
        _
      %p3164 = scmp.le.s32.totalorder 2, %s16
      // Predicated region
      $region53: #{conv_encoder_forward.1} parent=5 // pred_check
        %p3165 = pneg %p3164
      $region54: #{conv_encoder_forward.1} parent=5 // pred_check_branch
        %3167 = sbr.rel (%p3165) target = $region56
      $region55: #{conv_encoder_forward.1} parent=5 // pred_region
        %s3168 = ssub.s32 %s16, 2
        // Predicated region
        $region57: #{conv_encoder_forward.1} parent=55 // pred_check
          %p3169 = pneg %p197
        $region58: #{conv_encoder_forward.1} parent=55 // pred_check_branch
          %3171 = sbr.rel (%p3169) target = $region60
        $region59: #{conv_encoder_forward.1} parent=55 // pred_region
          %s3172 = sand.u32 %s182, 1
          %s3173 = scalar_lea.sflag [#allocation3], %s3172
          %s3174 = sand.u32 %s182, 1
          %s3175 = scalar_lea.vmem [#allocation2], %s3174
          %3176 = dma.done %s3173, 16
        $region60: #{conv_encoder_forward.1} parent=55 // pred_fallthru
          _
      $region56: #{conv_encoder_forward.1} parent=5 // pred_fallthru
        _
    $region6: #{conv_encoder_forward.1} parent=1 // loop_footer
      %s20 = sadd.s32 1, %s16
    $region7: #{conv_encoder_forward.1} parent=1 // loop_footer_branch
      %15 = sbr.rel target = $region3
    $region8: #{conv_encoder_forward.1} parent=1 // loop_exit
      _
    %3177 = vsyncpa [#allocation3], 1
    %s3178 = scalar_lea.sflag [#allocation3], 1
    %3179 = vsyncpa %s3178, 1

</llo_original>
